<compile_context>
chip_gen: v7x
topology: tpu7x:2x2x1
jax: 0.10.0
libtpu: 0.0.40
codegen_flags: <defaults>
</compile_context>

<pallas_src>
import functools

import jax
import jax.numpy as jnp
from jax import lax
from jax.experimental import pallas as pl
from jax.experimental.pallas import tpu as pltpu


def _pick_vmem_limit():
    """Chip-aware scoped-VMEM budget (v5e/v6e: 128 MiB phys, v7x: 64 MiB)."""
    try:
        cap = int(pltpu.get_tpu_info().vmem_capacity_bytes)
        return min(3 * cap // 4, 100 * 1024 * 1024)
    except Exception:
        return None


# -----------------------------------------------------------------------------
# Fused Block kernel
# -----------------------------------------------------------------------------
def _block_kernel(x_ref,
                  dw1_ref, dwbn1_ref, pw1_ref, bn1_ref,
                  dw2_ref, dwbn2_ref, pw2_ref, bn2_ref,
                  dw3_ref, dwbn3_ref, pw3_ref, bn3_ref,
                  skw_ref, skbn_ref,
                  o_ref,
                  pad1, pad2, pad3,
                  *, H, W, d, lp, lp3):
    HW = H * W
    Cin = x_ref.shape[-1]
    p4 = pw1_ref.shape[-1]
    Cpad = pw3_ref.shape[-1]

    def depthwise_bn(pad_ref, w_ref, bn_ref, dil, left):
        # 3x3 depthwise conv (9 shifted mul-adds on the VPU) + folded BN.
        # Windows are read directly from the VMEM scratch ref (plain loads),
        # keeping only `acc` + one window live instead of 9 shifted copies.
        acc = None
        for i in range(3):
            for j in range(3):
                r0 = i * dil
                c0 = left - dil + j * dil
                win = pad_ref[r0:r0 + H, c0:c0 + W, :]
                term = win * w_ref[i * 3 + j, :]
                acc = term if acc is None else acc + term
        return acc * bn_ref[0, :] + bn_ref[1, :]

    def pointwise_bn(a, w_ref, bn_ref, cin, relu):
        # 1x1 conv == channel matmul on the MXU: bf16 operands, f32 accumulate,
        # then folded BN (+ optional ReLU).
        y = jnp.dot(a.reshape(HW, cin).astype(jnp.bfloat16), w_ref[...],
                    preferred_element_type=jnp.float32)
        y = y * bn_ref[0, :] + bn_ref[1, :]
        return jnp.maximum(y, 0.0) if relu else y

    x = x_ref[0]                                              # (H, W, Cin) f32

    # --- stage 1: ReLU -> SepConv(Cin -> p4, dil=d) -> BN -> ReLU -------------
    pad1[...] = jnp.zeros_like(pad1)
    pad1[d:d + H, lp:lp + W, :] = jnp.maximum(x, 0.0)         # relu(0)=0 => pad-safe
    a1 = depthwise_bn(pad1, dw1_ref, dwbn1_ref, d, lp)        # (H, W, Cin)
    h1 = pointwise_bn(a1, pw1_ref, bn1_ref, Cin, relu=True)   # (HW, p4)

    # --- stage 2: SepConv(p4 -> p4, dil=d) -> BN -> ReLU ----------------------
    pad2[...] = jnp.zeros_like(pad2)
    pad2[d:d + H, lp:lp + W, :] = h1.reshape(H, W, p4)
    a2 = depthwise_bn(pad2, dw2_ref, dwbn2_ref, d, lp)
    h2 = pointwise_bn(a2, pw2_ref, bn2_ref, p4, relu=True)

    # --- stage 3: SepConv(p4 -> planes, dil=1) -> BN (no ReLU) ----------------
    pad3[...] = jnp.zeros_like(pad3)
    pad3[1:1 + H, lp3:lp3 + W, :] = h2.reshape(H, W, p4)
    a3 = depthwise_bn(pad3, dw3_ref, dwbn3_ref, 1, lp3)
    h3 = pointwise_bn(a3, pw3_ref, bn3_ref, p4, relu=False)   # (HW, Cpad)

    # --- skip branch: 1x1 conv + BN on the ORIGINAL input, residual add -------
    sk = jnp.dot(x.reshape(HW, Cin).astype(jnp.bfloat16), skw_ref[...],
                 preferred_element_type=jnp.float32)
    sk = sk * skbn_ref[0, :] + skbn_ref[1, :]

    # Lane-dense store: last dim Cpad is a multiple of 128.
    o_ref[...] = (h3 + sk).reshape(1, H, W, Cpad)


# -----------------------------------------------------------------------------
# Wrappers
# -----------------------------------------------------------------------------
def block_forward_nhwc(x, P, dilation=1):
    """Fused Block forward, NHWC in / NHWC out (native kernel layout)."""
    N, H, W, Cin = x.shape
    p4 = P['pw1'].shape[1]
    planes = P['pw3'].shape[1]
    Cpad = ((planes + 127) // 128) * 128        # lane-dense output channels
    d = int(dilation)
    lp = ((d + 7) // 8) * 8                     # sublane-aligned left pad (>= d)
    lp3 = 8                                     # same, for the dilation-1 stage

    def stack2(s, b):
        return jnp.stack([s, b]).astype(jnp.float32)

    def pad_out(w2d, s, b):
        K = w2d.shape[0]
        wp = jnp.zeros((K, Cpad), jnp.float32).at[:, :planes].set(w2d)
        bn = jnp.zeros((2, Cpad), jnp.float32)
        bn = bn.at[0, :planes].set(s).at[1, :planes].set(b)
        return wp.astype(jnp.bfloat16), bn

    pw3_p, bn3_p = pad_out(P['pw3'], P['bn3_s'], P['bn3_b'])
    skw_p, skbn_p = pad_out(P['skip_w'], P['skip_s'], P['skip_b'])

    args = (
        x.astype(jnp.float32),
        P['dw1'].reshape(9, Cin).astype(jnp.float32), stack2(P['dw1_s'], P['dw1_b']),
        P['pw1'].astype(jnp.bfloat16), stack2(P['bn1_s'], P['bn1_b']),
        P['dw2'].reshape(9, p4).astype(jnp.float32), stack2(P['dw2_s'], P['dw2_b']),
        P['pw2'].astype(jnp.bfloat16), stack2(P['bn2_s'], P['bn2_b']),
        P['dw3'].reshape(9, p4).astype(jnp.float32), stack2(P['dw3_s'], P['dw3_b']),
        pw3_p, bn3_p,
        skw_p, skbn_p,
    )

    kernel = functools.partial(_block_kernel, H=H, W=W, d=d, lp=lp, lp3=lp3)
    in_specs = ([pl.BlockSpec((1, H, W, Cin), lambda n: (n, 0, 0, 0))]
                + [pl.BlockSpec(a.shape, lambda n: (0, 0)) for a in args[1:]])

    out = pl.pallas_call(
        kernel,
        out_shape=jax.ShapeDtypeStruct((N, H, W, Cpad), jnp.float32),
        grid=(N,),
        in_specs=in_specs,
        out_specs=pl.BlockSpec((1, H, W, Cpad), lambda n: (n, 0, 0, 0)),
        scratch_shapes=[
            pltpu.VMEM((H + 2 * d, lp + W + d, Cin), jnp.float32),
            pltpu.VMEM((H + 2 * d, lp + W + d, p4), jnp.float32),
            pltpu.VMEM((H + 2, lp3 + W + 1, p4), jnp.float32),
        ],
        compiler_params=pltpu.CompilerParams(
            dimension_semantics=("parallel",),
            vmem_limit_bytes=_pick_vmem_limit(),
        ),
    )(*args)
    return out[..., :planes]


@functools.partial(jax.jit, static_argnames=("dilation",))
def block_forward(x_nchw, P, dilation=1):
    """PyTorch-layout wrapper: NCHW in -> NCHW out.

    Use block_forward_nhwc directly to chain blocks without the boundary
    transposes (they exist only to match the PyTorch module's contract)."""
    x = jnp.transpose(x_nchw, (0, 2, 3, 1)).astype(jnp.float32)
    y = block_forward_nhwc(x, P, dilation)
    return jnp.transpose(y, (0, 3, 1, 2))


# -----------------------------------------------------------------------------
# Pure-JAX reference (lax.conv_general_dilated) for validation
# -----------------------------------------------------------------------------
def _bf16(t):
    return t.astype(jnp.bfloat16).astype(jnp.float32)


def ref_block(x_nchw, P, dilation=1):
    x = jnp.transpose(x_nchw, (0, 2, 3, 1)).astype(jnp.float32)
    hp = lax.Precision.HIGHEST

    def sep(t, dw, ds, db, pw, d):
        Cin = t.shape[-1]
        tp = jnp.pad(t, ((0, 0), (d, d), (d, d), (0, 0)))
        y = lax.conv_general_dilated(
            tp, dw.reshape(3, 3, 1, Cin), (1, 1), 'VALID',
            rhs_dilation=(d, d), dimension_numbers=('NHWC', 'HWIO', 'NHWC'),
            feature_group_count=Cin, precision=hp)
        y = y * ds + db
        # the kernel feeds the MXU with bf16 operands (f32 accumulation)
        return jnp.einsum('nhwc,cd->nhwd', _bf16(y), _bf16(pw), precision=hp)

    h = jnp.maximum(x, 0.0)
    h = sep(h, P['dw1'], P['dw1_s'], P['dw1_b'], P['pw1'], dilation)
    h = jnp.maximum(h * P['bn1_s'] + P['bn1_b'], 0.0)
    h = sep(h, P['dw2'], P['dw2_s'], P['dw2_b'], P['pw2'], dilation)
    h = jnp.maximum(h * P['bn2_s'] + P['bn2_b'], 0.0)
    h = sep(h, P['dw3'], P['dw3_s'], P['dw3_b'], P['pw3'], 1)
    h = h * P['bn3_s'] + P['bn3_b']
    skip = jnp.einsum('nhwc,cd->nhwd', _bf16(x), _bf16(P['skip_w']), precision=hp)
    skip = skip * P['skip_s'] + P['skip_b']
    return jnp.transpose(h + skip, (0, 3, 1, 2))


# -----------------------------------------------------------------------------
# Deterministic parameter construction (inference-mode folded BN)
# -----------------------------------------------------------------------------
def make_params(key, inplanes, planes):
    p4 = planes // 4
    ks = jax.random.split(key, 14)

    def conv_w(k, shape):
        return 0.1 * jax.random.normal(k, shape, jnp.float32)

    def bn(k, c):
        k1, k2, k3, k4 = jax.random.split(k, 4)
        gamma = 1.0 + 0.1 * jax.random.normal(k1, (c,), jnp.float32)
        beta = 0.1 * jax.random.normal(k2, (c,), jnp.float32)
        mean = 0.1 * jax.random.normal(k3, (c,), jnp.float32)
        var = jnp.abs(jax.random.normal(k4, (c,), jnp.float32)) + 0.5
        scale = gamma / jnp.sqrt(var + 1e-5)
        shift = beta - mean * scale
        return scale, shift

    P = {}
    P['dw1'] = conv_w(ks[0], (3, 3, inplanes))
    P['dw1_s'], P['dw1_b'] = bn(ks[1], inplanes)
    P['pw1'] = conv_w(ks[2], (inplanes, p4))
    P['bn1_s'], P['bn1_b'] = bn(ks[3], p4)

    P['dw2'] = conv_w(ks[4], (3, 3, p4))
    P['dw2_s'], P['dw2_b'] = bn(ks[5], p4)
    P['pw2'] = conv_w(ks[6], (p4, p4))
    P['bn2_s'], P['bn2_b'] = bn(ks[7], p4)

    P['dw3'] = conv_w(ks[8], (3, 3, p4))
    P['dw3_s'], P['dw3_b'] = bn(ks[9], p4)
    P['pw3'] = conv_w(ks[10], (p4, planes))
    P['bn3_s'], P['bn3_b'] = bn(ks[11], planes)

    P['skip_w'] = conv_w(ks[12], (inplanes, planes))
    P['skip_s'], P['skip_b'] = bn(ks[13], planes)
    return P


if __name__ == "__main__":
    key = jax.random.PRNGKey(0)
    k_x, k_p = jax.random.split(key)

    N, inplanes, planes, H, W = 2, 8, 16, 16, 16
    x = jax.random.normal(k_x, (N, inplanes, H, W), jnp.float32)   # NCHW like PyTorch
    P = make_params(k_p, inplanes, planes)

    out = jax.block_until_ready(block_forward(x, P, dilation=1))
    ref = jax.block_until_ready(ref_block(x, P, dilation=1))

    assert out.shape == (N, planes, H, W), out.shape
    err = float(jnp.max(jnp.abs(out - ref)))
    assert jnp.allclose(out, ref, rtol=5e-3, atol=5e-3), err
    print("KERNEL_OK")
</pallas_src>

<mosaic_0001>
module attributes {stable_mosaic.version = 11 : i64} {
  func.func @_block_kernel(%arg0: i32, %arg1: memref<1x16x16x8xf32, #tpu.memory_space<vmem>>, %arg2: memref<9x8xf32, #tpu.memory_space<vmem>>, %arg3: memref<2x8xf32, #tpu.memory_space<vmem>>, %arg4: memref<8x4xbf16, #tpu.memory_space<vmem>>, %arg5: memref<2x4xf32, #tpu.memory_space<vmem>>, %arg6: memref<9x4xf32, #tpu.memory_space<vmem>>, %arg7: memref<2x4xf32, #tpu.memory_space<vmem>>, %arg8: memref<4x4xbf16, #tpu.memory_space<vmem>>, %arg9: memref<2x4xf32, #tpu.memory_space<vmem>>, %arg10: memref<9x4xf32, #tpu.memory_space<vmem>>, %arg11: memref<2x4xf32, #tpu.memory_space<vmem>>, %arg12: memref<4x128xbf16, #tpu.memory_space<vmem>>, %arg13: memref<2x128xf32, #tpu.memory_space<vmem>>, %arg14: memref<8x128xbf16, #tpu.memory_space<vmem>>, %arg15: memref<2x128xf32, #tpu.memory_space<vmem>>, %arg16: memref<1x16x16x128xf32, #tpu.memory_space<vmem>>, %arg17: memref<18x25x8xf32, #tpu.memory_space<vmem>>, %arg18: memref<18x25x4xf32, #tpu.memory_space<vmem>>, %arg19: memref<18x25x4xf32, #tpu.memory_space<vmem>>) attributes {dimension_semantics = [#tpu.dimension_semantics<parallel>], iteration_bounds = array<i64: 2>, scalar_prefetch = 0 : i64, scratch_operands = 3 : i64, tpu.core_type = #tpu.core_type<tc>, window_params = [{transform_indices = @transform_0, window_bounds = array<i64: 1, 16, 16, 8>}, {pipeline_mode = #tpu.pipeline_mode<synchronous>, transform_indices = @transform_1, window_bounds = array<i64: 9, 8>}, {pipeline_mode = #tpu.pipeline_mode<synchronous>, transform_indices = @transform_2, window_bounds = array<i64: 2, 8>}, {pipeline_mode = #tpu.pipeline_mode<synchronous>, transform_indices = @transform_3, window_bounds = array<i64: 8, 4>}, {pipeline_mode = #tpu.pipeline_mode<synchronous>, transform_indices = @transform_4, window_bounds = array<i64: 2, 4>}, {pipeline_mode = #tpu.pipeline_mode<synchronous>, transform_indices = @transform_5, window_bounds = array<i64: 9, 4>}, {pipeline_mode = #tpu.pipeline_mode<synchronous>, transform_indices = @transform_6, window_bounds = array<i64: 2, 4>}, {pipeline_mode = #tpu.pipeline_mode<synchronous>, transform_indices = @transform_7, window_bounds = array<i64: 4, 4>}, {pipeline_mode = #tpu.pipeline_mode<synchronous>, transform_indices = @transform_8, window_bounds = array<i64: 2, 4>}, {pipeline_mode = #tpu.pipeline_mode<synchronous>, transform_indices = @transform_9, window_bounds = array<i64: 9, 4>}, {pipeline_mode = #tpu.pipeline_mode<synchronous>, transform_indices = @transform_10, window_bounds = array<i64: 2, 4>}, {pipeline_mode = #tpu.pipeline_mode<synchronous>, transform_indices = @transform_11, window_bounds = array<i64: 4, 128>}, {pipeline_mode = #tpu.pipeline_mode<synchronous>, transform_indices = @transform_12, window_bounds = array<i64: 2, 128>}, {pipeline_mode = #tpu.pipeline_mode<synchronous>, transform_indices = @transform_13, window_bounds = array<i64: 8, 128>}, {pipeline_mode = #tpu.pipeline_mode<synchronous>, transform_indices = @transform_14, window_bounds = array<i64: 2, 128>}, {transform_indices = @transform_15, window_bounds = array<i64: 1, 16, 16, 128>}]} {
    %c0 = arith.constant 0 : index
    %c0_0 = arith.constant 0 : index
    %c0_1 = arith.constant 0 : index
    %c0_2 = arith.constant 0 : index
    %0 = vector.load %arg1[%c0, %c0_0, %c0_1, %c0_2] : memref<1x16x16x8xf32, #tpu.memory_space<vmem>>, vector<1x16x16x8xf32>
    %1 = vector.shape_cast %0 : vector<1x16x16x8xf32> to vector<16x16x8xf32>
    %cst = arith.constant 0.000000e+00 : f32
    %2 = vector.broadcast %cst : f32 to vector<18x25x8xf32>
    %c0_3 = arith.constant 0 : index
    %c0_4 = arith.constant 0 : index
    %c0_5 = arith.constant 0 : index
    %3 = vector.load %arg17[%c0_3, %c0_4, %c0_5] : memref<18x25x8xf32, #tpu.memory_space<vmem>>, vector<18x25x8xf32>
    tpu.vector_store %arg17[%c0_3, %c0_4, %c0_5], %2 {strides = array<i32>} : memref<18x25x8xf32, #tpu.memory_space<vmem>>, vector<18x25x8xf32>,
    %cst_6 = arith.constant 0.000000e+00 : f32
    %4 = vector.broadcast %cst_6 : f32 to vector<16x16x8xf32>
    %5 = arith.maximumf %1, %4 : vector<16x16x8xf32>
    %c1 = arith.constant 1 : index
    %c8 = arith.constant 8 : index
    %c0_7 = arith.constant 0 : index
    %6 = vector.load %arg17[%c1, %c8, %c0_7] : memref<18x25x8xf32, #tpu.memory_space<vmem>>, vector<16x16x8xf32>
    tpu.vector_store %arg17[%c1, %c8, %c0_7], %5 {strides = array<i32>} : memref<18x25x8xf32, #tpu.memory_space<vmem>>, vector<16x16x8xf32>,
    %c0_8 = arith.constant 0 : index
    %c7 = arith.constant 7 : index
    %c0_9 = arith.constant 0 : index
    %7 = vector.load %arg17[%c0_8, %c7, %c0_9] : memref<18x25x8xf32, #tpu.memory_space<vmem>>, vector<16x16x8xf32>
    %c0_10 = arith.constant 0 : index
    %c0_11 = arith.constant 0 : index
    %8 = vector.load %arg2[%c0_10, %c0_11] : memref<9x8xf32, #tpu.memory_space<vmem>>, vector<1x8xf32>
    %9 = vector.shape_cast %8 : vector<1x8xf32> to vector<8xf32>
    %10 = vector.shape_cast %9 : vector<8xf32> to vector<1x1x8xf32>
    %11 = vector.broadcast %10 : vector<1x1x8xf32> to vector<16x16x8xf32>
    %12 = arith.mulf %7, %11 : vector<16x16x8xf32>
    %c0_12 = arith.constant 0 : index
    %c8_13 = arith.constant 8 : index
    %c0_14 = arith.constant 0 : index
    %13 = vector.load %arg17[%c0_12, %c8_13, %c0_14] : memref<18x25x8xf32, #tpu.memory_space<vmem>>, vector<16x16x8xf32>
    %c1_15 = arith.constant 1 : index
    %c0_16 = arith.constant 0 : index
    %14 = vector.load %arg2[%c1_15, %c0_16] : memref<9x8xf32, #tpu.memory_space<vmem>>, vector<1x8xf32>
    %15 = vector.shape_cast %14 : vector<1x8xf32> to vector<8xf32>
    %16 = vector.shape_cast %15 : vector<8xf32> to vector<1x1x8xf32>
    %17 = vector.broadcast %16 : vector<1x1x8xf32> to vector<16x16x8xf32>
    %18 = arith.mulf %13, %17 : vector<16x16x8xf32>
    %19 = arith.addf %12, %18 : vector<16x16x8xf32>
    %c0_17 = arith.constant 0 : index
    %c9 = arith.constant 9 : index
    %c0_18 = arith.constant 0 : index
    %20 = vector.load %arg17[%c0_17, %c9, %c0_18] : memref<18x25x8xf32, #tpu.memory_space<vmem>>, vector<16x16x8xf32>
    %c2 = arith.constant 2 : index
    %c0_19 = arith.constant 0 : index
    %21 = vector.load %arg2[%c2, %c0_19] : memref<9x8xf32, #tpu.memory_space<vmem>>, vector<1x8xf32>
    %22 = vector.shape_cast %21 : vector<1x8xf32> to vector<8xf32>
    %23 = vector.shape_cast %22 : vector<8xf32> to vector<1x1x8xf32>
    %24 = vector.broadcast %23 : vector<1x1x8xf32> to vector<16x16x8xf32>
    %25 = arith.mulf %20, %24 : vector<16x16x8xf32>
    %26 = arith.addf %19, %25 : vector<16x16x8xf32>
    %c1_20 = arith.constant 1 : index
    %c7_21 = arith.constant 7 : index
    %c0_22 = arith.constant 0 : index
    %27 = vector.load %arg17[%c1_20, %c7_21, %c0_22] : memref<18x25x8xf32, #tpu.memory_space<vmem>>, vector<16x16x8xf32>
    %c3 = arith.constant 3 : index
    %c0_23 = arith.constant 0 : index
    %28 = vector.load %arg2[%c3, %c0_23] : memref<9x8xf32, #tpu.memory_space<vmem>>, vector<1x8xf32>
    %29 = vector.shape_cast %28 : vector<1x8xf32> to vector<8xf32>
    %30 = vector.shape_cast %29 : vector<8xf32> to vector<1x1x8xf32>
    %31 = vector.broadcast %30 : vector<1x1x8xf32> to vector<16x16x8xf32>
    %32 = arith.mulf %27, %31 : vector<16x16x8xf32>
    %33 = arith.addf %26, %32 : vector<16x16x8xf32>
    %c1_24 = arith.constant 1 : index
    %c8_25 = arith.constant 8 : index
    %c0_26 = arith.constant 0 : index
    %34 = vector.load %arg17[%c1_24, %c8_25, %c0_26] : memref<18x25x8xf32, #tpu.memory_space<vmem>>, vector<16x16x8xf32>
    %c4 = arith.constant 4 : index
    %c0_27 = arith.constant 0 : index
    %35 = vector.load %arg2[%c4, %c0_27] : memref<9x8xf32, #tpu.memory_space<vmem>>, vector<1x8xf32>
    %36 = vector.shape_cast %35 : vector<1x8xf32> to vector<8xf32>
    %37 = vector.shape_cast %36 : vector<8xf32> to vector<1x1x8xf32>
    %38 = vector.broadcast %37 : vector<1x1x8xf32> to vector<16x16x8xf32>
    %39 = arith.mulf %34, %38 : vector<16x16x8xf32>
    %40 = arith.addf %33, %39 : vector<16x16x8xf32>
    %c1_28 = arith.constant 1 : index
    %c9_29 = arith.constant 9 : index
    %c0_30 = arith.constant 0 : index
    %41 = vector.load %arg17[%c1_28, %c9_29, %c0_30] : memref<18x25x8xf32, #tpu.memory_space<vmem>>, vector<16x16x8xf32>
    %c5 = arith.constant 5 : index
    %c0_31 = arith.constant 0 : index
    %42 = vector.load %arg2[%c5, %c0_31] : memref<9x8xf32, #tpu.memory_space<vmem>>, vector<1x8xf32>
    %43 = vector.shape_cast %42 : vector<1x8xf32> to vector<8xf32>
    %44 = vector.shape_cast %43 : vector<8xf32> to vector<1x1x8xf32>
    %45 = vector.broadcast %44 : vector<1x1x8xf32> to vector<16x16x8xf32>
    %46 = arith.mulf %41, %45 : vector<16x16x8xf32>
    %47 = arith.addf %40, %46 : vector<16x16x8xf32>
    %c2_32 = arith.constant 2 : index
    %c7_33 = arith.constant 7 : index
    %c0_34 = arith.constant 0 : index
    %48 = vector.load %arg17[%c2_32, %c7_33, %c0_34] : memref<18x25x8xf32, #tpu.memory_space<vmem>>, vector<16x16x8xf32>
    %c6 = arith.constant 6 : index
    %c0_35 = arith.constant 0 : index
    %49 = vector.load %arg2[%c6, %c0_35] : memref<9x8xf32, #tpu.memory_space<vmem>>, vector<1x8xf32>
    %50 = vector.shape_cast %49 : vector<1x8xf32> to vector<8xf32>
    %51 = vector.shape_cast %50 : vector<8xf32> to vector<1x1x8xf32>
    %52 = vector.broadcast %51 : vector<1x1x8xf32> to vector<16x16x8xf32>
    %53 = arith.mulf %48, %52 : vector<16x16x8xf32>
    %54 = arith.addf %47, %53 : vector<16x16x8xf32>
    %c2_36 = arith.constant 2 : index
    %c8_37 = arith.constant 8 : index
    %c0_38 = arith.constant 0 : index
    %55 = vector.load %arg17[%c2_36, %c8_37, %c0_38] : memref<18x25x8xf32, #tpu.memory_space<vmem>>, vector<16x16x8xf32>
    %c7_39 = arith.constant 7 : index
    %c0_40 = arith.constant 0 : index
    %56 = vector.load %arg2[%c7_39, %c0_40] : memref<9x8xf32, #tpu.memory_space<vmem>>, vector<1x8xf32>
    %57 = vector.shape_cast %56 : vector<1x8xf32> to vector<8xf32>
    %58 = vector.shape_cast %57 : vector<8xf32> to vector<1x1x8xf32>
    %59 = vector.broadcast %58 : vector<1x1x8xf32> to vector<16x16x8xf32>
    %60 = arith.mulf %55, %59 : vector<16x16x8xf32>
    %61 = arith.addf %54, %60 : vector<16x16x8xf32>
    %c2_41 = arith.constant 2 : index
    %c9_42 = arith.constant 9 : index
    %c0_43 = arith.constant 0 : index
    %62 = vector.load %arg17[%c2_41, %c9_42, %c0_43] : memref<18x25x8xf32, #tpu.memory_space<vmem>>, vector<16x16x8xf32>
    %c8_44 = arith.constant 8 : index
    %c0_45 = arith.constant 0 : index
    %63 = vector.load %arg2[%c8_44, %c0_45] : memref<9x8xf32, #tpu.memory_space<vmem>>, vector<1x8xf32>
    %64 = vector.shape_cast %63 : vector<1x8xf32> to vector<8xf32>
    %65 = vector.shape_cast %64 : vector<8xf32> to vector<1x1x8xf32>
    %66 = vector.broadcast %65 : vector<1x1x8xf32> to vector<16x16x8xf32>
    %67 = arith.mulf %62, %66 : vector<16x16x8xf32>
    %68 = arith.addf %61, %67 : vector<16x16x8xf32>
    %c0_46 = arith.constant 0 : index
    %c0_47 = arith.constant 0 : index
    %69 = vector.load %arg3[%c0_46, %c0_47] : memref<2x8xf32, #tpu.memory_space<vmem>>, vector<1x8xf32>
    %70 = vector.shape_cast %69 : vector<1x8xf32> to vector<8xf32>
    %71 = vector.shape_cast %70 : vector<8xf32> to vector<1x1x8xf32>
    %72 = vector.broadcast %71 : vector<1x1x8xf32> to vector<16x16x8xf32>
    %73 = arith.mulf %68, %72 : vector<16x16x8xf32>
    %c1_48 = arith.constant 1 : index
    %c0_49 = arith.constant 0 : index
    %74 = vector.load %arg3[%c1_48, %c0_49] : memref<2x8xf32, #tpu.memory_space<vmem>>, vector<1x8xf32>
    %75 = vector.shape_cast %74 : vector<1x8xf32> to vector<8xf32>
    %76 = vector.shape_cast %75 : vector<8xf32> to vector<1x1x8xf32>
    %77 = vector.broadcast %76 : vector<1x1x8xf32> to vector<16x16x8xf32>
    %78 = arith.addf %73, %77 : vector<16x16x8xf32>
    %79 = vector.shape_cast %78 : vector<16x16x8xf32> to vector<256x8xf32>
    %80 = arith.truncf %79 : vector<256x8xf32> to vector<256x8xbf16>
    %c0_50 = arith.constant 0 : index
    %c0_51 = arith.constant 0 : index
    %81 = vector.load %arg4[%c0_50, %c0_51] : memref<8x4xbf16, #tpu.memory_space<vmem>>, vector<8x4xbf16>
    %cst_52 = arith.constant dense<0.000000e+00> : vector<256x4xf32>
    %82 = tpu.matmul %80, %81, %cst_52 {dimension_numbers = #tpu.dot_dimension_numbers<[1], [0], [0], [1], [0, 0, 1, 1], [], []>} : vector<256x8xbf16>, vector<8x4xbf16>, vector<256x4xf32> -> vector<256x4xf32>
    %c0_53 = arith.constant 0 : index
    %c0_54 = arith.constant 0 : index
    %83 = vector.load %arg5[%c0_53, %c0_54] : memref<2x4xf32, #tpu.memory_space<vmem>>, vector<1x4xf32>
    %84 = vector.shape_cast %83 : vector<1x4xf32> to vector<4xf32>
    %85 = vector.shape_cast %84 : vector<4xf32> to vector<1x4xf32>
    %86 = vector.broadcast %85 : vector<1x4xf32> to vector<256x4xf32>
    %87 = arith.mulf %82, %86 : vector<256x4xf32>
    %c1_55 = arith.constant 1 : index
    %c0_56 = arith.constant 0 : index
    %88 = vector.load %arg5[%c1_55, %c0_56] : memref<2x4xf32, #tpu.memory_space<vmem>>, vector<1x4xf32>
    %89 = vector.shape_cast %88 : vector<1x4xf32> to vector<4xf32>
    %90 = vector.shape_cast %89 : vector<4xf32> to vector<1x4xf32>
    %91 = vector.broadcast %90 : vector<1x4xf32> to vector<256x4xf32>
    %92 = arith.addf %87, %91 : vector<256x4xf32>
    %cst_57 = arith.constant 0.000000e+00 : f32
    %93 = vector.broadcast %cst_57 : f32 to vector<256x4xf32>
    %94 = arith.maximumf %92, %93 : vector<256x4xf32>
    %cst_58 = arith.constant 0.000000e+00 : f32
    %95 = vector.broadcast %cst_58 : f32 to vector<18x25x4xf32>
    %c0_59 = arith.constant 0 : index
    %c0_60 = arith.constant 0 : index
    %c0_61 = arith.constant 0 : index
    %96 = vector.load %arg18[%c0_59, %c0_60, %c0_61] : memref<18x25x4xf32, #tpu.memory_space<vmem>>, vector<18x25x4xf32>
    tpu.vector_store %arg18[%c0_59, %c0_60, %c0_61], %95 {strides = array<i32>} : memref<18x25x4xf32, #tpu.memory_space<vmem>>, vector<18x25x4xf32>,
    %97 = vector.shape_cast %94 : vector<256x4xf32> to vector<16x16x4xf32>
    %c1_62 = arith.constant 1 : index
    %c8_63 = arith.constant 8 : index
    %c0_64 = arith.constant 0 : index
    %98 = vector.load %arg18[%c1_62, %c8_63, %c0_64] : memref<18x25x4xf32, #tpu.memory_space<vmem>>, vector<16x16x4xf32>
    tpu.vector_store %arg18[%c1_62, %c8_63, %c0_64], %97 {strides = array<i32>} : memref<18x25x4xf32, #tpu.memory_space<vmem>>, vector<16x16x4xf32>,
    %c0_65 = arith.constant 0 : index
    %c7_66 = arith.constant 7 : index
    %c0_67 = arith.constant 0 : index
    %99 = vector.load %arg18[%c0_65, %c7_66, %c0_67] : memref<18x25x4xf32, #tpu.memory_space<vmem>>, vector<16x16x4xf32>
    %c0_68 = arith.constant 0 : index
    %c0_69 = arith.constant 0 : index
    %100 = vector.load %arg6[%c0_68, %c0_69] : memref<9x4xf32, #tpu.memory_space<vmem>>, vector<1x4xf32>
    %101 = vector.shape_cast %100 : vector<1x4xf32> to vector<4xf32>
    %102 = vector.shape_cast %101 : vector<4xf32> to vector<1x1x4xf32>
    %103 = vector.broadcast %102 : vector<1x1x4xf32> to vector<16x16x4xf32>
    %104 = arith.mulf %99, %103 : vector<16x16x4xf32>
    %c0_70 = arith.constant 0 : index
    %c8_71 = arith.constant 8 : index
    %c0_72 = arith.constant 0 : index
    %105 = vector.load %arg18[%c0_70, %c8_71, %c0_72] : memref<18x25x4xf32, #tpu.memory_space<vmem>>, vector<16x16x4xf32>
    %c1_73 = arith.constant 1 : index
    %c0_74 = arith.constant 0 : index
    %106 = vector.load %arg6[%c1_73, %c0_74] : memref<9x4xf32, #tpu.memory_space<vmem>>, vector<1x4xf32>
    %107 = vector.shape_cast %106 : vector<1x4xf32> to vector<4xf32>
    %108 = vector.shape_cast %107 : vector<4xf32> to vector<1x1x4xf32>
    %109 = vector.broadcast %108 : vector<1x1x4xf32> to vector<16x16x4xf32>
    %110 = arith.mulf %105, %109 : vector<16x16x4xf32>
    %111 = arith.addf %104, %110 : vector<16x16x4xf32>
    %c0_75 = arith.constant 0 : index
    %c9_76 = arith.constant 9 : index
    %c0_77 = arith.constant 0 : index
    %112 = vector.load %arg18[%c0_75, %c9_76, %c0_77] : memref<18x25x4xf32, #tpu.memory_space<vmem>>, vector<16x16x4xf32>
    %c2_78 = arith.constant 2 : index
    %c0_79 = arith.constant 0 : index
    %113 = vector.load %arg6[%c2_78, %c0_79] : memref<9x4xf32, #tpu.memory_space<vmem>>, vector<1x4xf32>
    %114 = vector.shape_cast %113 : vector<1x4xf32> to vector<4xf32>
    %115 = vector.shape_cast %114 : vector<4xf32> to vector<1x1x4xf32>
    %116 = vector.broadcast %115 : vector<1x1x4xf32> to vector<16x16x4xf32>
    %117 = arith.mulf %112, %116 : vector<16x16x4xf32>
    %118 = arith.addf %111, %117 : vector<16x16x4xf32>
    %c1_80 = arith.constant 1 : index
    %c7_81 = arith.constant 7 : index
    %c0_82 = arith.constant 0 : index
    %119 = vector.load %arg18[%c1_80, %c7_81, %c0_82] : memref<18x25x4xf32, #tpu.memory_space<vmem>>, vector<16x16x4xf32>
    %c3_83 = arith.constant 3 : index
    %c0_84 = arith.constant 0 : index
    %120 = vector.load %arg6[%c3_83, %c0_84] : memref<9x4xf32, #tpu.memory_space<vmem>>, vector<1x4xf32>
    %121 = vector.shape_cast %120 : vector<1x4xf32> to vector<4xf32>
    %122 = vector.shape_cast %121 : vector<4xf32> to vector<1x1x4xf32>
    %123 = vector.broadcast %122 : vector<1x1x4xf32> to vector<16x16x4xf32>
    %124 = arith.mulf %119, %123 : vector<16x16x4xf32>
    %125 = arith.addf %118, %124 : vector<16x16x4xf32>
    %c1_85 = arith.constant 1 : index
    %c8_86 = arith.constant 8 : index
    %c0_87 = arith.constant 0 : index
    %126 = vector.load %arg18[%c1_85, %c8_86, %c0_87] : memref<18x25x4xf32, #tpu.memory_space<vmem>>, vector<16x16x4xf32>
    %c4_88 = arith.constant 4 : index
    %c0_89 = arith.constant 0 : index
    %127 = vector.load %arg6[%c4_88, %c0_89] : memref<9x4xf32, #tpu.memory_space<vmem>>, vector<1x4xf32>
    %128 = vector.shape_cast %127 : vector<1x4xf32> to vector<4xf32>
    %129 = vector.shape_cast %128 : vector<4xf32> to vector<1x1x4xf32>
    %130 = vector.broadcast %129 : vector<1x1x4xf32> to vector<16x16x4xf32>
    %131 = arith.mulf %126, %130 : vector<16x16x4xf32>
    %132 = arith.addf %125, %131 : vector<16x16x4xf32>
    %c1_90 = arith.constant 1 : index
    %c9_91 = arith.constant 9 : index
    %c0_92 = arith.constant 0 : index
    %133 = vector.load %arg18[%c1_90, %c9_91, %c0_92] : memref<18x25x4xf32, #tpu.memory_space<vmem>>, vector<16x16x4xf32>
    %c5_93 = arith.constant 5 : index
    %c0_94 = arith.constant 0 : index
    %134 = vector.load %arg6[%c5_93, %c0_94] : memref<9x4xf32, #tpu.memory_space<vmem>>, vector<1x4xf32>
    %135 = vector.shape_cast %134 : vector<1x4xf32> to vector<4xf32>
    %136 = vector.shape_cast %135 : vector<4xf32> to vector<1x1x4xf32>
    %137 = vector.broadcast %136 : vector<1x1x4xf32> to vector<16x16x4xf32>
    %138 = arith.mulf %133, %137 : vector<16x16x4xf32>
    %139 = arith.addf %132, %138 : vector<16x16x4xf32>
    %c2_95 = arith.constant 2 : index
    %c7_96 = arith.constant 7 : index
    %c0_97 = arith.constant 0 : index
    %140 = vector.load %arg18[%c2_95, %c7_96, %c0_97] : memref<18x25x4xf32, #tpu.memory_space<vmem>>, vector<16x16x4xf32>
    %c6_98 = arith.constant 6 : index
    %c0_99 = arith.constant 0 : index
    %141 = vector.load %arg6[%c6_98, %c0_99] : memref<9x4xf32, #tpu.memory_space<vmem>>, vector<1x4xf32>
    %142 = vector.shape_cast %141 : vector<1x4xf32> to vector<4xf32>
    %143 = vector.shape_cast %142 : vector<4xf32> to vector<1x1x4xf32>
    %144 = vector.broadcast %143 : vector<1x1x4xf32> to vector<16x16x4xf32>
    %145 = arith.mulf %140, %144 : vector<16x16x4xf32>
    %146 = arith.addf %139, %145 : vector<16x16x4xf32>
    %c2_100 = arith.constant 2 : index
    %c8_101 = arith.constant 8 : index
    %c0_102 = arith.constant 0 : index
    %147 = vector.load %arg18[%c2_100, %c8_101, %c0_102] : memref<18x25x4xf32, #tpu.memory_space<vmem>>, vector<16x16x4xf32>
    %c7_103 = arith.constant 7 : index
    %c0_104 = arith.constant 0 : index
    %148 = vector.load %arg6[%c7_103, %c0_104] : memref<9x4xf32, #tpu.memory_space<vmem>>, vector<1x4xf32>
    %149 = vector.shape_cast %148 : vector<1x4xf32> to vector<4xf32>
    %150 = vector.shape_cast %149 : vector<4xf32> to vector<1x1x4xf32>
    %151 = vector.broadcast %150 : vector<1x1x4xf32> to vector<16x16x4xf32>
    %152 = arith.mulf %147, %151 : vector<16x16x4xf32>
    %153 = arith.addf %146, %152 : vector<16x16x4xf32>
    %c2_105 = arith.constant 2 : index
    %c9_106 = arith.constant 9 : index
    %c0_107 = arith.constant 0 : index
    %154 = vector.load %arg18[%c2_105, %c9_106, %c0_107] : memref<18x25x4xf32, #tpu.memory_space<vmem>>, vector<16x16x4xf32>
    %c8_108 = arith.constant 8 : index
    %c0_109 = arith.constant 0 : index
    %155 = vector.load %arg6[%c8_108, %c0_109] : memref<9x4xf32, #tpu.memory_space<vmem>>, vector<1x4xf32>
    %156 = vector.shape_cast %155 : vector<1x4xf32> to vector<4xf32>
    %157 = vector.shape_cast %156 : vector<4xf32> to vector<1x1x4xf32>
    %158 = vector.broadcast %157 : vector<1x1x4xf32> to vector<16x16x4xf32>
    %159 = arith.mulf %154, %158 : vector<16x16x4xf32>
    %160 = arith.addf %153, %159 : vector<16x16x4xf32>
    %c0_110 = arith.constant 0 : index
    %c0_111 = arith.constant 0 : index
    %161 = vector.load %arg7[%c0_110, %c0_111] : memref<2x4xf32, #tpu.memory_space<vmem>>, vector<1x4xf32>
    %162 = vector.shape_cast %161 : vector<1x4xf32> to vector<4xf32>
    %163 = vector.shape_cast %162 : vector<4xf32> to vector<1x1x4xf32>
    %164 = vector.broadcast %163 : vector<1x1x4xf32> to vector<16x16x4xf32>
    %165 = arith.mulf %160, %164 : vector<16x16x4xf32>
    %c1_112 = arith.constant 1 : index
    %c0_113 = arith.constant 0 : index
    %166 = vector.load %arg7[%c1_112, %c0_113] : memref<2x4xf32, #tpu.memory_space<vmem>>, vector<1x4xf32>
    %167 = vector.shape_cast %166 : vector<1x4xf32> to vector<4xf32>
    %168 = vector.shape_cast %167 : vector<4xf32> to vector<1x1x4xf32>
    %169 = vector.broadcast %168 : vector<1x1x4xf32> to vector<16x16x4xf32>
    %170 = arith.addf %165, %169 : vector<16x16x4xf32>
    %171 = vector.shape_cast %170 : vector<16x16x4xf32> to vector<256x4xf32>
    %172 = arith.truncf %171 : vector<256x4xf32> to vector<256x4xbf16>
    %c0_114 = arith.constant 0 : index
    %c0_115 = arith.constant 0 : index
    %173 = vector.load %arg8[%c0_114, %c0_115] : memref<4x4xbf16, #tpu.memory_space<vmem>>, vector<4x4xbf16>
    %cst_116 = arith.constant dense<0.000000e+00> : vector<256x4xf32>
    %174 = tpu.matmul %172, %173, %cst_116 {dimension_numbers = #tpu.dot_dimension_numbers<[1], [0], [0], [1], [0, 0, 1, 1], [], []>} : vector<256x4xbf16>, vector<4x4xbf16>, vector<256x4xf32> -> vector<256x4xf32>
    %c0_117 = arith.constant 0 : index
    %c0_118 = arith.constant 0 : index
    %175 = vector.load %arg9[%c0_117, %c0_118] : memref<2x4xf32, #tpu.memory_space<vmem>>, vector<1x4xf32>
    %176 = vector.shape_cast %175 : vector<1x4xf32> to vector<4xf32>
    %177 = vector.shape_cast %176 : vector<4xf32> to vector<1x4xf32>
    %178 = vector.broadcast %177 : vector<1x4xf32> to vector<256x4xf32>
    %179 = arith.mulf %174, %178 : vector<256x4xf32>
    %c1_119 = arith.constant 1 : index
    %c0_120 = arith.constant 0 : index
    %180 = vector.load %arg9[%c1_119, %c0_120] : memref<2x4xf32, #tpu.memory_space<vmem>>, vector<1x4xf32>
    %181 = vector.shape_cast %180 : vector<1x4xf32> to vector<4xf32>
    %182 = vector.shape_cast %181 : vector<4xf32> to vector<1x4xf32>
    %183 = vector.broadcast %182 : vector<1x4xf32> to vector<256x4xf32>
    %184 = arith.addf %179, %183 : vector<256x4xf32>
    %cst_121 = arith.constant 0.000000e+00 : f32
    %185 = vector.broadcast %cst_121 : f32 to vector<256x4xf32>
    %186 = arith.maximumf %184, %185 : vector<256x4xf32>
    %cst_122 = arith.constant 0.000000e+00 : f32
    %187 = vector.broadcast %cst_122 : f32 to vector<18x25x4xf32>
    %c0_123 = arith.constant 0 : index
    %c0_124 = arith.constant 0 : index
    %c0_125 = arith.constant 0 : index
    %188 = vector.load %arg19[%c0_123, %c0_124, %c0_125] : memref<18x25x4xf32, #tpu.memory_space<vmem>>, vector<18x25x4xf32>
    tpu.vector_store %arg19[%c0_123, %c0_124, %c0_125], %187 {strides = array<i32>} : memref<18x25x4xf32, #tpu.memory_space<vmem>>, vector<18x25x4xf32>,
    %189 = vector.shape_cast %186 : vector<256x4xf32> to vector<16x16x4xf32>
    %c1_126 = arith.constant 1 : index
    %c8_127 = arith.constant 8 : index
    %c0_128 = arith.constant 0 : index
    %190 = vector.load %arg19[%c1_126, %c8_127, %c0_128] : memref<18x25x4xf32, #tpu.memory_space<vmem>>, vector<16x16x4xf32>
    tpu.vector_store %arg19[%c1_126, %c8_127, %c0_128], %189 {strides = array<i32>} : memref<18x25x4xf32, #tpu.memory_space<vmem>>, vector<16x16x4xf32>,
    %c0_129 = arith.constant 0 : index
    %c7_130 = arith.constant 7 : index
    %c0_131 = arith.constant 0 : index
    %191 = vector.load %arg19[%c0_129, %c7_130, %c0_131] : memref<18x25x4xf32, #tpu.memory_space<vmem>>, vector<16x16x4xf32>
    %c0_132 = arith.constant 0 : index
    %c0_133 = arith.constant 0 : index
    %192 = vector.load %arg10[%c0_132, %c0_133] : memref<9x4xf32, #tpu.memory_space<vmem>>, vector<1x4xf32>
    %193 = vector.shape_cast %192 : vector<1x4xf32> to vector<4xf32>
    %194 = vector.shape_cast %193 : vector<4xf32> to vector<1x1x4xf32>
    %195 = vector.broadcast %194 : vector<1x1x4xf32> to vector<16x16x4xf32>
    %196 = arith.mulf %191, %195 : vector<16x16x4xf32>
    %c0_134 = arith.constant 0 : index
    %c8_135 = arith.constant 8 : index
    %c0_136 = arith.constant 0 : index
    %197 = vector.load %arg19[%c0_134, %c8_135, %c0_136] : memref<18x25x4xf32, #tpu.memory_space<vmem>>, vector<16x16x4xf32>
    %c1_137 = arith.constant 1 : index
    %c0_138 = arith.constant 0 : index
    %198 = vector.load %arg10[%c1_137, %c0_138] : memref<9x4xf32, #tpu.memory_space<vmem>>, vector<1x4xf32>
    %199 = vector.shape_cast %198 : vector<1x4xf32> to vector<4xf32>
    %200 = vector.shape_cast %199 : vector<4xf32> to vector<1x1x4xf32>
    %201 = vector.broadcast %200 : vector<1x1x4xf32> to vector<16x16x4xf32>
    %202 = arith.mulf %197, %201 : vector<16x16x4xf32>
    %203 = arith.addf %196, %202 : vector<16x16x4xf32>
    %c0_139 = arith.constant 0 : index
    %c9_140 = arith.constant 9 : index
    %c0_141 = arith.constant 0 : index
    %204 = vector.load %arg19[%c0_139, %c9_140, %c0_141] : memref<18x25x4xf32, #tpu.memory_space<vmem>>, vector<16x16x4xf32>
    %c2_142 = arith.constant 2 : index
    %c0_143 = arith.constant 0 : index
    %205 = vector.load %arg10[%c2_142, %c0_143] : memref<9x4xf32, #tpu.memory_space<vmem>>, vector<1x4xf32>
    %206 = vector.shape_cast %205 : vector<1x4xf32> to vector<4xf32>
    %207 = vector.shape_cast %206 : vector<4xf32> to vector<1x1x4xf32>
    %208 = vector.broadcast %207 : vector<1x1x4xf32> to vector<16x16x4xf32>
    %209 = arith.mulf %204, %208 : vector<16x16x4xf32>
    %210 = arith.addf %203, %209 : vector<16x16x4xf32>
    %c1_144 = arith.constant 1 : index
    %c7_145 = arith.constant 7 : index
    %c0_146 = arith.constant 0 : index
    %211 = vector.load %arg19[%c1_144, %c7_145, %c0_146] : memref<18x25x4xf32, #tpu.memory_space<vmem>>, vector<16x16x4xf32>
    %c3_147 = arith.constant 3 : index
    %c0_148 = arith.constant 0 : index
    %212 = vector.load %arg10[%c3_147, %c0_148] : memref<9x4xf32, #tpu.memory_space<vmem>>, vector<1x4xf32>
    %213 = vector.shape_cast %212 : vector<1x4xf32> to vector<4xf32>
    %214 = vector.shape_cast %213 : vector<4xf32> to vector<1x1x4xf32>
    %215 = vector.broadcast %214 : vector<1x1x4xf32> to vector<16x16x4xf32>
    %216 = arith.mulf %211, %215 : vector<16x16x4xf32>
    %217 = arith.addf %210, %216 : vector<16x16x4xf32>
    %c1_149 = arith.constant 1 : index
    %c8_150 = arith.constant 8 : index
    %c0_151 = arith.constant 0 : index
    %218 = vector.load %arg19[%c1_149, %c8_150, %c0_151] : memref<18x25x4xf32, #tpu.memory_space<vmem>>, vector<16x16x4xf32>
    %c4_152 = arith.constant 4 : index
    %c0_153 = arith.constant 0 : index
    %219 = vector.load %arg10[%c4_152, %c0_153] : memref<9x4xf32, #tpu.memory_space<vmem>>, vector<1x4xf32>
    %220 = vector.shape_cast %219 : vector<1x4xf32> to vector<4xf32>
    %221 = vector.shape_cast %220 : vector<4xf32> to vector<1x1x4xf32>
    %222 = vector.broadcast %221 : vector<1x1x4xf32> to vector<16x16x4xf32>
    %223 = arith.mulf %218, %222 : vector<16x16x4xf32>
    %224 = arith.addf %217, %223 : vector<16x16x4xf32>
    %c1_154 = arith.constant 1 : index
    %c9_155 = arith.constant 9 : index
    %c0_156 = arith.constant 0 : index
    %225 = vector.load %arg19[%c1_154, %c9_155, %c0_156] : memref<18x25x4xf32, #tpu.memory_space<vmem>>, vector<16x16x4xf32>
    %c5_157 = arith.constant 5 : index
    %c0_158 = arith.constant 0 : index
    %226 = vector.load %arg10[%c5_157, %c0_158] : memref<9x4xf32, #tpu.memory_space<vmem>>, vector<1x4xf32>
    %227 = vector.shape_cast %226 : vector<1x4xf32> to vector<4xf32>
    %228 = vector.shape_cast %227 : vector<4xf32> to vector<1x1x4xf32>
    %229 = vector.broadcast %228 : vector<1x1x4xf32> to vector<16x16x4xf32>
    %230 = arith.mulf %225, %229 : vector<16x16x4xf32>
    %231 = arith.addf %224, %230 : vector<16x16x4xf32>
    %c2_159 = arith.constant 2 : index
    %c7_160 = arith.constant 7 : index
    %c0_161 = arith.constant 0 : index
    %232 = vector.load %arg19[%c2_159, %c7_160, %c0_161] : memref<18x25x4xf32, #tpu.memory_space<vmem>>, vector<16x16x4xf32>
    %c6_162 = arith.constant 6 : index
    %c0_163 = arith.constant 0 : index
    %233 = vector.load %arg10[%c6_162, %c0_163] : memref<9x4xf32, #tpu.memory_space<vmem>>, vector<1x4xf32>
    %234 = vector.shape_cast %233 : vector<1x4xf32> to vector<4xf32>
    %235 = vector.shape_cast %234 : vector<4xf32> to vector<1x1x4xf32>
    %236 = vector.broadcast %235 : vector<1x1x4xf32> to vector<16x16x4xf32>
    %237 = arith.mulf %232, %236 : vector<16x16x4xf32>
    %238 = arith.addf %231, %237 : vector<16x16x4xf32>
    %c2_164 = arith.constant 2 : index
    %c8_165 = arith.constant 8 : index
    %c0_166 = arith.constant 0 : index
    %239 = vector.load %arg19[%c2_164, %c8_165, %c0_166] : memref<18x25x4xf32, #tpu.memory_space<vmem>>, vector<16x16x4xf32>
    %c7_167 = arith.constant 7 : index
    %c0_168 = arith.constant 0 : index
    %240 = vector.load %arg10[%c7_167, %c0_168] : memref<9x4xf32, #tpu.memory_space<vmem>>, vector<1x4xf32>
    %241 = vector.shape_cast %240 : vector<1x4xf32> to vector<4xf32>
    %242 = vector.shape_cast %241 : vector<4xf32> to vector<1x1x4xf32>
    %243 = vector.broadcast %242 : vector<1x1x4xf32> to vector<16x16x4xf32>
    %244 = arith.mulf %239, %243 : vector<16x16x4xf32>
    %245 = arith.addf %238, %244 : vector<16x16x4xf32>
    %c2_169 = arith.constant 2 : index
    %c9_170 = arith.constant 9 : index
    %c0_171 = arith.constant 0 : index
    %246 = vector.load %arg19[%c2_169, %c9_170, %c0_171] : memref<18x25x4xf32, #tpu.memory_space<vmem>>, vector<16x16x4xf32>
    %c8_172 = arith.constant 8 : index
    %c0_173 = arith.constant 0 : index
    %247 = vector.load %arg10[%c8_172, %c0_173] : memref<9x4xf32, #tpu.memory_space<vmem>>, vector<1x4xf32>
    %248 = vector.shape_cast %247 : vector<1x4xf32> to vector<4xf32>
    %249 = vector.shape_cast %248 : vector<4xf32> to vector<1x1x4xf32>
    %250 = vector.broadcast %249 : vector<1x1x4xf32> to vector<16x16x4xf32>
    %251 = arith.mulf %246, %250 : vector<16x16x4xf32>
    %252 = arith.addf %245, %251 : vector<16x16x4xf32>
    %c0_174 = arith.constant 0 : index
    %c0_175 = arith.constant 0 : index
    %253 = vector.load %arg11[%c0_174, %c0_175] : memref<2x4xf32, #tpu.memory_space<vmem>>, vector<1x4xf32>
    %254 = vector.shape_cast %253 : vector<1x4xf32> to vector<4xf32>
    %255 = vector.shape_cast %254 : vector<4xf32> to vector<1x1x4xf32>
    %256 = vector.broadcast %255 : vector<1x1x4xf32> to vector<16x16x4xf32>
    %257 = arith.mulf %252, %256 : vector<16x16x4xf32>
    %c1_176 = arith.constant 1 : index
    %c0_177 = arith.constant 0 : index
    %258 = vector.load %arg11[%c1_176, %c0_177] : memref<2x4xf32, #tpu.memory_space<vmem>>, vector<1x4xf32>
    %259 = vector.shape_cast %258 : vector<1x4xf32> to vector<4xf32>
    %260 = vector.shape_cast %259 : vector<4xf32> to vector<1x1x4xf32>
    %261 = vector.broadcast %260 : vector<1x1x4xf32> to vector<16x16x4xf32>
    %262 = arith.addf %257, %261 : vector<16x16x4xf32>
    %263 = vector.shape_cast %262 : vector<16x16x4xf32> to vector<256x4xf32>
    %264 = arith.truncf %263 : vector<256x4xf32> to vector<256x4xbf16>
    %c0_178 = arith.constant 0 : index
    %c0_179 = arith.constant 0 : index
    %265 = vector.load %arg12[%c0_178, %c0_179] : memref<4x128xbf16, #tpu.memory_space<vmem>>, vector<4x128xbf16>
    %cst_180 = arith.constant dense<0.000000e+00> : vector<256x128xf32>
    %266 = tpu.matmul %264, %265, %cst_180 {dimension_numbers = #tpu.dot_dimension_numbers<[1], [0], [0], [1], [0, 0, 1, 1], [], []>} : vector<256x4xbf16>, vector<4x128xbf16>, vector<256x128xf32> -> vector<256x128xf32>
    %c0_181 = arith.constant 0 : index
    %c0_182 = arith.constant 0 : index
    %267 = vector.load %arg13[%c0_181, %c0_182] : memref<2x128xf32, #tpu.memory_space<vmem>>, vector<1x128xf32>
    %268 = vector.shape_cast %267 : vector<1x128xf32> to vector<128xf32>
    %269 = vector.shape_cast %268 : vector<128xf32> to vector<1x128xf32>
    %270 = vector.broadcast %269 : vector<1x128xf32> to vector<256x128xf32>
    %271 = arith.mulf %266, %270 : vector<256x128xf32>
    %c1_183 = arith.constant 1 : index
    %c0_184 = arith.constant 0 : index
    %272 = vector.load %arg13[%c1_183, %c0_184] : memref<2x128xf32, #tpu.memory_space<vmem>>, vector<1x128xf32>
    %273 = vector.shape_cast %272 : vector<1x128xf32> to vector<128xf32>
    %274 = vector.shape_cast %273 : vector<128xf32> to vector<1x128xf32>
    %275 = vector.broadcast %274 : vector<1x128xf32> to vector<256x128xf32>
    %276 = arith.addf %271, %275 : vector<256x128xf32>
    %277 = vector.shape_cast %1 : vector<16x16x8xf32> to vector<256x8xf32>
    %278 = arith.truncf %277 : vector<256x8xf32> to vector<256x8xbf16>
    %c0_185 = arith.constant 0 : index
    %c0_186 = arith.constant 0 : index
    %279 = vector.load %arg14[%c0_185, %c0_186] : memref<8x128xbf16, #tpu.memory_space<vmem>>, vector<8x128xbf16>
    %cst_187 = arith.constant dense<0.000000e+00> : vector<256x128xf32>
    %280 = tpu.matmul %278, %279, %cst_187 {dimension_numbers = #tpu.dot_dimension_numbers<[1], [0], [0], [1], [0, 0, 1, 1], [], []>} : vector<256x8xbf16>, vector<8x128xbf16>, vector<256x128xf32> -> vector<256x128xf32>
    %c0_188 = arith.constant 0 : index
    %c0_189 = arith.constant 0 : index
    %281 = vector.load %arg15[%c0_188, %c0_189] : memref<2x128xf32, #tpu.memory_space<vmem>>, vector<1x128xf32>
    %282 = vector.shape_cast %281 : vector<1x128xf32> to vector<128xf32>
    %283 = vector.shape_cast %282 : vector<128xf32> to vector<1x128xf32>
    %284 = vector.broadcast %283 : vector<1x128xf32> to vector<256x128xf32>
    %285 = arith.mulf %280, %284 : vector<256x128xf32>
    %c1_190 = arith.constant 1 : index
    %c0_191 = arith.constant 0 : index
    %286 = vector.load %arg15[%c1_190, %c0_191] : memref<2x128xf32, #tpu.memory_space<vmem>>, vector<1x128xf32>
    %287 = vector.shape_cast %286 : vector<1x128xf32> to vector<128xf32>
    %288 = vector.shape_cast %287 : vector<128xf32> to vector<1x128xf32>
    %289 = vector.broadcast %288 : vector<1x128xf32> to vector<256x128xf32>
    %290 = arith.addf %285, %289 : vector<256x128xf32>
    %291 = arith.addf %276, %290 : vector<256x128xf32>
    %292 = vector.shape_cast %291 : vector<256x128xf32> to vector<1x16x16x128xf32>
    %c0_192 = arith.constant 0 : index
    %c0_193 = arith.constant 0 : index
    %c0_194 = arith.constant 0 : index
    %c0_195 = arith.constant 0 : index
    %293 = vector.load %arg16[%c0_192, %c0_193, %c0_194, %c0_195] : memref<1x16x16x128xf32, #tpu.memory_space<vmem>>, vector<1x16x16x128xf32>
    tpu.vector_store %arg16[%c0_192, %c0_193, %c0_194, %c0_195], %292 {strides = array<i32>} : memref<1x16x16x128xf32, #tpu.memory_space<vmem>>, vector<1x16x16x128xf32>,
    return
  }
  func.func @transform_0(%arg0: i32) -> (i32, i32, i32, i32) {
    %c0_i32 = arith.constant 0 : i32
    %c0_i32_0 = arith.constant 0 : i32
    %c0_i32_1 = arith.constant 0 : i32
    %c0_i32_2 = arith.constant 0 : i32
    return %arg0, %c0_i32, %c0_i32_0, %c0_i32_1 : i32, i32, i32, i32
  }
  func.func @transform_1(%arg0: i32) -> (i32, i32) {
    %c0_i32 = arith.constant 0 : i32
    %c0_i32_0 = arith.constant 0 : i32
    %c0_i32_1 = arith.constant 0 : i32
    return %c0_i32, %c0_i32_0 : i32, i32
  }
  func.func @transform_2(%arg0: i32) -> (i32, i32) {
    %c0_i32 = arith.constant 0 : i32
    %c0_i32_0 = arith.constant 0 : i32
    %c0_i32_1 = arith.constant 0 : i32
    return %c0_i32, %c0_i32_0 : i32, i32
  }
  func.func @transform_3(%arg0: i32) -> (i32, i32) {
    %c0_i32 = arith.constant 0 : i32
    %c0_i32_0 = arith.constant 0 : i32
    %c0_i32_1 = arith.constant 0 : i32
    return %c0_i32, %c0_i32_0 : i32, i32
  }
  func.func @transform_4(%arg0: i32) -> (i32, i32) {
    %c0_i32 = arith.constant 0 : i32
    %c0_i32_0 = arith.constant 0 : i32
    %c0_i32_1 = arith.constant 0 : i32
    return %c0_i32, %c0_i32_0 : i32, i32
  }
  func.func @transform_5(%arg0: i32) -> (i32, i32) {
    %c0_i32 = arith.constant 0 : i32
    %c0_i32_0 = arith.constant 0 : i32
    %c0_i32_1 = arith.constant 0 : i32
    return %c0_i32, %c0_i32_0 : i32, i32
  }
  func.func @transform_6(%arg0: i32) -> (i32, i32) {
    %c0_i32 = arith.constant 0 : i32
    %c0_i32_0 = arith.constant 0 : i32
    %c0_i32_1 = arith.constant 0 : i32
    return %c0_i32, %c0_i32_0 : i32, i32
  }
  func.func @transform_7(%arg0: i32) -> (i32, i32) {
    %c0_i32 = arith.constant 0 : i32
    %c0_i32_0 = arith.constant 0 : i32
    %c0_i32_1 = arith.constant 0 : i32
    return %c0_i32, %c0_i32_0 : i32, i32
  }
  func.func @transform_8(%arg0: i32) -> (i32, i32) {
    %c0_i32 = arith.constant 0 : i32
    %c0_i32_0 = arith.constant 0 : i32
    %c0_i32_1 = arith.constant 0 : i32
    return %c0_i32, %c0_i32_0 : i32, i32
  }
  func.func @transform_9(%arg0: i32) -> (i32, i32) {
    %c0_i32 = arith.constant 0 : i32
    %c0_i32_0 = arith.constant 0 : i32
    %c0_i32_1 = arith.constant 0 : i32
    return %c0_i32, %c0_i32_0 : i32, i32
  }
  func.func @transform_10(%arg0: i32) -> (i32, i32) {
    %c0_i32 = arith.constant 0 : i32
    %c0_i32_0 = arith.constant 0 : i32
    %c0_i32_1 = arith.constant 0 : i32
    return %c0_i32, %c0_i32_0 : i32, i32
  }
  func.func @transform_11(%arg0: i32) -> (i32, i32) {
    %c0_i32 = arith.constant 0 : i32
    %c0_i32_0 = arith.constant 0 : i32
    %c0_i32_1 = arith.constant 0 : i32
    return %c0_i32, %c0_i32_0 : i32, i32
  }
  func.func @transform_12(%arg0: i32) -> (i32, i32) {
    %c0_i32 = arith.constant 0 : i32
    %c0_i32_0 = arith.constant 0 : i32
    %c0_i32_1 = arith.constant 0 : i32
    return %c0_i32, %c0_i32_0 : i32, i32
  }
  func.func @transform_13(%arg0: i32) -> (i32, i32) {
    %c0_i32 = arith.constant 0 : i32
    %c0_i32_0 = arith.constant 0 : i32
    %c0_i32_1 = arith.constant 0 : i32
    return %c0_i32, %c0_i32_0 : i32, i32
  }
  func.func @transform_14(%arg0: i32) -> (i32, i32) {
    %c0_i32 = arith.constant 0 : i32
    %c0_i32_0 = arith.constant 0 : i32
    %c0_i32_1 = arith.constant 0 : i32
    return %c0_i32, %c0_i32_0 : i32, i32
  }
  func.func @transform_15(%arg0: i32) -> (i32, i32, i32, i32) {
    %c0_i32 = arith.constant 0 : i32
    %c0_i32_0 = arith.constant 0 : i32
    %c0_i32_1 = arith.constant 0 : i32
    %c0_i32_2 = arith.constant 0 : i32
    return %arg0, %c0_i32, %c0_i32_0, %c0_i32_1 : i32, i32, i32, i32
  }
}

</mosaic_0001>

<llo_original>
// kernel: block_forward.1
$region0: #{block_forward.1}
  #allocation0 [shape = 'u32[]', space=smem, size = 0x4, offset = 0x4, fixed_abs, tag = 'smem constant byte address 0x4 - core index']
  #allocation1 [shape = 'u32[144,128]{1,0:T(1,128)}', space=vmem, size = 0x12000, scoped, tag = 'internal scratch']
  #allocation2 [shape = 'f32[18,25,8]{2,1,0:T(8,128)}', space=vmem, size = 0x48000, scoped, tag = 'scratch operand']
  #allocation3 [shape = 'f32[18,25,4]{2,1,0:T(8,128)}', space=vmem, size = 0x48000, scoped, tag = 'scratch operand']
  #allocation4 [shape = 'f32[18,25,4]{2,1,0:T(8,128)}', space=vmem, size = 0x48000, scoped, tag = 'scratch operand']
  %s0 = inlined_call_operand.vmem [shape: f32[2,16,16,8], index: 0, kind: input, shape index: {}]
  %s1 = inlined_call_operand.vmem [shape: f32[9,8], index: 1, kind: input, shape index: {}]
  %s2 = inlined_call_operand.vmem [shape: f32[2,8], index: 2, kind: input, shape index: {}]
  %s3 = inlined_call_operand.vmem [shape: bf16[8,4], index: 3, kind: input, shape index: {}]
  %s4 = inlined_call_operand.vmem [shape: f32[2,4], index: 4, kind: input, shape index: {}]
  %s5 = inlined_call_operand.vmem [shape: f32[9,4], index: 5, kind: input, shape index: {}]
  %s6 = inlined_call_operand.vmem [shape: f32[2,4], index: 6, kind: input, shape index: {}]
  %s7 = inlined_call_operand.vmem [shape: bf16[4,4], index: 7, kind: input, shape index: {}]
  %s8 = inlined_call_operand.vmem [shape: f32[2,4], index: 8, kind: input, shape index: {}]
  %s9 = inlined_call_operand.vmem [shape: f32[9,4], index: 9, kind: input, shape index: {}]
  %s10 = inlined_call_operand.vmem [shape: f32[2,4], index: 10, kind: input, shape index: {}]
  %s11 = inlined_call_operand.vmem [shape: bf16[4,128], index: 11, kind: input, shape index: {}]
  %s12 = inlined_call_operand.vmem [shape: f32[2,128], index: 12, kind: input, shape index: {}]
  %s13 = inlined_call_operand.vmem [shape: bf16[8,128], index: 13, kind: input, shape index: {}]
  %s14 = inlined_call_operand.vmem [shape: f32[2,128], index: 14, kind: input, shape index: {}]
  %s15 = inlined_call_operand.vmem [shape: f32[2,16,16,128], index: 15, kind: output, shape index: {}]
  %s16 = sld [smem:[#allocation0]]
  $region93: #{block_forward.1} parent=0
    _
  %s18 = ssub.s32 1, %s16
  %s19 = scalar_select 0, %s18, %s16
  loop: start=0, step=1, limit=4
  $region2: #{block_forward.1} parent=0 // loop_pre_header
    _
  $region3: #{block_forward.1} parent=0 // loop_header
    %s21 = sphi 0, %s25
    %p22 = scmp.ge.s32.totalorder %s21, 4
    %s31 = sphi 0, %s33
    %s34 = sphi 0, %s31
    %s35 = sphi 0, %s34
    %s51 = sphi 0, %s35
    %s55 = sphi 0, %s55
    %s57 = sphi 0, %s55
    %s58 = sphi 0, %s57
    %s72 = sphi 0, %s58
    %s76 = sphi 0, %s76
    %s78 = sphi 0, %s76
    %s79 = sphi 0, %s78
    %s93 = sphi 0, %s79
    %s97 = sphi 0, %s97
    %s99 = sphi 0, %s97
    %s100 = sphi 0, %s99
    %s114 = sphi 0, %s100
    %s118 = sphi 0, %s118
    %s120 = sphi 0, %s118
    %s121 = sphi 0, %s120
    %s135 = sphi 0, %s121
    %s139 = sphi 0, %s139
    %s141 = sphi 0, %s139
    %s142 = sphi 0, %s141
    %s156 = sphi 0, %s142
    %s160 = sphi 0, %s160
    %s162 = sphi 0, %s160
    %s163 = sphi 0, %s162
    %s177 = sphi 0, %s163
    %s181 = sphi 0, %s181
    %s183 = sphi 0, %s181
    %s184 = sphi 0, %s183
    %s198 = sphi 0, %s184
    %s202 = sphi 0, %s202
    %s204 = sphi 0, %s202
    %s205 = sphi 0, %s204
    %s219 = sphi 0, %s205
    %s223 = sphi 0, %s223
    %s225 = sphi 0, %s223
    %s226 = sphi 0, %s225
    %s240 = sphi 0, %s226
    %s244 = sphi 0, %s244
    %s246 = sphi 0, %s244
    %s247 = sphi 0, %s246
    %s261 = sphi 0, %s247
    %s265 = sphi 0, %s265
    %s267 = sphi 0, %s265
    %s268 = sphi 0, %s267
    %s282 = sphi 0, %s268
    %s286 = sphi 0, %s286
    %s288 = sphi 0, %s286
    %s289 = sphi 0, %s288
    %s303 = sphi 0, %s289
    %s307 = sphi 0, %s307
    %s309 = sphi 0, %s307
    %s310 = sphi 0, %s309
    %s324 = sphi 0, %s310
    %s328 = sphi 0, %s328
    %s330 = sphi 0, %s328
    %s331 = sphi 0, %s330
    %s345 = sphi 0, %s331
    %s351 = sphi 0, %s353
    %s354 = sphi 0, %s351
    %s355 = sphi 0, %s354
    %s371 = sphi 0, %s355
  $region4: #{block_forward.1} parent=0 // loop_header_branch
    %24 = sbr.rel (%p22) target = $region8
  $region5: #{block_forward.1} parent=0 // loop_body
    %s26 = ssub.s32 %s21, 1
    %s27 = ssub.s32 %s21, 2
    %s28 = sadd.s32 %s21, 1
    %s29 = ssub.s32 %s21, %s28
    %p30 = scmp.eq.s32.totalorder %s29, 0
    %s32 = sadd.s32 %s31, 1
    %s33 = scalar_select %p30, %s31, %s32
    %p36 = pneg %p30
    %p37 = scmp.eq.s32.totalorder %s21, 1
    %p38 = por %p36, %p37
    %p39 = scmp.ne.s32.totalorder %s31, %s34
    %p40 = scmp.eq.s32.totalorder %s21, 0
    %p41 = por %p39, %p40
    %p42 = scmp.ne.s32.totalorder %s31, %s34
    %p43 = scmp.eq.s32.totalorder %s26, 1
    %p44 = por %p42, %p43
    %p45 = scmp.ne.s32.totalorder %s34, %s35
    %p46 = scmp.eq.s32.totalorder %s26, 0
    %p47 = por %p45, %p46
    %p48 = scmp.ne.s32.totalorder %s34, %s35
    %p49 = scmp.eq.s32.totalorder %s27, 1
    %p50 = por %p48, %p49
    %p52 = scmp.ne.s32.totalorder %s35, %s51
    %p53 = scmp.eq.s32.totalorder %s27, 0
    %p54 = por %p52, %p53
    %s56 = sadd.s32 %s55, 1
    %p59 = scmp.eq.s32.totalorder %s21, 1
    %p60 = scmp.ne.s32.totalorder %s55, %s57
    %p61 = scmp.eq.s32.totalorder %s21, 0
    %p62 = por %p60, %p61
    %p63 = scmp.ne.s32.totalorder %s55, %s57
    %p64 = scmp.eq.s32.totalorder %s26, 1
    %p65 = por %p63, %p64
    %p66 = scmp.ne.s32.totalorder %s57, %s58
    %p67 = scmp.eq.s32.totalorder %s26, 0
    %p68 = por %p66, %p67
    %p69 = scmp.ne.s32.totalorder %s57, %s58
    %p70 = scmp.eq.s32.totalorder %s27, 1
    %p71 = por %p69, %p70
    %p73 = scmp.ne.s32.totalorder %s58, %s72
    %p74 = scmp.eq.s32.totalorder %s27, 0
    %p75 = por %p73, %p74
    %s77 = sadd.s32 %s76, 1
    %p80 = scmp.eq.s32.totalorder %s21, 1
    %p81 = scmp.ne.s32.totalorder %s76, %s78
    %p82 = scmp.eq.s32.totalorder %s21, 0
    %p83 = por %p81, %p82
    %p84 = scmp.ne.s32.totalorder %s76, %s78
    %p85 = scmp.eq.s32.totalorder %s26, 1
    %p86 = por %p84, %p85
    %p87 = scmp.ne.s32.totalorder %s78, %s79
    %p88 = scmp.eq.s32.totalorder %s26, 0
    %p89 = por %p87, %p88
    %p90 = scmp.ne.s32.totalorder %s78, %s79
    %p91 = scmp.eq.s32.totalorder %s27, 1
    %p92 = por %p90, %p91
    %p94 = scmp.ne.s32.totalorder %s79, %s93
    %p95 = scmp.eq.s32.totalorder %s27, 0
    %p96 = por %p94, %p95
    %s98 = sadd.s32 %s97, 1
    %p101 = scmp.eq.s32.totalorder %s21, 1
    %p102 = scmp.ne.s32.totalorder %s97, %s99
    %p103 = scmp.eq.s32.totalorder %s21, 0
    %p104 = por %p102, %p103
    %p105 = scmp.ne.s32.totalorder %s97, %s99
    %p106 = scmp.eq.s32.totalorder %s26, 1
    %p107 = por %p105, %p106
    %p108 = scmp.ne.s32.totalorder %s99, %s100
    %p109 = scmp.eq.s32.totalorder %s26, 0
    %p110 = por %p108, %p109
    %p111 = scmp.ne.s32.totalorder %s99, %s100
    %p112 = scmp.eq.s32.totalorder %s27, 1
    %p113 = por %p111, %p112
    %p115 = scmp.ne.s32.totalorder %s100, %s114
    %p116 = scmp.eq.s32.totalorder %s27, 0
    %p117 = por %p115, %p116
    %s119 = sadd.s32 %s118, 1
    %p122 = scmp.eq.s32.totalorder %s21, 1
    %p123 = scmp.ne.s32.totalorder %s118, %s120
    %p124 = scmp.eq.s32.totalorder %s21, 0
    %p125 = por %p123, %p124
    %p126 = scmp.ne.s32.totalorder %s118, %s120
    %p127 = scmp.eq.s32.totalorder %s26, 1
    %p128 = por %p126, %p127
    %p129 = scmp.ne.s32.totalorder %s120, %s121
    %p130 = scmp.eq.s32.totalorder %s26, 0
    %p131 = por %p129, %p130
    %p132 = scmp.ne.s32.totalorder %s120, %s121
    %p133 = scmp.eq.s32.totalorder %s27, 1
    %p134 = por %p132, %p133
    %p136 = scmp.ne.s32.totalorder %s121, %s135
    %p137 = scmp.eq.s32.totalorder %s27, 0
    %p138 = por %p136, %p137
    %s140 = sadd.s32 %s139, 1
    %p143 = scmp.eq.s32.totalorder %s21, 1
    %p144 = scmp.ne.s32.totalorder %s139, %s141
    %p145 = scmp.eq.s32.totalorder %s21, 0
    %p146 = por %p144, %p145
    %p147 = scmp.ne.s32.totalorder %s139, %s141
    %p148 = scmp.eq.s32.totalorder %s26, 1
    %p149 = por %p147, %p148
    %p150 = scmp.ne.s32.totalorder %s141, %s142
    %p151 = scmp.eq.s32.totalorder %s26, 0
    %p152 = por %p150, %p151
    %p153 = scmp.ne.s32.totalorder %s141, %s142
    %p154 = scmp.eq.s32.totalorder %s27, 1
    %p155 = por %p153, %p154
    %p157 = scmp.ne.s32.totalorder %s142, %s156
    %p158 = scmp.eq.s32.totalorder %s27, 0
    %p159 = por %p157, %p158
    %s161 = sadd.s32 %s160, 1
    %p164 = scmp.eq.s32.totalorder %s21, 1
    %p165 = scmp.ne.s32.totalorder %s160, %s162
    %p166 = scmp.eq.s32.totalorder %s21, 0
    %p167 = por %p165, %p166
    %p168 = scmp.ne.s32.totalorder %s160, %s162
    %p169 = scmp.eq.s32.totalorder %s26, 1
    %p170 = por %p168, %p169
    %p171 = scmp.ne.s32.totalorder %s162, %s163
    %p172 = scmp.eq.s32.totalorder %s26, 0
    %p173 = por %p171, %p172
    %p174 = scmp.ne.s32.totalorder %s162, %s163
    %p175 = scmp.eq.s32.totalorder %s27, 1
    %p176 = por %p174, %p175
    %p178 = scmp.ne.s32.totalorder %s163, %s177
    %p179 = scmp.eq.s32.totalorder %s27, 0
    %p180 = por %p178, %p179
    %s182 = sadd.s32 %s181, 1
    %p185 = scmp.eq.s32.totalorder %s21, 1
    %p186 = scmp.ne.s32.totalorder %s181, %s183
    %p187 = scmp.eq.s32.totalorder %s21, 0
    %p188 = por %p186, %p187
    %p189 = scmp.ne.s32.totalorder %s181, %s183
    %p190 = scmp.eq.s32.totalorder %s26, 1
    %p191 = por %p189, %p190
    %p192 = scmp.ne.s32.totalorder %s183, %s184
    %p193 = scmp.eq.s32.totalorder %s26, 0
    %p194 = por %p192, %p193
    %p195 = scmp.ne.s32.totalorder %s183, %s184
    %p196 = scmp.eq.s32.totalorder %s27, 1
    %p197 = por %p195, %p196
    %p199 = scmp.ne.s32.totalorder %s184, %s198
    %p200 = scmp.eq.s32.totalorder %s27, 0
    %p201 = por %p199, %p200
    %s203 = sadd.s32 %s202, 1
    %p206 = scmp.eq.s32.totalorder %s21, 1
    %p207 = scmp.ne.s32.totalorder %s202, %s204
    %p208 = scmp.eq.s32.totalorder %s21, 0
    %p209 = por %p207, %p208
    %p210 = scmp.ne.s32.totalorder %s202, %s204
    %p211 = scmp.eq.s32.totalorder %s26, 1
    %p212 = por %p210, %p211
    %p213 = scmp.ne.s32.totalorder %s204, %s205
    %p214 = scmp.eq.s32.totalorder %s26, 0
    %p215 = por %p213, %p214
    %p216 = scmp.ne.s32.totalorder %s204, %s205
    %p217 = scmp.eq.s32.totalorder %s27, 1
    %p218 = por %p216, %p217
    %p220 = scmp.ne.s32.totalorder %s205, %s219
    %p221 = scmp.eq.s32.totalorder %s27, 0
    %p222 = por %p220, %p221
    %s224 = sadd.s32 %s223, 1
    %p227 = scmp.eq.s32.totalorder %s21, 1
    %p228 = scmp.ne.s32.totalorder %s223, %s225
    %p229 = scmp.eq.s32.totalorder %s21, 0
    %p230 = por %p228, %p229
    %p231 = scmp.ne.s32.totalorder %s223, %s225
    %p232 = scmp.eq.s32.totalorder %s26, 1
    %p233 = por %p231, %p232
    %p234 = scmp.ne.s32.totalorder %s225, %s226
    %p235 = scmp.eq.s32.totalorder %s26, 0
    %p236 = por %p234, %p235
    %p237 = scmp.ne.s32.totalorder %s225, %s226
    %p238 = scmp.eq.s32.totalorder %s27, 1
    %p239 = por %p237, %p238
    %p241 = scmp.ne.s32.totalorder %s226, %s240
    %p242 = scmp.eq.s32.totalorder %s27, 0
    %p243 = por %p241, %p242
    %s245 = sadd.s32 %s244, 1
    %p248 = scmp.eq.s32.totalorder %s21, 1
    %p249 = scmp.ne.s32.totalorder %s244, %s246
    %p250 = scmp.eq.s32.totalorder %s21, 0
    %p251 = por %p249, %p250
    %p252 = scmp.ne.s32.totalorder %s244, %s246
    %p253 = scmp.eq.s32.totalorder %s26, 1
    %p254 = por %p252, %p253
    %p255 = scmp.ne.s32.totalorder %s246, %s247
    %p256 = scmp.eq.s32.totalorder %s26, 0
    %p257 = por %p255, %p256
    %p258 = scmp.ne.s32.totalorder %s246, %s247
    %p259 = scmp.eq.s32.totalorder %s27, 1
    %p260 = por %p258, %p259
    %p262 = scmp.ne.s32.totalorder %s247, %s261
    %p263 = scmp.eq.s32.totalorder %s27, 0
    %p264 = por %p262, %p263
    %s266 = sadd.s32 %s265, 1
    %p269 = scmp.eq.s32.totalorder %s21, 1
    %p270 = scmp.ne.s32.totalorder %s265, %s267
    %p271 = scmp.eq.s32.totalorder %s21, 0
    %p272 = por %p270, %p271
    %p273 = scmp.ne.s32.totalorder %s265, %s267
    %p274 = scmp.eq.s32.totalorder %s26, 1
    %p275 = por %p273, %p274
    %p276 = scmp.ne.s32.totalorder %s267, %s268
    %p277 = scmp.eq.s32.totalorder %s26, 0
    %p278 = por %p276, %p277
    %p279 = scmp.ne.s32.totalorder %s267, %s268
    %p280 = scmp.eq.s32.totalorder %s27, 1
    %p281 = por %p279, %p280
    %p283 = scmp.ne.s32.totalorder %s268, %s282
    %p284 = scmp.eq.s32.totalorder %s27, 0
    %p285 = por %p283, %p284
    %s287 = sadd.s32 %s286, 1
    %p290 = scmp.eq.s32.totalorder %s21, 1
    %p291 = scmp.ne.s32.totalorder %s286, %s288
    %p292 = scmp.eq.s32.totalorder %s21, 0
    %p293 = por %p291, %p292
    %p294 = scmp.ne.s32.totalorder %s286, %s288
    %p295 = scmp.eq.s32.totalorder %s26, 1
    %p296 = por %p294, %p295
    %p297 = scmp.ne.s32.totalorder %s288, %s289
    %p298 = scmp.eq.s32.totalorder %s26, 0
    %p299 = por %p297, %p298
    %p300 = scmp.ne.s32.totalorder %s288, %s289
    %p301 = scmp.eq.s32.totalorder %s27, 1
    %p302 = por %p300, %p301
    %p304 = scmp.ne.s32.totalorder %s289, %s303
    %p305 = scmp.eq.s32.totalorder %s27, 0
    %p306 = por %p304, %p305
    %s308 = sadd.s32 %s307, 1
    %p311 = scmp.eq.s32.totalorder %s21, 1
    %p312 = scmp.ne.s32.totalorder %s307, %s309
    %p313 = scmp.eq.s32.totalorder %s21, 0
    %p314 = por %p312, %p313
    %p315 = scmp.ne.s32.totalorder %s307, %s309
    %p316 = scmp.eq.s32.totalorder %s26, 1
    %p317 = por %p315, %p316
    %p318 = scmp.ne.s32.totalorder %s309, %s310
    %p319 = scmp.eq.s32.totalorder %s26, 0
    %p320 = por %p318, %p319
    %p321 = scmp.ne.s32.totalorder %s309, %s310
    %p322 = scmp.eq.s32.totalorder %s27, 1
    %p323 = por %p321, %p322
    %p325 = scmp.ne.s32.totalorder %s310, %s324
    %p326 = scmp.eq.s32.totalorder %s27, 0
    %p327 = por %p325, %p326
    %s329 = sadd.s32 %s328, 1
    %p332 = scmp.eq.s32.totalorder %s21, 1
    %p333 = scmp.ne.s32.totalorder %s328, %s330
    %p334 = scmp.eq.s32.totalorder %s21, 0
    %p335 = por %p333, %p334
    %p336 = scmp.ne.s32.totalorder %s328, %s330
    %p337 = scmp.eq.s32.totalorder %s26, 1
    %p338 = por %p336, %p337
    %p339 = scmp.ne.s32.totalorder %s330, %s331
    %p340 = scmp.eq.s32.totalorder %s26, 0
    %p341 = por %p339, %p340
    %p342 = scmp.ne.s32.totalorder %s330, %s331
    %p343 = scmp.eq.s32.totalorder %s27, 1
    %p344 = por %p342, %p343
    %p346 = scmp.ne.s32.totalorder %s331, %s345
    %p347 = scmp.eq.s32.totalorder %s27, 0
    %p348 = por %p346, %p347
    %s349 = ssub.s32 %s21, %s28
    %p350 = scmp.eq.s32.totalorder %s349, 0
    %s352 = sadd.s32 %s351, 1
    %s353 = scalar_select %p350, %s351, %s352
    %p356 = pneg %p350
    %p357 = scmp.eq.s32.totalorder %s21, 1
    %p358 = por %p356, %p357
    %p359 = scmp.ne.s32.totalorder %s351, %s354
    %p360 = scmp.eq.s32.totalorder %s21, 0
    %p361 = por %p359, %p360
    %p362 = scmp.ne.s32.totalorder %s351, %s354
    %p363 = scmp.eq.s32.totalorder %s26, 1
    %p364 = por %p362, %p363
    %p365 = scmp.ne.s32.totalorder %s354, %s355
    %p366 = scmp.eq.s32.totalorder %s26, 0
    %p367 = por %p365, %p366
    %p368 = scmp.ne.s32.totalorder %s354, %s355
    %p369 = scmp.eq.s32.totalorder %s27, 1
    %p370 = por %p368, %p369
    %p372 = scmp.ne.s32.totalorder %s355, %s371
    %p373 = scmp.eq.s32.totalorder %s27, 0
    %p374 = por %p372, %p373
    %p375 = scmp.le.s32.totalorder 1, %s21
    %p376 = scmp.lt.s32.totalorder %s21, 3
    %p377 = pnand %p375, %p376
    %p378 = pneg %p377
    // Predicated region
    $region9: #{block_forward.1} parent=5 // pred_check
      _
    $region10: #{block_forward.1} parent=5 // pred_check_branch
      %380 = sbr.rel (%p377) target = $region12
    $region11: #{block_forward.1} parent=5 // pred_region
      %s381 = ssub.s32 %s21, 1
      // Predicated region
      $region13: #{block_forward.1} parent=11 // pred_check
        %p382 = pneg %p68
      $region14: #{block_forward.1} parent=11 // pred_check_branch
        %384 = sbr.rel (%p382) target = $region16
      $region15: #{block_forward.1} parent=11 // pred_region
        _
      $region16: #{block_forward.1} parent=11 // pred_fallthru
        _
      // Predicated region
      $region17: #{block_forward.1} parent=11 // pred_check
        %p385 = pneg %p89
      $region18: #{block_forward.1} parent=11 // pred_check_branch
        %387 = sbr.rel (%p385) target = $region20
      $region19: #{block_forward.1} parent=11 // pred_region
        _
      $region20: #{block_forward.1} parent=11 // pred_fallthru
        _
      // Predicated region
      $region21: #{block_forward.1} parent=11 // pred_check
        %p388 = pneg %p110
      $region22: #{block_forward.1} parent=11 // pred_check_branch
        %390 = sbr.rel (%p388) target = $region24
      $region23: #{block_forward.1} parent=11 // pred_region
        _
      $region24: #{block_forward.1} parent=11 // pred_fallthru
        _
      // Predicated region
      $region25: #{block_forward.1} parent=11 // pred_check
        %p391 = pneg %p131
      $region26: #{block_forward.1} parent=11 // pred_check_branch
        %393 = sbr.rel (%p391) target = $region28
      $region27: #{block_forward.1} parent=11 // pred_region
        _
      $region28: #{block_forward.1} parent=11 // pred_fallthru
        _
      // Predicated region
      $region29: #{block_forward.1} parent=11 // pred_check
        %p394 = pneg %p152
      $region30: #{block_forward.1} parent=11 // pred_check_branch
        %396 = sbr.rel (%p394) target = $region32
      $region31: #{block_forward.1} parent=11 // pred_region
        _
      $region32: #{block_forward.1} parent=11 // pred_fallthru
        _
      // Predicated region
      $region33: #{block_forward.1} parent=11 // pred_check
        %p397 = pneg %p173
      $region34: #{block_forward.1} parent=11 // pred_check_branch
        %399 = sbr.rel (%p397) target = $region36
      $region35: #{block_forward.1} parent=11 // pred_region
        _
      $region36: #{block_forward.1} parent=11 // pred_fallthru
        _
      // Predicated region
      $region37: #{block_forward.1} parent=11 // pred_check
        %p400 = pneg %p194
      $region38: #{block_forward.1} parent=11 // pred_check_branch
        %402 = sbr.rel (%p400) target = $region40
      $region39: #{block_forward.1} parent=11 // pred_region
        _
      $region40: #{block_forward.1} parent=11 // pred_fallthru
        _
      // Predicated region
      $region41: #{block_forward.1} parent=11 // pred_check
        %p403 = pneg %p215
      $region42: #{block_forward.1} parent=11 // pred_check_branch
        %405 = sbr.rel (%p403) target = $region44
      $region43: #{block_forward.1} parent=11 // pred_region
        _
      $region44: #{block_forward.1} parent=11 // pred_fallthru
        _
      // Predicated region
      $region45: #{block_forward.1} parent=11 // pred_check
        %p406 = pneg %p236
      $region46: #{block_forward.1} parent=11 // pred_check_branch
        %408 = sbr.rel (%p406) target = $region48
      $region47: #{block_forward.1} parent=11 // pred_region
        _
      $region48: #{block_forward.1} parent=11 // pred_fallthru
        _
      // Predicated region
      $region49: #{block_forward.1} parent=11 // pred_check
        %p409 = pneg %p257
      $region50: #{block_forward.1} parent=11 // pred_check_branch
        %411 = sbr.rel (%p409) target = $region52
      $region51: #{block_forward.1} parent=11 // pred_region
        _
      $region52: #{block_forward.1} parent=11 // pred_fallthru
        _
      // Predicated region
      $region53: #{block_forward.1} parent=11 // pred_check
        %p412 = pneg %p278
      $region54: #{block_forward.1} parent=11 // pred_check_branch
        %414 = sbr.rel (%p412) target = $region56
      $region55: #{block_forward.1} parent=11 // pred_region
        _
      $region56: #{block_forward.1} parent=11 // pred_fallthru
        _
      // Predicated region
      $region57: #{block_forward.1} parent=11 // pred_check
        %p415 = pneg %p299
      $region58: #{block_forward.1} parent=11 // pred_check_branch
        %417 = sbr.rel (%p415) target = $region60
      $region59: #{block_forward.1} parent=11 // pred_region
        _
      $region60: #{block_forward.1} parent=11 // pred_fallthru
        _
      // Predicated region
      $region61: #{block_forward.1} parent=11 // pred_check
        %p418 = pneg %p320
      $region62: #{block_forward.1} parent=11 // pred_check_branch
        %420 = sbr.rel (%p418) target = $region64
      $region63: #{block_forward.1} parent=11 // pred_region
        _
      $region64: #{block_forward.1} parent=11 // pred_fallthru
        _
      // Predicated region
      $region65: #{block_forward.1} parent=11 // pred_check
        %p421 = pneg %p341
      $region66: #{block_forward.1} parent=11 // pred_check_branch
        %423 = sbr.rel (%p421) target = $region68
      $region67: #{block_forward.1} parent=11 // pred_region
        _
      $region68: #{block_forward.1} parent=11 // pred_fallthru
        _
    $region12: #{block_forward.1} parent=5 // pred_fallthru
      _
    %p424 = scmp.lt.s32.totalorder %s21, 2
    // Predicated region
    $region69: #{block_forward.1} parent=5 // pred_check
      %p425 = pneg %p424
    $region70: #{block_forward.1} parent=5 // pred_check_branch
      %427 = sbr.rel (%p425) target = $region72
    $region71: #{block_forward.1} parent=5 // pred_region
      // Predicated region
      $region73: #{block_forward.1} parent=71 // pred_check
        %p428 = pneg %p41
      $region74: #{block_forward.1} parent=71 // pred_check_branch
        %430 = sbr.rel (%p428) target = $region76
      $region75: #{block_forward.1} parent=71 // pred_region
        %p431 = scmp.lt.s32.totalorder %s21, 1
        %s432 = scalar_select %p431, %s21, 1
        %s433 = smul.addr %s432, 32
        %s434 = smul.addr %s433, 8
        %s435 = scalar_lea.vmem %s0, %s434
      $region76: #{block_forward.1} parent=71 // pred_fallthru
        _
    $region72: #{block_forward.1} parent=5 // pred_fallthru
      _
    %p436 = scmp.le.s32.totalorder 1, %s21
    %p437 = scmp.lt.s32.totalorder %s21, 3
    %p438 = pnand %p436, %p437
    %p439 = pneg %p438
    // Predicated region
    $region77: #{block_forward.1} parent=5 // pred_check
      _
    $region78: #{block_forward.1} parent=5 // pred_check_branch
      %441 = sbr.rel (%p438) target = $region80
    $region79: #{block_forward.1} parent=5 // pred_region
      %s442 = ssub.s32 %s21, 1
      %p443 = scmp.lt.s32.totalorder %s26, 1
      %s444 = scalar_select %p443, %s26, 1
      %s445 = smul.addr %s444, 32
      %s446 = smul.addr %s445, 8
      %s447 = scalar_lea.vmem %s0, %s446
      %p448 = pneg %p47
      %p449 = pneg %p44
      %p450 = pneg %p68
      %p451 = pneg %p65
      %p452 = pneg %p89
      %p453 = pneg %p86
      %p454 = pneg %p110
      %p455 = pneg %p107
      %p456 = pneg %p131
      %p457 = pneg %p128
      %p458 = pneg %p152
      %p459 = pneg %p149
      %p460 = pneg %p173
      %p461 = pneg %p170
      %p462 = pneg %p194
      %p463 = pneg %p191
      %p464 = pneg %p215
      %p465 = pneg %p212
      %p466 = pneg %p236
      %p467 = pneg %p233
      %p468 = pneg %p257
      %p469 = pneg %p254
      %p470 = pneg %p278
      %p471 = pneg %p275
      %p472 = pneg %p299
      %p473 = pneg %p296
      %p474 = pneg %p320
      %p475 = pneg %p317
      %p476 = pneg %p341
      %p477 = pneg %p338
      %p478 = pneg %p367
      %p479 = pneg %p364
      %p480 = scmp.lt.s32.totalorder %s26, 1
      %s481 = scalar_select %p480, %s26, 1
      %s482 = smul.addr %s481, 32
      %s483 = smul.addr %s482, 8
      %s484 = scalar_lea.vmem %s15, %s483
      %p485 = scmp.lt.s32.totalorder %s26, 1
      %s486 = scalar_select %p485, %s26, 1
      %s487 = smul.addr %s486, 32
      %s488 = smul.addr %s487, 8
      %s489 = scalar_lea.vmem %s0, %s488
      %p490 = scmp.lt.s32.totalorder %s26, 1
      %s491 = scalar_select %p490, %s26, 1
      %s492 = smul.addr %s491, 32
      %s493 = smul.addr %s492, 8
      %s494 = scalar_lea.vmem %s15, %s493
      %v496 = vld [vmem:[%s489] sm:$0xff]
      %v497 = vld [vmem:[%s489 + $0x8] sm:$0xff]
      %v498 = vld [vmem:[%s489 + $0x10] sm:$0xff]
      %v499 = vld [vmem:[%s489 + $0x18] sm:$0xff]
      %v500 = vld [vmem:[%s489 + $0x20] sm:$0xff]
      %v501 = vld [vmem:[%s489 + $0x28] sm:$0xff]
      %v502 = vld [vmem:[%s489 + $0x30] sm:$0xff]
      %v503 = vld [vmem:[%s489 + $0x38] sm:$0xff]
      %v504 = vld [vmem:[%s489 + $0x40] sm:$0xff]
      %v505 = vld [vmem:[%s489 + $0x48] sm:$0xff]
      %v506 = vld [vmem:[%s489 + $0x50] sm:$0xff]
      %v507 = vld [vmem:[%s489 + $0x58] sm:$0xff]
      %v508 = vld [vmem:[%s489 + $0x60] sm:$0xff]
      %v509 = vld [vmem:[%s489 + $0x68] sm:$0xff]
      %v510 = vld [vmem:[%s489 + $0x70] sm:$0xff]
      %v511 = vld [vmem:[%s489 + $0x78] sm:$0xff]
      %v512 = vld [vmem:[%s489 + $0x80] sm:$0xff]
      %v513 = vld [vmem:[%s489 + $0x88] sm:$0xff]
      %v514 = vld [vmem:[%s489 + $0x90] sm:$0xff]
      %v515 = vld [vmem:[%s489 + $0x98] sm:$0xff]
      %v516 = vld [vmem:[%s489 + $0xa0] sm:$0xff]
      %v517 = vld [vmem:[%s489 + $0xa8] sm:$0xff]
      %v518 = vld [vmem:[%s489 + $0xb0] sm:$0xff]
      %v519 = vld [vmem:[%s489 + $0xb8] sm:$0xff]
      %v520 = vld [vmem:[%s489 + $0xc0] sm:$0xff]
      %v521 = vld [vmem:[%s489 + $0xc8] sm:$0xff]
      %v522 = vld [vmem:[%s489 + $0xd0] sm:$0xff]
      %v523 = vld [vmem:[%s489 + $0xd8] sm:$0xff]
      %v524 = vld [vmem:[%s489 + $0xe0] sm:$0xff]
      %v525 = vld [vmem:[%s489 + $0xe8] sm:$0xff]
      %v526 = vld [vmem:[%s489 + $0xf0] sm:$0xff]
      %v527 = vld [vmem:[%s489 + $0xf8] sm:$0xff]
      %vm528 = vcmask 64512
      %529 = vst.msk [vmem:[#allocation2] sm:$0xff] %vm528, 0.0
      %530 = vst.msk [vmem:[#allocation2 + $0x8] sm:$0xff] %vm528, 0.0
      %531 = vst.msk [vmem:[#allocation2 + $0x10] sm:$0xff] %vm528, 0.0
      %vm532 = vcmask 57344
      %533 = vst.msk [vmem:[#allocation2 + $0x18] sm:$0x1] %vm532, 0.0
      %534 = vst.msk [vmem:[#allocation2 + $0x20] sm:$0xff] %vm528, 0.0
      %535 = vst.msk [vmem:[#allocation2 + $0x28] sm:$0xff] %vm528, 0.0
      %536 = vst.msk [vmem:[#allocation2 + $0x30] sm:$0xff] %vm528, 0.0
      %537 = vst.msk [vmem:[#allocation2 + $0x38] sm:$0x1] %vm532, 0.0
      %538 = vst.msk [vmem:[#allocation2 + $0x40] sm:$0xff] %vm528, 0.0
      %539 = vst.msk [vmem:[#allocation2 + $0x48] sm:$0xff] %vm528, 0.0
      %540 = vst.msk [vmem:[#allocation2 + $0x50] sm:$0xff] %vm528, 0.0
      %541 = vst.msk [vmem:[#allocation2 + $0x58] sm:$0x1] %vm532, 0.0
      %542 = vst.msk [vmem:[#allocation2 + $0x60] sm:$0xff] %vm528, 0.0
      %543 = vst.msk [vmem:[#allocation2 + $0x68] sm:$0xff] %vm528, 0.0
      %544 = vst.msk [vmem:[#allocation2 + $0x70] sm:$0xff] %vm528, 0.0
      %545 = vst.msk [vmem:[#allocation2 + $0x78] sm:$0x1] %vm532, 0.0
      %546 = vst.msk [vmem:[#allocation2 + $0x80] sm:$0xff] %vm528, 0.0
      %547 = vst.msk [vmem:[#allocation2 + $0x88] sm:$0xff] %vm528, 0.0
      %548 = vst.msk [vmem:[#allocation2 + $0x90] sm:$0xff] %vm528, 0.0
      %549 = vst.msk [vmem:[#allocation2 + $0x98] sm:$0x1] %vm532, 0.0
      %550 = vst.msk [vmem:[#allocation2 + $0xa0] sm:$0xff] %vm528, 0.0
      %551 = vst.msk [vmem:[#allocation2 + $0xa8] sm:$0xff] %vm528, 0.0
      %552 = vst.msk [vmem:[#allocation2 + $0xb0] sm:$0xff] %vm528, 0.0
      %553 = vst.msk [vmem:[#allocation2 + $0xb8] sm:$0x1] %vm532, 0.0
      %554 = vst.msk [vmem:[#allocation2 + $0xc0] sm:$0xff] %vm528, 0.0
      %555 = vst.msk [vmem:[#allocation2 + $0xc8] sm:$0xff] %vm528, 0.0
      %556 = vst.msk [vmem:[#allocation2 + $0xd0] sm:$0xff] %vm528, 0.0
      %557 = vst.msk [vmem:[#allocation2 + $0xd8] sm:$0x1] %vm532, 0.0
      %558 = vst.msk [vmem:[#allocation2 + $0xe0] sm:$0xff] %vm528, 0.0
      %559 = vst.msk [vmem:[#allocation2 + $0xe8] sm:$0xff] %vm528, 0.0
      %560 = vst.msk [vmem:[#allocation2 + $0xf0] sm:$0xff] %vm528, 0.0
      %561 = vst.msk [vmem:[#allocation2 + $0xf8] sm:$0x1] %vm532, 0.0
      %562 = vst.msk [vmem:[#allocation2 + $0x100] sm:$0xff] %vm528, 0.0
      %563 = vst.msk [vmem:[#allocation2 + $0x108] sm:$0xff] %vm528, 0.0
      %564 = vst.msk [vmem:[#allocation2 + $0x110] sm:$0xff] %vm528, 0.0
      %565 = vst.msk [vmem:[#allocation2 + $0x118] sm:$0x1] %vm532, 0.0
      %566 = vst.msk [vmem:[#allocation2 + $0x120] sm:$0xff] %vm528, 0.0
      %567 = vst.msk [vmem:[#allocation2 + $0x128] sm:$0xff] %vm528, 0.0
      %568 = vst.msk [vmem:[#allocation2 + $0x130] sm:$0xff] %vm528, 0.0
      %569 = vst.msk [vmem:[#allocation2 + $0x138] sm:$0x1] %vm532, 0.0
      %570 = vst.msk [vmem:[#allocation2 + $0x140] sm:$0xff] %vm528, 0.0
      %571 = vst.msk [vmem:[#allocation2 + $0x148] sm:$0xff] %vm528, 0.0
      %572 = vst.msk [vmem:[#allocation2 + $0x150] sm:$0xff] %vm528, 0.0
      %573 = vst.msk [vmem:[#allocation2 + $0x158] sm:$0x1] %vm532, 0.0
      %574 = vst.msk [vmem:[#allocation2 + $0x160] sm:$0xff] %vm528, 0.0
      %575 = vst.msk [vmem:[#allocation2 + $0x168] sm:$0xff] %vm528, 0.0
      %576 = vst.msk [vmem:[#allocation2 + $0x170] sm:$0xff] %vm528, 0.0
      %577 = vst.msk [vmem:[#allocation2 + $0x178] sm:$0x1] %vm532, 0.0
      %578 = vst.msk [vmem:[#allocation2 + $0x180] sm:$0xff] %vm528, 0.0
      %579 = vst.msk [vmem:[#allocation2 + $0x188] sm:$0xff] %vm528, 0.0
      %580 = vst.msk [vmem:[#allocation2 + $0x190] sm:$0xff] %vm528, 0.0
      %581 = vst.msk [vmem:[#allocation2 + $0x198] sm:$0x1] %vm532, 0.0
      %582 = vst.msk [vmem:[#allocation2 + $0x1a0] sm:$0xff] %vm528, 0.0
      %583 = vst.msk [vmem:[#allocation2 + $0x1a8] sm:$0xff] %vm528, 0.0
      %584 = vst.msk [vmem:[#allocation2 + $0x1b0] sm:$0xff] %vm528, 0.0
      %585 = vst.msk [vmem:[#allocation2 + $0x1b8] sm:$0x1] %vm532, 0.0
      %586 = vst.msk [vmem:[#allocation2 + $0x1c0] sm:$0xff] %vm528, 0.0
      %587 = vst.msk [vmem:[#allocation2 + $0x1c8] sm:$0xff] %vm528, 0.0
      %588 = vst.msk [vmem:[#allocation2 + $0x1d0] sm:$0xff] %vm528, 0.0
      %589 = vst.msk [vmem:[#allocation2 + $0x1d8] sm:$0x1] %vm532, 0.0
      %590 = vst.msk [vmem:[#allocation2 + $0x1e0] sm:$0xff] %vm528, 0.0
      %591 = vst.msk [vmem:[#allocation2 + $0x1e8] sm:$0xff] %vm528, 0.0
      %592 = vst.msk [vmem:[#allocation2 + $0x1f0] sm:$0xff] %vm528, 0.0
      %593 = vst.msk [vmem:[#allocation2 + $0x1f8] sm:$0x1] %vm532, 0.0
      %594 = vst.msk [vmem:[#allocation2 + $0x200] sm:$0xff] %vm528, 0.0
      %595 = vst.msk [vmem:[#allocation2 + $0x208] sm:$0xff] %vm528, 0.0
      %596 = vst.msk [vmem:[#allocation2 + $0x210] sm:$0xff] %vm528, 0.0
      %597 = vst.msk [vmem:[#allocation2 + $0x218] sm:$0x1] %vm532, 0.0
      %598 = vst.msk [vmem:[#allocation2 + $0x220] sm:$0xff] %vm528, 0.0
      %599 = vst.msk [vmem:[#allocation2 + $0x228] sm:$0xff] %vm528, 0.0
      %600 = vst.msk [vmem:[#allocation2 + $0x230] sm:$0xff] %vm528, 0.0
      %601 = vst.msk [vmem:[#allocation2 + $0x238] sm:$0x1] %vm532, 0.0
      %v602 = vmax.f32 %v496, 0.0
      %v603 = vmax.f32 %v497, 0.0
      %v604 = vmax.f32 %v498, 0.0
      %v605 = vmax.f32 %v499, 0.0
      %v606 = vmax.f32 %v500, 0.0
      %v607 = vmax.f32 %v501, 0.0
      %v608 = vmax.f32 %v502, 0.0
      %v609 = vmax.f32 %v503, 0.0
      %v610 = vmax.f32 %v504, 0.0
      %v611 = vmax.f32 %v505, 0.0
      %v612 = vmax.f32 %v506, 0.0
      %v613 = vmax.f32 %v507, 0.0
      %v614 = vmax.f32 %v508, 0.0
      %v615 = vmax.f32 %v509, 0.0
      %v616 = vmax.f32 %v510, 0.0
      %v617 = vmax.f32 %v511, 0.0
      %v618 = vmax.f32 %v512, 0.0
      %v619 = vmax.f32 %v513, 0.0
      %v620 = vmax.f32 %v514, 0.0
      %v621 = vmax.f32 %v515, 0.0
      %v622 = vmax.f32 %v516, 0.0
      %v623 = vmax.f32 %v517, 0.0
      %v624 = vmax.f32 %v518, 0.0
      %v625 = vmax.f32 %v519, 0.0
      %v626 = vmax.f32 %v520, 0.0
      %v627 = vmax.f32 %v521, 0.0
      %v628 = vmax.f32 %v522, 0.0
      %v629 = vmax.f32 %v523, 0.0
      %v630 = vmax.f32 %v524, 0.0
      %v631 = vmax.f32 %v525, 0.0
      %v632 = vmax.f32 %v526, 0.0
      %v633 = vmax.f32 %v527, 0.0
      %s634 = scalar_lea.vmem [#allocation2], 32
      %635 = vst.msk [vmem:[%s634 + $0x8] sm:$0xff] %vm528, %v602
      %636 = vst.msk [vmem:[%s634 + $0x10] sm:$0xff] %vm528, %v603
      %637 = vst.msk [vmem:[%s634 + $0x28] sm:$0xff] %vm528, %v604
      %638 = vst.msk [vmem:[%s634 + $0x30] sm:$0xff] %vm528, %v605
      %639 = vst.msk [vmem:[%s634 + $0x48] sm:$0xff] %vm528, %v606
      %640 = vst.msk [vmem:[%s634 + $0x50] sm:$0xff] %vm528, %v607
      %641 = vst.msk [vmem:[%s634 + $0x68] sm:$0xff] %vm528, %v608
      %642 = vst.msk [vmem:[%s634 + $0x70] sm:$0xff] %vm528, %v609
      %643 = vst.msk [vmem:[%s634 + $0x88] sm:$0xff] %vm528, %v610
      %644 = vst.msk [vmem:[%s634 + $0x90] sm:$0xff] %vm528, %v611
      %645 = vst.msk [vmem:[%s634 + $0xa8] sm:$0xff] %vm528, %v612
      %646 = vst.msk [vmem:[%s634 + $0xb0] sm:$0xff] %vm528, %v613
      %647 = vst.msk [vmem:[%s634 + $0xc8] sm:$0xff] %vm528, %v614
      %648 = vst.msk [vmem:[%s634 + $0xd0] sm:$0xff] %vm528, %v615
      %649 = vst.msk [vmem:[%s634 + $0xe8] sm:$0xff] %vm528, %v616
      %650 = vst.msk [vmem:[%s634 + $0xf0] sm:$0xff] %vm528, %v617
      %651 = vst.msk [vmem:[%s634 + $0x108] sm:$0xff] %vm528, %v618
      %652 = vst.msk [vmem:[%s634 + $0x110] sm:$0xff] %vm528, %v619
      %653 = vst.msk [vmem:[%s634 + $0x128] sm:$0xff] %vm528, %v620
      %654 = vst.msk [vmem:[%s634 + $0x130] sm:$0xff] %vm528, %v621
      %655 = vst.msk [vmem:[%s634 + $0x148] sm:$0xff] %vm528, %v622
      %656 = vst.msk [vmem:[%s634 + $0x150] sm:$0xff] %vm528, %v623
      %657 = vst.msk [vmem:[%s634 + $0x168] sm:$0xff] %vm528, %v624
      %658 = vst.msk [vmem:[%s634 + $0x170] sm:$0xff] %vm528, %v625
      %659 = vst.msk [vmem:[%s634 + $0x188] sm:$0xff] %vm528, %v626
      %660 = vst.msk [vmem:[%s634 + $0x190] sm:$0xff] %vm528, %v627
      %661 = vst.msk [vmem:[%s634 + $0x1a8] sm:$0xff] %vm528, %v628
      %662 = vst.msk [vmem:[%s634 + $0x1b0] sm:$0xff] %vm528, %v629
      %663 = vst.msk [vmem:[%s634 + $0x1c8] sm:$0xff] %vm528, %v630
      %664 = vst.msk [vmem:[%s634 + $0x1d0] sm:$0xff] %vm528, %v631
      %665 = vst.msk [vmem:[%s634 + $0x1e8] sm:$0xff] %vm528, %v632
      %666 = vst.msk [vmem:[%s634 + $0x1f0] sm:$0xff] %vm528, %v633
      %v667 = vld [vmem:[#allocation2 + $0x7] sm:$0xff]
      %v668 = vld [vmem:[#allocation2 + $0xf] sm:$0xff]
      %v669 = vld [vmem:[#allocation2 + $0x27] sm:$0xff]
      %v670 = vld [vmem:[#allocation2 + $0x2f] sm:$0xff]
      %v671 = vld [vmem:[#allocation2 + $0x47] sm:$0xff]
      %v672 = vld [vmem:[#allocation2 + $0x4f] sm:$0xff]
      %v673 = vld [vmem:[#allocation2 + $0x67] sm:$0xff]
      %v674 = vld [vmem:[#allocation2 + $0x6f] sm:$0xff]
      %v675 = vld [vmem:[#allocation2 + $0x87] sm:$0xff]
      %v676 = vld [vmem:[#allocation2 + $0x8f] sm:$0xff]
      %v677 = vld [vmem:[#allocation2 + $0xa7] sm:$0xff]
      %v678 = vld [vmem:[#allocation2 + $0xaf] sm:$0xff]
      %v679 = vld [vmem:[#allocation2 + $0xc7] sm:$0xff]
      %v680 = vld [vmem:[#allocation2 + $0xcf] sm:$0xff]
      %v681 = vld [vmem:[#allocation2 + $0xe7] sm:$0xff]
      %v682 = vld [vmem:[#allocation2 + $0xef] sm:$0xff]
      %v683 = vld [vmem:[#allocation2 + $0x107] sm:$0xff]
      %v684 = vld [vmem:[#allocation2 + $0x10f] sm:$0xff]
      %v685 = vld [vmem:[#allocation2 + $0x127] sm:$0xff]
      %v686 = vld [vmem:[#allocation2 + $0x12f] sm:$0xff]
      %v687 = vld [vmem:[#allocation2 + $0x147] sm:$0xff]
      %v688 = vld [vmem:[#allocation2 + $0x14f] sm:$0xff]
      %v689 = vld [vmem:[#allocation2 + $0x167] sm:$0xff]
      %v690 = vld [vmem:[#allocation2 + $0x16f] sm:$0xff]
      %v691 = vld [vmem:[#allocation2 + $0x187] sm:$0xff]
      %v692 = vld [vmem:[#allocation2 + $0x18f] sm:$0xff]
      %v693 = vld [vmem:[#allocation2 + $0x1a7] sm:$0xff]
      %v694 = vld [vmem:[#allocation2 + $0x1af] sm:$0xff]
      %v695 = vld [vmem:[#allocation2 + $0x1c7] sm:$0xff]
      %v696 = vld [vmem:[#allocation2 + $0x1cf] sm:$0xff]
      %v697 = vld [vmem:[#allocation2 + $0x1e7] sm:$0xff]
      %v698 = vld [vmem:[#allocation2 + $0x1ef] sm:$0xff]
      %v699 = vld [vmem:[%s1] sm:$0x1]
      %v700 = vlaneseq
      %v701 = vshrl.u32 %v700, 7
      %v702 = vsub.s32 0, %v701
      %v703 = vrot.slane %v699, %v702
      %v704 = vmul.f32 %v667, %v703
      %v705 = vmul.f32 %v668, %v703
      %v706 = vmul.f32 %v669, %v703
      %v707 = vmul.f32 %v670, %v703
      %v708 = vmul.f32 %v671, %v703
      %v709 = vmul.f32 %v672, %v703
      %v710 = vmul.f32 %v673, %v703
      %v711 = vmul.f32 %v674, %v703
      %v712 = vmul.f32 %v675, %v703
      %v713 = vmul.f32 %v676, %v703
      %v714 = vmul.f32 %v677, %v703
      %v715 = vmul.f32 %v678, %v703
      %v716 = vmul.f32 %v679, %v703
      %v717 = vmul.f32 %v680, %v703
      %v718 = vmul.f32 %v681, %v703
      %v719 = vmul.f32 %v682, %v703
      %v720 = vmul.f32 %v683, %v703
      %v721 = vmul.f32 %v684, %v703
      %v722 = vmul.f32 %v685, %v703
      %v723 = vmul.f32 %v686, %v703
      %v724 = vmul.f32 %v687, %v703
      %v725 = vmul.f32 %v688, %v703
      %v726 = vmul.f32 %v689, %v703
      %v727 = vmul.f32 %v690, %v703
      %v728 = vmul.f32 %v691, %v703
      %v729 = vmul.f32 %v692, %v703
      %v730 = vmul.f32 %v693, %v703
      %v731 = vmul.f32 %v694, %v703
      %v732 = vmul.f32 %v695, %v703
      %v733 = vmul.f32 %v696, %v703
      %v734 = vmul.f32 %v697, %v703
      %v735 = vmul.f32 %v698, %v703
      %v736 = vld [vmem:[#allocation2 + $0x8] sm:$0xff]
      %v737 = vld [vmem:[#allocation2 + $0x10] sm:$0xff]
      %v738 = vld [vmem:[#allocation2 + $0x28] sm:$0xff]
      %v739 = vld [vmem:[#allocation2 + $0x30] sm:$0xff]
      %v740 = vld [vmem:[#allocation2 + $0x48] sm:$0xff]
      %v741 = vld [vmem:[#allocation2 + $0x50] sm:$0xff]
      %v742 = vld [vmem:[#allocation2 + $0x68] sm:$0xff]
      %v743 = vld [vmem:[#allocation2 + $0x70] sm:$0xff]
      %v744 = vld [vmem:[#allocation2 + $0x88] sm:$0xff]
      %v745 = vld [vmem:[#allocation2 + $0x90] sm:$0xff]
      %v746 = vld [vmem:[#allocation2 + $0xa8] sm:$0xff]
      %v747 = vld [vmem:[#allocation2 + $0xb0] sm:$0xff]
      %v748 = vld [vmem:[#allocation2 + $0xc8] sm:$0xff]
      %v749 = vld [vmem:[#allocation2 + $0xd0] sm:$0xff]
      %v750 = vld [vmem:[#allocation2 + $0xe8] sm:$0xff]
      %v751 = vld [vmem:[#allocation2 + $0xf0] sm:$0xff]
      %v752 = vld [vmem:[#allocation2 + $0x108] sm:$0xff]
      %v753 = vld [vmem:[#allocation2 + $0x110] sm:$0xff]
      %v754 = vld [vmem:[#allocation2 + $0x128] sm:$0xff]
      %v755 = vld [vmem:[#allocation2 + $0x130] sm:$0xff]
      %v756 = vld [vmem:[#allocation2 + $0x148] sm:$0xff]
      %v757 = vld [vmem:[#allocation2 + $0x150] sm:$0xff]
      %v758 = vld [vmem:[#allocation2 + $0x168] sm:$0xff]
      %v759 = vld [vmem:[#allocation2 + $0x170] sm:$0xff]
      %v760 = vld [vmem:[#allocation2 + $0x188] sm:$0xff]
      %v761 = vld [vmem:[#allocation2 + $0x190] sm:$0xff]
      %v762 = vld [vmem:[#allocation2 + $0x1a8] sm:$0xff]
      %v763 = vld [vmem:[#allocation2 + $0x1b0] sm:$0xff]
      %v764 = vld [vmem:[#allocation2 + $0x1c8] sm:$0xff]
      %v765 = vld [vmem:[#allocation2 + $0x1d0] sm:$0xff]
      %v766 = vld [vmem:[#allocation2 + $0x1e8] sm:$0xff]
      %v767 = vld [vmem:[#allocation2 + $0x1f0] sm:$0xff]
      %v768 = vld [vmem:[%s1 + $0x1] sm:$0x1]
      %v769 = vlaneseq
      %v770 = vshrl.u32 %v769, 7
      %v771 = vsub.s32 0, %v770
      %v772 = vrot.slane %v768, %v771
      %v773 = vmul.f32 %v736, %v772
      %v774 = vmul.f32 %v737, %v772
      %v775 = vmul.f32 %v738, %v772
      %v776 = vmul.f32 %v739, %v772
      %v777 = vmul.f32 %v740, %v772
      %v778 = vmul.f32 %v741, %v772
      %v779 = vmul.f32 %v742, %v772
      %v780 = vmul.f32 %v743, %v772
      %v781 = vmul.f32 %v744, %v772
      %v782 = vmul.f32 %v745, %v772
      %v783 = vmul.f32 %v746, %v772
      %v784 = vmul.f32 %v747, %v772
      %v785 = vmul.f32 %v748, %v772
      %v786 = vmul.f32 %v749, %v772
      %v787 = vmul.f32 %v750, %v772
      %v788 = vmul.f32 %v751, %v772
      %v789 = vmul.f32 %v752, %v772
      %v790 = vmul.f32 %v753, %v772
      %v791 = vmul.f32 %v754, %v772
      %v792 = vmul.f32 %v755, %v772
      %v793 = vmul.f32 %v756, %v772
      %v794 = vmul.f32 %v757, %v772
      %v795 = vmul.f32 %v758, %v772
      %v796 = vmul.f32 %v759, %v772
      %v797 = vmul.f32 %v760, %v772
      %v798 = vmul.f32 %v761, %v772
      %v799 = vmul.f32 %v762, %v772
      %v800 = vmul.f32 %v763, %v772
      %v801 = vmul.f32 %v764, %v772
      %v802 = vmul.f32 %v765, %v772
      %v803 = vmul.f32 %v766, %v772
      %v804 = vmul.f32 %v767, %v772
      %v805 = vadd.f32 %v704, %v773
      %v806 = vadd.f32 %v705, %v774
      %v807 = vadd.f32 %v706, %v775
      %v808 = vadd.f32 %v707, %v776
      %v809 = vadd.f32 %v708, %v777
      %v810 = vadd.f32 %v709, %v778
      %v811 = vadd.f32 %v710, %v779
      %v812 = vadd.f32 %v711, %v780
      %v813 = vadd.f32 %v712, %v781
      %v814 = vadd.f32 %v713, %v782
      %v815 = vadd.f32 %v714, %v783
      %v816 = vadd.f32 %v715, %v784
      %v817 = vadd.f32 %v716, %v785
      %v818 = vadd.f32 %v717, %v786
      %v819 = vadd.f32 %v718, %v787
      %v820 = vadd.f32 %v719, %v788
      %v821 = vadd.f32 %v720, %v789
      %v822 = vadd.f32 %v721, %v790
      %v823 = vadd.f32 %v722, %v791
      %v824 = vadd.f32 %v723, %v792
      %v825 = vadd.f32 %v724, %v793
      %v826 = vadd.f32 %v725, %v794
      %v827 = vadd.f32 %v726, %v795
      %v828 = vadd.f32 %v727, %v796
      %v829 = vadd.f32 %v728, %v797
      %v830 = vadd.f32 %v729, %v798
      %v831 = vadd.f32 %v730, %v799
      %v832 = vadd.f32 %v731, %v800
      %v833 = vadd.f32 %v732, %v801
      %v834 = vadd.f32 %v733, %v802
      %v835 = vadd.f32 %v734, %v803
      %v836 = vadd.f32 %v735, %v804
      %v837 = vld [vmem:[#allocation2 + $0x9] sm:$0xff]
      %v838 = vld [vmem:[#allocation2 + $0x11] sm:$0xff]
      %v839 = vld [vmem:[#allocation2 + $0x29] sm:$0xff]
      %v840 = vld [vmem:[#allocation2 + $0x31] sm:$0xff]
      %v841 = vld [vmem:[#allocation2 + $0x49] sm:$0xff]
      %v842 = vld [vmem:[#allocation2 + $0x51] sm:$0xff]
      %v843 = vld [vmem:[#allocation2 + $0x69] sm:$0xff]
      %v844 = vld [vmem:[#allocation2 + $0x71] sm:$0xff]
      %v845 = vld [vmem:[#allocation2 + $0x89] sm:$0xff]
      %v846 = vld [vmem:[#allocation2 + $0x91] sm:$0xff]
      %v847 = vld [vmem:[#allocation2 + $0xa9] sm:$0xff]
      %v848 = vld [vmem:[#allocation2 + $0xb1] sm:$0xff]
      %v849 = vld [vmem:[#allocation2 + $0xc9] sm:$0xff]
      %v850 = vld [vmem:[#allocation2 + $0xd1] sm:$0xff]
      %v851 = vld [vmem:[#allocation2 + $0xe9] sm:$0xff]
      %v852 = vld [vmem:[#allocation2 + $0xf1] sm:$0xff]
      %v853 = vld [vmem:[#allocation2 + $0x109] sm:$0xff]
      %v854 = vld [vmem:[#allocation2 + $0x111] sm:$0xff]
      %v855 = vld [vmem:[#allocation2 + $0x129] sm:$0xff]
      %v856 = vld [vmem:[#allocation2 + $0x131] sm:$0xff]
      %v857 = vld [vmem:[#allocation2 + $0x149] sm:$0xff]
      %v858 = vld [vmem:[#allocation2 + $0x151] sm:$0xff]
      %v859 = vld [vmem:[#allocation2 + $0x169] sm:$0xff]
      %v860 = vld [vmem:[#allocation2 + $0x171] sm:$0xff]
      %v861 = vld [vmem:[#allocation2 + $0x189] sm:$0xff]
      %v862 = vld [vmem:[#allocation2 + $0x191] sm:$0xff]
      %v863 = vld [vmem:[#allocation2 + $0x1a9] sm:$0xff]
      %v864 = vld [vmem:[#allocation2 + $0x1b1] sm:$0xff]
      %v865 = vld [vmem:[#allocation2 + $0x1c9] sm:$0xff]
      %v866 = vld [vmem:[#allocation2 + $0x1d1] sm:$0xff]
      %v867 = vld [vmem:[#allocation2 + $0x1e9] sm:$0xff]
      %v868 = vld [vmem:[#allocation2 + $0x1f1] sm:$0xff]
      %v869 = vld [vmem:[%s1 + $0x2] sm:$0x1]
      %v870 = vlaneseq
      %v871 = vshrl.u32 %v870, 7
      %v872 = vsub.s32 0, %v871
      %v873 = vrot.slane %v869, %v872
      %v874 = vmul.f32 %v837, %v873
      %v875 = vmul.f32 %v838, %v873
      %v876 = vmul.f32 %v839, %v873
      %v877 = vmul.f32 %v840, %v873
      %v878 = vmul.f32 %v841, %v873
      %v879 = vmul.f32 %v842, %v873
      %v880 = vmul.f32 %v843, %v873
      %v881 = vmul.f32 %v844, %v873
      %v882 = vmul.f32 %v845, %v873
      %v883 = vmul.f32 %v846, %v873
      %v884 = vmul.f32 %v847, %v873
      %v885 = vmul.f32 %v848, %v873
      %v886 = vmul.f32 %v849, %v873
      %v887 = vmul.f32 %v850, %v873
      %v888 = vmul.f32 %v851, %v873
      %v889 = vmul.f32 %v852, %v873
      %v890 = vmul.f32 %v853, %v873
      %v891 = vmul.f32 %v854, %v873
      %v892 = vmul.f32 %v855, %v873
      %v893 = vmul.f32 %v856, %v873
      %v894 = vmul.f32 %v857, %v873
      %v895 = vmul.f32 %v858, %v873
      %v896 = vmul.f32 %v859, %v873
      %v897 = vmul.f32 %v860, %v873
      %v898 = vmul.f32 %v861, %v873
      %v899 = vmul.f32 %v862, %v873
      %v900 = vmul.f32 %v863, %v873
      %v901 = vmul.f32 %v864, %v873
      %v902 = vmul.f32 %v865, %v873
      %v903 = vmul.f32 %v866, %v873
      %v904 = vmul.f32 %v867, %v873
      %v905 = vmul.f32 %v868, %v873
      %v906 = vadd.f32 %v805, %v874
      %v907 = vadd.f32 %v806, %v875
      %v908 = vadd.f32 %v807, %v876
      %v909 = vadd.f32 %v808, %v877
      %v910 = vadd.f32 %v809, %v878
      %v911 = vadd.f32 %v810, %v879
      %v912 = vadd.f32 %v811, %v880
      %v913 = vadd.f32 %v812, %v881
      %v914 = vadd.f32 %v813, %v882
      %v915 = vadd.f32 %v814, %v883
      %v916 = vadd.f32 %v815, %v884
      %v917 = vadd.f32 %v816, %v885
      %v918 = vadd.f32 %v817, %v886
      %v919 = vadd.f32 %v818, %v887
      %v920 = vadd.f32 %v819, %v888
      %v921 = vadd.f32 %v820, %v889
      %v922 = vadd.f32 %v821, %v890
      %v923 = vadd.f32 %v822, %v891
      %v924 = vadd.f32 %v823, %v892
      %v925 = vadd.f32 %v824, %v893
      %v926 = vadd.f32 %v825, %v894
      %v927 = vadd.f32 %v826, %v895
      %v928 = vadd.f32 %v827, %v896
      %v929 = vadd.f32 %v828, %v897
      %v930 = vadd.f32 %v829, %v898
      %v931 = vadd.f32 %v830, %v899
      %v932 = vadd.f32 %v831, %v900
      %v933 = vadd.f32 %v832, %v901
      %v934 = vadd.f32 %v833, %v902
      %v935 = vadd.f32 %v834, %v903
      %v936 = vadd.f32 %v835, %v904
      %v937 = vadd.f32 %v836, %v905
      %v938 = vld [vmem:[%s634 + $0x7] sm:$0xff]
      %v939 = vld [vmem:[%s634 + $0xf] sm:$0xff]
      %v940 = vld [vmem:[%s634 + $0x27] sm:$0xff]
      %v941 = vld [vmem:[%s634 + $0x2f] sm:$0xff]
      %v942 = vld [vmem:[%s634 + $0x47] sm:$0xff]
      %v943 = vld [vmem:[%s634 + $0x4f] sm:$0xff]
      %v944 = vld [vmem:[%s634 + $0x67] sm:$0xff]
      %v945 = vld [vmem:[%s634 + $0x6f] sm:$0xff]
      %v946 = vld [vmem:[%s634 + $0x87] sm:$0xff]
      %v947 = vld [vmem:[%s634 + $0x8f] sm:$0xff]
      %v948 = vld [vmem:[%s634 + $0xa7] sm:$0xff]
      %v949 = vld [vmem:[%s634 + $0xaf] sm:$0xff]
      %v950 = vld [vmem:[%s634 + $0xc7] sm:$0xff]
      %v951 = vld [vmem:[%s634 + $0xcf] sm:$0xff]
      %v952 = vld [vmem:[%s634 + $0xe7] sm:$0xff]
      %v953 = vld [vmem:[%s634 + $0xef] sm:$0xff]
      %v954 = vld [vmem:[%s634 + $0x107] sm:$0xff]
      %v955 = vld [vmem:[%s634 + $0x10f] sm:$0xff]
      %v956 = vld [vmem:[%s634 + $0x127] sm:$0xff]
      %v957 = vld [vmem:[%s634 + $0x12f] sm:$0xff]
      %v958 = vld [vmem:[%s634 + $0x147] sm:$0xff]
      %v959 = vld [vmem:[%s634 + $0x14f] sm:$0xff]
      %v960 = vld [vmem:[%s634 + $0x167] sm:$0xff]
      %v961 = vld [vmem:[%s634 + $0x16f] sm:$0xff]
      %v962 = vld [vmem:[%s634 + $0x187] sm:$0xff]
      %v963 = vld [vmem:[%s634 + $0x18f] sm:$0xff]
      %v964 = vld [vmem:[%s634 + $0x1a7] sm:$0xff]
      %v965 = vld [vmem:[%s634 + $0x1af] sm:$0xff]
      %v966 = vld [vmem:[%s634 + $0x1c7] sm:$0xff]
      %v967 = vld [vmem:[%s634 + $0x1cf] sm:$0xff]
      %v968 = vld [vmem:[%s634 + $0x1e7] sm:$0xff]
      %v969 = vld [vmem:[%s634 + $0x1ef] sm:$0xff]
      %v970 = vld [vmem:[%s1 + $0x3] sm:$0x1]
      %v971 = vlaneseq
      %v972 = vshrl.u32 %v971, 7
      %v973 = vsub.s32 0, %v972
      %v974 = vrot.slane %v970, %v973
      %v975 = vmul.f32 %v938, %v974
      %v976 = vmul.f32 %v939, %v974
      %v977 = vmul.f32 %v940, %v974
      %v978 = vmul.f32 %v941, %v974
      %v979 = vmul.f32 %v942, %v974
      %v980 = vmul.f32 %v943, %v974
      %v981 = vmul.f32 %v944, %v974
      %v982 = vmul.f32 %v945, %v974
      %v983 = vmul.f32 %v946, %v974
      %v984 = vmul.f32 %v947, %v974
      %v985 = vmul.f32 %v948, %v974
      %v986 = vmul.f32 %v949, %v974
      %v987 = vmul.f32 %v950, %v974
      %v988 = vmul.f32 %v951, %v974
      %v989 = vmul.f32 %v952, %v974
      %v990 = vmul.f32 %v953, %v974
      %v991 = vmul.f32 %v954, %v974
      %v992 = vmul.f32 %v955, %v974
      %v993 = vmul.f32 %v956, %v974
      %v994 = vmul.f32 %v957, %v974
      %v995 = vmul.f32 %v958, %v974
      %v996 = vmul.f32 %v959, %v974
      %v997 = vmul.f32 %v960, %v974
      %v998 = vmul.f32 %v961, %v974
      %v999 = vmul.f32 %v962, %v974
      %v1000 = vmul.f32 %v963, %v974
      %v1001 = vmul.f32 %v964, %v974
      %v1002 = vmul.f32 %v965, %v974
      %v1003 = vmul.f32 %v966, %v974
      %v1004 = vmul.f32 %v967, %v974
      %v1005 = vmul.f32 %v968, %v974
      %v1006 = vmul.f32 %v969, %v974
      %v1007 = vadd.f32 %v906, %v975
      %v1008 = vadd.f32 %v907, %v976
      %v1009 = vadd.f32 %v908, %v977
      %v1010 = vadd.f32 %v909, %v978
      %v1011 = vadd.f32 %v910, %v979
      %v1012 = vadd.f32 %v911, %v980
      %v1013 = vadd.f32 %v912, %v981
      %v1014 = vadd.f32 %v913, %v982
      %v1015 = vadd.f32 %v914, %v983
      %v1016 = vadd.f32 %v915, %v984
      %v1017 = vadd.f32 %v916, %v985
      %v1018 = vadd.f32 %v917, %v986
      %v1019 = vadd.f32 %v918, %v987
      %v1020 = vadd.f32 %v919, %v988
      %v1021 = vadd.f32 %v920, %v989
      %v1022 = vadd.f32 %v921, %v990
      %v1023 = vadd.f32 %v922, %v991
      %v1024 = vadd.f32 %v923, %v992
      %v1025 = vadd.f32 %v924, %v993
      %v1026 = vadd.f32 %v925, %v994
      %v1027 = vadd.f32 %v926, %v995
      %v1028 = vadd.f32 %v927, %v996
      %v1029 = vadd.f32 %v928, %v997
      %v1030 = vadd.f32 %v929, %v998
      %v1031 = vadd.f32 %v930, %v999
      %v1032 = vadd.f32 %v931, %v1000
      %v1033 = vadd.f32 %v932, %v1001
      %v1034 = vadd.f32 %v933, %v1002
      %v1035 = vadd.f32 %v934, %v1003
      %v1036 = vadd.f32 %v935, %v1004
      %v1037 = vadd.f32 %v936, %v1005
      %v1038 = vadd.f32 %v937, %v1006
      %v1039 = vld [vmem:[%s634 + $0x8] sm:$0xff]
      %v1040 = vld [vmem:[%s634 + $0x10] sm:$0xff]
      %v1041 = vld [vmem:[%s634 + $0x28] sm:$0xff]
      %v1042 = vld [vmem:[%s634 + $0x30] sm:$0xff]
      %v1043 = vld [vmem:[%s634 + $0x48] sm:$0xff]
      %v1044 = vld [vmem:[%s634 + $0x50] sm:$0xff]
      %v1045 = vld [vmem:[%s634 + $0x68] sm:$0xff]
      %v1046 = vld [vmem:[%s634 + $0x70] sm:$0xff]
      %v1047 = vld [vmem:[%s634 + $0x88] sm:$0xff]
      %v1048 = vld [vmem:[%s634 + $0x90] sm:$0xff]
      %v1049 = vld [vmem:[%s634 + $0xa8] sm:$0xff]
      %v1050 = vld [vmem:[%s634 + $0xb0] sm:$0xff]
      %v1051 = vld [vmem:[%s634 + $0xc8] sm:$0xff]
      %v1052 = vld [vmem:[%s634 + $0xd0] sm:$0xff]
      %v1053 = vld [vmem:[%s634 + $0xe8] sm:$0xff]
      %v1054 = vld [vmem:[%s634 + $0xf0] sm:$0xff]
      %v1055 = vld [vmem:[%s634 + $0x108] sm:$0xff]
      %v1056 = vld [vmem:[%s634 + $0x110] sm:$0xff]
      %v1057 = vld [vmem:[%s634 + $0x128] sm:$0xff]
      %v1058 = vld [vmem:[%s634 + $0x130] sm:$0xff]
      %v1059 = vld [vmem:[%s634 + $0x148] sm:$0xff]
      %v1060 = vld [vmem:[%s634 + $0x150] sm:$0xff]
      %v1061 = vld [vmem:[%s634 + $0x168] sm:$0xff]
      %v1062 = vld [vmem:[%s634 + $0x170] sm:$0xff]
      %v1063 = vld [vmem:[%s634 + $0x188] sm:$0xff]
      %v1064 = vld [vmem:[%s634 + $0x190] sm:$0xff]
      %v1065 = vld [vmem:[%s634 + $0x1a8] sm:$0xff]
      %v1066 = vld [vmem:[%s634 + $0x1b0] sm:$0xff]
      %v1067 = vld [vmem:[%s634 + $0x1c8] sm:$0xff]
      %v1068 = vld [vmem:[%s634 + $0x1d0] sm:$0xff]
      %v1069 = vld [vmem:[%s634 + $0x1e8] sm:$0xff]
      %v1070 = vld [vmem:[%s634 + $0x1f0] sm:$0xff]
      %v1071 = vld [vmem:[%s1 + $0x4] sm:$0x1]
      %v1072 = vlaneseq
      %v1073 = vshrl.u32 %v1072, 7
      %v1074 = vsub.s32 0, %v1073
      %v1075 = vrot.slane %v1071, %v1074
      %v1076 = vmul.f32 %v1039, %v1075
      %v1077 = vmul.f32 %v1040, %v1075
      %v1078 = vmul.f32 %v1041, %v1075
      %v1079 = vmul.f32 %v1042, %v1075
      %v1080 = vmul.f32 %v1043, %v1075
      %v1081 = vmul.f32 %v1044, %v1075
      %v1082 = vmul.f32 %v1045, %v1075
      %v1083 = vmul.f32 %v1046, %v1075
      %v1084 = vmul.f32 %v1047, %v1075
      %v1085 = vmul.f32 %v1048, %v1075
      %v1086 = vmul.f32 %v1049, %v1075
      %v1087 = vmul.f32 %v1050, %v1075
      %v1088 = vmul.f32 %v1051, %v1075
      %v1089 = vmul.f32 %v1052, %v1075
      %v1090 = vmul.f32 %v1053, %v1075
      %v1091 = vmul.f32 %v1054, %v1075
      %v1092 = vmul.f32 %v1055, %v1075
      %v1093 = vmul.f32 %v1056, %v1075
      %v1094 = vmul.f32 %v1057, %v1075
      %v1095 = vmul.f32 %v1058, %v1075
      %v1096 = vmul.f32 %v1059, %v1075
      %v1097 = vmul.f32 %v1060, %v1075
      %v1098 = vmul.f32 %v1061, %v1075
      %v1099 = vmul.f32 %v1062, %v1075
      %v1100 = vmul.f32 %v1063, %v1075
      %v1101 = vmul.f32 %v1064, %v1075
      %v1102 = vmul.f32 %v1065, %v1075
      %v1103 = vmul.f32 %v1066, %v1075
      %v1104 = vmul.f32 %v1067, %v1075
      %v1105 = vmul.f32 %v1068, %v1075
      %v1106 = vmul.f32 %v1069, %v1075
      %v1107 = vmul.f32 %v1070, %v1075
      %v1108 = vadd.f32 %v1007, %v1076
      %v1109 = vadd.f32 %v1008, %v1077
      %v1110 = vadd.f32 %v1009, %v1078
      %v1111 = vadd.f32 %v1010, %v1079
      %v1112 = vadd.f32 %v1011, %v1080
      %v1113 = vadd.f32 %v1012, %v1081
      %v1114 = vadd.f32 %v1013, %v1082
      %v1115 = vadd.f32 %v1014, %v1083
      %v1116 = vadd.f32 %v1015, %v1084
      %v1117 = vadd.f32 %v1016, %v1085
      %v1118 = vadd.f32 %v1017, %v1086
      %v1119 = vadd.f32 %v1018, %v1087
      %v1120 = vadd.f32 %v1019, %v1088
      %v1121 = vadd.f32 %v1020, %v1089
      %v1122 = vadd.f32 %v1021, %v1090
      %v1123 = vadd.f32 %v1022, %v1091
      %v1124 = vadd.f32 %v1023, %v1092
      %v1125 = vadd.f32 %v1024, %v1093
      %v1126 = vadd.f32 %v1025, %v1094
      %v1127 = vadd.f32 %v1026, %v1095
      %v1128 = vadd.f32 %v1027, %v1096
      %v1129 = vadd.f32 %v1028, %v1097
      %v1130 = vadd.f32 %v1029, %v1098
      %v1131 = vadd.f32 %v1030, %v1099
      %v1132 = vadd.f32 %v1031, %v1100
      %v1133 = vadd.f32 %v1032, %v1101
      %v1134 = vadd.f32 %v1033, %v1102
      %v1135 = vadd.f32 %v1034, %v1103
      %v1136 = vadd.f32 %v1035, %v1104
      %v1137 = vadd.f32 %v1036, %v1105
      %v1138 = vadd.f32 %v1037, %v1106
      %v1139 = vadd.f32 %v1038, %v1107
      %v1140 = vld [vmem:[%s634 + $0x9] sm:$0xff]
      %v1141 = vld [vmem:[%s634 + $0x11] sm:$0xff]
      %v1142 = vld [vmem:[%s634 + $0x29] sm:$0xff]
      %v1143 = vld [vmem:[%s634 + $0x31] sm:$0xff]
      %v1144 = vld [vmem:[%s634 + $0x49] sm:$0xff]
      %v1145 = vld [vmem:[%s634 + $0x51] sm:$0xff]
      %v1146 = vld [vmem:[%s634 + $0x69] sm:$0xff]
      %v1147 = vld [vmem:[%s634 + $0x71] sm:$0xff]
      %v1148 = vld [vmem:[%s634 + $0x89] sm:$0xff]
      %v1149 = vld [vmem:[%s634 + $0x91] sm:$0xff]
      %v1150 = vld [vmem:[%s634 + $0xa9] sm:$0xff]
      %v1151 = vld [vmem:[%s634 + $0xb1] sm:$0xff]
      %v1152 = vld [vmem:[%s634 + $0xc9] sm:$0xff]
      %v1153 = vld [vmem:[%s634 + $0xd1] sm:$0xff]
      %v1154 = vld [vmem:[%s634 + $0xe9] sm:$0xff]
      %v1155 = vld [vmem:[%s634 + $0xf1] sm:$0xff]
      %v1156 = vld [vmem:[%s634 + $0x109] sm:$0xff]
      %v1157 = vld [vmem:[%s634 + $0x111] sm:$0xff]
      %v1158 = vld [vmem:[%s634 + $0x129] sm:$0xff]
      %v1159 = vld [vmem:[%s634 + $0x131] sm:$0xff]
      %v1160 = vld [vmem:[%s634 + $0x149] sm:$0xff]
      %v1161 = vld [vmem:[%s634 + $0x151] sm:$0xff]
      %v1162 = vld [vmem:[%s634 + $0x169] sm:$0xff]
      %v1163 = vld [vmem:[%s634 + $0x171] sm:$0xff]
      %v1164 = vld [vmem:[%s634 + $0x189] sm:$0xff]
      %v1165 = vld [vmem:[%s634 + $0x191] sm:$0xff]
      %v1166 = vld [vmem:[%s634 + $0x1a9] sm:$0xff]
      %v1167 = vld [vmem:[%s634 + $0x1b1] sm:$0xff]
      %v1168 = vld [vmem:[%s634 + $0x1c9] sm:$0xff]
      %v1169 = vld [vmem:[%s634 + $0x1d1] sm:$0xff]
      %v1170 = vld [vmem:[%s634 + $0x1e9] sm:$0xff]
      %v1171 = vld [vmem:[%s634 + $0x1f1] sm:$0xff]
      %v1172 = vld [vmem:[%s1 + $0x5] sm:$0x1]
      %v1173 = vlaneseq
      %v1174 = vshrl.u32 %v1173, 7
      %v1175 = vsub.s32 0, %v1174
      %v1176 = vrot.slane %v1172, %v1175
      %v1177 = vmul.f32 %v1140, %v1176
      %v1178 = vmul.f32 %v1141, %v1176
      %v1179 = vmul.f32 %v1142, %v1176
      %v1180 = vmul.f32 %v1143, %v1176
      %v1181 = vmul.f32 %v1144, %v1176
      %v1182 = vmul.f32 %v1145, %v1176
      %v1183 = vmul.f32 %v1146, %v1176
      %v1184 = vmul.f32 %v1147, %v1176
      %v1185 = vmul.f32 %v1148, %v1176
      %v1186 = vmul.f32 %v1149, %v1176
      %v1187 = vmul.f32 %v1150, %v1176
      %v1188 = vmul.f32 %v1151, %v1176
      %v1189 = vmul.f32 %v1152, %v1176
      %v1190 = vmul.f32 %v1153, %v1176
      %v1191 = vmul.f32 %v1154, %v1176
      %v1192 = vmul.f32 %v1155, %v1176
      %v1193 = vmul.f32 %v1156, %v1176
      %v1194 = vmul.f32 %v1157, %v1176
      %v1195 = vmul.f32 %v1158, %v1176
      %v1196 = vmul.f32 %v1159, %v1176
      %v1197 = vmul.f32 %v1160, %v1176
      %v1198 = vmul.f32 %v1161, %v1176
      %v1199 = vmul.f32 %v1162, %v1176
      %v1200 = vmul.f32 %v1163, %v1176
      %v1201 = vmul.f32 %v1164, %v1176
      %v1202 = vmul.f32 %v1165, %v1176
      %v1203 = vmul.f32 %v1166, %v1176
      %v1204 = vmul.f32 %v1167, %v1176
      %v1205 = vmul.f32 %v1168, %v1176
      %v1206 = vmul.f32 %v1169, %v1176
      %v1207 = vmul.f32 %v1170, %v1176
      %v1208 = vmul.f32 %v1171, %v1176
      %v1209 = vadd.f32 %v1108, %v1177
      %v1210 = vadd.f32 %v1109, %v1178
      %v1211 = vadd.f32 %v1110, %v1179
      %v1212 = vadd.f32 %v1111, %v1180
      %v1213 = vadd.f32 %v1112, %v1181
      %v1214 = vadd.f32 %v1113, %v1182
      %v1215 = vadd.f32 %v1114, %v1183
      %v1216 = vadd.f32 %v1115, %v1184
      %v1217 = vadd.f32 %v1116, %v1185
      %v1218 = vadd.f32 %v1117, %v1186
      %v1219 = vadd.f32 %v1118, %v1187
      %v1220 = vadd.f32 %v1119, %v1188
      %v1221 = vadd.f32 %v1120, %v1189
      %v1222 = vadd.f32 %v1121, %v1190
      %v1223 = vadd.f32 %v1122, %v1191
      %v1224 = vadd.f32 %v1123, %v1192
      %v1225 = vadd.f32 %v1124, %v1193
      %v1226 = vadd.f32 %v1125, %v1194
      %v1227 = vadd.f32 %v1126, %v1195
      %v1228 = vadd.f32 %v1127, %v1196
      %v1229 = vadd.f32 %v1128, %v1197
      %v1230 = vadd.f32 %v1129, %v1198
      %v1231 = vadd.f32 %v1130, %v1199
      %v1232 = vadd.f32 %v1131, %v1200
      %v1233 = vadd.f32 %v1132, %v1201
      %v1234 = vadd.f32 %v1133, %v1202
      %v1235 = vadd.f32 %v1134, %v1203
      %v1236 = vadd.f32 %v1135, %v1204
      %v1237 = vadd.f32 %v1136, %v1205
      %v1238 = vadd.f32 %v1137, %v1206
      %v1239 = vadd.f32 %v1138, %v1207
      %v1240 = vadd.f32 %v1139, %v1208
      %s1241 = scalar_lea.vmem [#allocation2], 64
      %v1242 = vld [vmem:[%s1241 + $0x7] sm:$0xff]
      %v1243 = vld [vmem:[%s1241 + $0xf] sm:$0xff]
      %v1244 = vld [vmem:[%s1241 + $0x27] sm:$0xff]
      %v1245 = vld [vmem:[%s1241 + $0x2f] sm:$0xff]
      %v1246 = vld [vmem:[%s1241 + $0x47] sm:$0xff]
      %v1247 = vld [vmem:[%s1241 + $0x4f] sm:$0xff]
      %v1248 = vld [vmem:[%s1241 + $0x67] sm:$0xff]
      %v1249 = vld [vmem:[%s1241 + $0x6f] sm:$0xff]
      %v1250 = vld [vmem:[%s1241 + $0x87] sm:$0xff]
      %v1251 = vld [vmem:[%s1241 + $0x8f] sm:$0xff]
      %v1252 = vld [vmem:[%s1241 + $0xa7] sm:$0xff]
      %v1253 = vld [vmem:[%s1241 + $0xaf] sm:$0xff]
      %v1254 = vld [vmem:[%s1241 + $0xc7] sm:$0xff]
      %v1255 = vld [vmem:[%s1241 + $0xcf] sm:$0xff]
      %v1256 = vld [vmem:[%s1241 + $0xe7] sm:$0xff]
      %v1257 = vld [vmem:[%s1241 + $0xef] sm:$0xff]
      %v1258 = vld [vmem:[%s1241 + $0x107] sm:$0xff]
      %v1259 = vld [vmem:[%s1241 + $0x10f] sm:$0xff]
      %v1260 = vld [vmem:[%s1241 + $0x127] sm:$0xff]
      %v1261 = vld [vmem:[%s1241 + $0x12f] sm:$0xff]
      %v1262 = vld [vmem:[%s1241 + $0x147] sm:$0xff]
      %v1263 = vld [vmem:[%s1241 + $0x14f] sm:$0xff]
      %v1264 = vld [vmem:[%s1241 + $0x167] sm:$0xff]
      %v1265 = vld [vmem:[%s1241 + $0x16f] sm:$0xff]
      %v1266 = vld [vmem:[%s1241 + $0x187] sm:$0xff]
      %v1267 = vld [vmem:[%s1241 + $0x18f] sm:$0xff]
      %v1268 = vld [vmem:[%s1241 + $0x1a7] sm:$0xff]
      %v1269 = vld [vmem:[%s1241 + $0x1af] sm:$0xff]
      %v1270 = vld [vmem:[%s1241 + $0x1c7] sm:$0xff]
      %v1271 = vld [vmem:[%s1241 + $0x1cf] sm:$0xff]
      %v1272 = vld [vmem:[%s1241 + $0x1e7] sm:$0xff]
      %v1273 = vld [vmem:[%s1241 + $0x1ef] sm:$0xff]
      %v1274 = vld [vmem:[%s1 + $0x6] sm:$0x1]
      %v1275 = vlaneseq
      %v1276 = vshrl.u32 %v1275, 7
      %v1277 = vsub.s32 0, %v1276
      %v1278 = vrot.slane %v1274, %v1277
      %v1279 = vmul.f32 %v1242, %v1278
      %v1280 = vmul.f32 %v1243, %v1278
      %v1281 = vmul.f32 %v1244, %v1278
      %v1282 = vmul.f32 %v1245, %v1278
      %v1283 = vmul.f32 %v1246, %v1278
      %v1284 = vmul.f32 %v1247, %v1278
      %v1285 = vmul.f32 %v1248, %v1278
      %v1286 = vmul.f32 %v1249, %v1278
      %v1287 = vmul.f32 %v1250, %v1278
      %v1288 = vmul.f32 %v1251, %v1278
      %v1289 = vmul.f32 %v1252, %v1278
      %v1290 = vmul.f32 %v1253, %v1278
      %v1291 = vmul.f32 %v1254, %v1278
      %v1292 = vmul.f32 %v1255, %v1278
      %v1293 = vmul.f32 %v1256, %v1278
      %v1294 = vmul.f32 %v1257, %v1278
      %v1295 = vmul.f32 %v1258, %v1278
      %v1296 = vmul.f32 %v1259, %v1278
      %v1297 = vmul.f32 %v1260, %v1278
      %v1298 = vmul.f32 %v1261, %v1278
      %v1299 = vmul.f32 %v1262, %v1278
      %v1300 = vmul.f32 %v1263, %v1278
      %v1301 = vmul.f32 %v1264, %v1278
      %v1302 = vmul.f32 %v1265, %v1278
      %v1303 = vmul.f32 %v1266, %v1278
      %v1304 = vmul.f32 %v1267, %v1278
      %v1305 = vmul.f32 %v1268, %v1278
      %v1306 = vmul.f32 %v1269, %v1278
      %v1307 = vmul.f32 %v1270, %v1278
      %v1308 = vmul.f32 %v1271, %v1278
      %v1309 = vmul.f32 %v1272, %v1278
      %v1310 = vmul.f32 %v1273, %v1278
      %v1311 = vadd.f32 %v1209, %v1279
      %v1312 = vadd.f32 %v1210, %v1280
      %v1313 = vadd.f32 %v1211, %v1281
      %v1314 = vadd.f32 %v1212, %v1282
      %v1315 = vadd.f32 %v1213, %v1283
      %v1316 = vadd.f32 %v1214, %v1284
      %v1317 = vadd.f32 %v1215, %v1285
      %v1318 = vadd.f32 %v1216, %v1286
      %v1319 = vadd.f32 %v1217, %v1287
      %v1320 = vadd.f32 %v1218, %v1288
      %v1321 = vadd.f32 %v1219, %v1289
      %v1322 = vadd.f32 %v1220, %v1290
      %v1323 = vadd.f32 %v1221, %v1291
      %v1324 = vadd.f32 %v1222, %v1292
      %v1325 = vadd.f32 %v1223, %v1293
      %v1326 = vadd.f32 %v1224, %v1294
      %v1327 = vadd.f32 %v1225, %v1295
      %v1328 = vadd.f32 %v1226, %v1296
      %v1329 = vadd.f32 %v1227, %v1297
      %v1330 = vadd.f32 %v1228, %v1298
      %v1331 = vadd.f32 %v1229, %v1299
      %v1332 = vadd.f32 %v1230, %v1300
      %v1333 = vadd.f32 %v1231, %v1301
      %v1334 = vadd.f32 %v1232, %v1302
      %v1335 = vadd.f32 %v1233, %v1303
      %v1336 = vadd.f32 %v1234, %v1304
      %v1337 = vadd.f32 %v1235, %v1305
      %v1338 = vadd.f32 %v1236, %v1306
      %v1339 = vadd.f32 %v1237, %v1307
      %v1340 = vadd.f32 %v1238, %v1308
      %v1341 = vadd.f32 %v1239, %v1309
      %v1342 = vadd.f32 %v1240, %v1310
      %v1343 = vld [vmem:[%s1241 + $0x8] sm:$0xff]
      %v1344 = vld [vmem:[%s1241 + $0x10] sm:$0xff]
      %v1345 = vld [vmem:[%s1241 + $0x28] sm:$0xff]
      %v1346 = vld [vmem:[%s1241 + $0x30] sm:$0xff]
      %v1347 = vld [vmem:[%s1241 + $0x48] sm:$0xff]
      %v1348 = vld [vmem:[%s1241 + $0x50] sm:$0xff]
      %v1349 = vld [vmem:[%s1241 + $0x68] sm:$0xff]
      %v1350 = vld [vmem:[%s1241 + $0x70] sm:$0xff]
      %v1351 = vld [vmem:[%s1241 + $0x88] sm:$0xff]
      %v1352 = vld [vmem:[%s1241 + $0x90] sm:$0xff]
      %v1353 = vld [vmem:[%s1241 + $0xa8] sm:$0xff]
      %v1354 = vld [vmem:[%s1241 + $0xb0] sm:$0xff]
      %v1355 = vld [vmem:[%s1241 + $0xc8] sm:$0xff]
      %v1356 = vld [vmem:[%s1241 + $0xd0] sm:$0xff]
      %v1357 = vld [vmem:[%s1241 + $0xe8] sm:$0xff]
      %v1358 = vld [vmem:[%s1241 + $0xf0] sm:$0xff]
      %v1359 = vld [vmem:[%s1241 + $0x108] sm:$0xff]
      %v1360 = vld [vmem:[%s1241 + $0x110] sm:$0xff]
      %v1361 = vld [vmem:[%s1241 + $0x128] sm:$0xff]
      %v1362 = vld [vmem:[%s1241 + $0x130] sm:$0xff]
      %v1363 = vld [vmem:[%s1241 + $0x148] sm:$0xff]
      %v1364 = vld [vmem:[%s1241 + $0x150] sm:$0xff]
      %v1365 = vld [vmem:[%s1241 + $0x168] sm:$0xff]
      %v1366 = vld [vmem:[%s1241 + $0x170] sm:$0xff]
      %v1367 = vld [vmem:[%s1241 + $0x188] sm:$0xff]
      %v1368 = vld [vmem:[%s1241 + $0x190] sm:$0xff]
      %v1369 = vld [vmem:[%s1241 + $0x1a8] sm:$0xff]
      %v1370 = vld [vmem:[%s1241 + $0x1b0] sm:$0xff]
      %v1371 = vld [vmem:[%s1241 + $0x1c8] sm:$0xff]
      %v1372 = vld [vmem:[%s1241 + $0x1d0] sm:$0xff]
      %v1373 = vld [vmem:[%s1241 + $0x1e8] sm:$0xff]
      %v1374 = vld [vmem:[%s1241 + $0x1f0] sm:$0xff]
      %v1375 = vld [vmem:[%s1 + $0x7] sm:$0x1]
      %v1376 = vlaneseq
      %v1377 = vshrl.u32 %v1376, 7
      %v1378 = vsub.s32 0, %v1377
      %v1379 = vrot.slane %v1375, %v1378
      %v1380 = vmul.f32 %v1343, %v1379
      %v1381 = vmul.f32 %v1344, %v1379
      %v1382 = vmul.f32 %v1345, %v1379
      %v1383 = vmul.f32 %v1346, %v1379
      %v1384 = vmul.f32 %v1347, %v1379
      %v1385 = vmul.f32 %v1348, %v1379
      %v1386 = vmul.f32 %v1349, %v1379
      %v1387 = vmul.f32 %v1350, %v1379
      %v1388 = vmul.f32 %v1351, %v1379
      %v1389 = vmul.f32 %v1352, %v1379
      %v1390 = vmul.f32 %v1353, %v1379
      %v1391 = vmul.f32 %v1354, %v1379
      %v1392 = vmul.f32 %v1355, %v1379
      %v1393 = vmul.f32 %v1356, %v1379
      %v1394 = vmul.f32 %v1357, %v1379
      %v1395 = vmul.f32 %v1358, %v1379
      %v1396 = vmul.f32 %v1359, %v1379
      %v1397 = vmul.f32 %v1360, %v1379
      %v1398 = vmul.f32 %v1361, %v1379
      %v1399 = vmul.f32 %v1362, %v1379
      %v1400 = vmul.f32 %v1363, %v1379
      %v1401 = vmul.f32 %v1364, %v1379
      %v1402 = vmul.f32 %v1365, %v1379
      %v1403 = vmul.f32 %v1366, %v1379
      %v1404 = vmul.f32 %v1367, %v1379
      %v1405 = vmul.f32 %v1368, %v1379
      %v1406 = vmul.f32 %v1369, %v1379
      %v1407 = vmul.f32 %v1370, %v1379
      %v1408 = vmul.f32 %v1371, %v1379
      %v1409 = vmul.f32 %v1372, %v1379
      %v1410 = vmul.f32 %v1373, %v1379
      %v1411 = vmul.f32 %v1374, %v1379
      %v1412 = vadd.f32 %v1311, %v1380
      %v1413 = vadd.f32 %v1312, %v1381
      %v1414 = vadd.f32 %v1313, %v1382
      %v1415 = vadd.f32 %v1314, %v1383
      %v1416 = vadd.f32 %v1315, %v1384
      %v1417 = vadd.f32 %v1316, %v1385
      %v1418 = vadd.f32 %v1317, %v1386
      %v1419 = vadd.f32 %v1318, %v1387
      %v1420 = vadd.f32 %v1319, %v1388
      %v1421 = vadd.f32 %v1320, %v1389
      %v1422 = vadd.f32 %v1321, %v1390
      %v1423 = vadd.f32 %v1322, %v1391
      %v1424 = vadd.f32 %v1323, %v1392
      %v1425 = vadd.f32 %v1324, %v1393
      %v1426 = vadd.f32 %v1325, %v1394
      %v1427 = vadd.f32 %v1326, %v1395
      %v1428 = vadd.f32 %v1327, %v1396
      %v1429 = vadd.f32 %v1328, %v1397
      %v1430 = vadd.f32 %v1329, %v1398
      %v1431 = vadd.f32 %v1330, %v1399
      %v1432 = vadd.f32 %v1331, %v1400
      %v1433 = vadd.f32 %v1332, %v1401
      %v1434 = vadd.f32 %v1333, %v1402
      %v1435 = vadd.f32 %v1334, %v1403
      %v1436 = vadd.f32 %v1335, %v1404
      %v1437 = vadd.f32 %v1336, %v1405
      %v1438 = vadd.f32 %v1337, %v1406
      %v1439 = vadd.f32 %v1338, %v1407
      %v1440 = vadd.f32 %v1339, %v1408
      %v1441 = vadd.f32 %v1340, %v1409
      %v1442 = vadd.f32 %v1341, %v1410
      %v1443 = vadd.f32 %v1342, %v1411
      %v1444 = vld [vmem:[%s1241 + $0x9] sm:$0xff]
      %v1445 = vld [vmem:[%s1241 + $0x11] sm:$0xff]
      %v1446 = vld [vmem:[%s1241 + $0x29] sm:$0xff]
      %v1447 = vld [vmem:[%s1241 + $0x31] sm:$0xff]
      %v1448 = vld [vmem:[%s1241 + $0x49] sm:$0xff]
      %v1449 = vld [vmem:[%s1241 + $0x51] sm:$0xff]
      %v1450 = vld [vmem:[%s1241 + $0x69] sm:$0xff]
      %v1451 = vld [vmem:[%s1241 + $0x71] sm:$0xff]
      %v1452 = vld [vmem:[%s1241 + $0x89] sm:$0xff]
      %v1453 = vld [vmem:[%s1241 + $0x91] sm:$0xff]
      %v1454 = vld [vmem:[%s1241 + $0xa9] sm:$0xff]
      %v1455 = vld [vmem:[%s1241 + $0xb1] sm:$0xff]
      %v1456 = vld [vmem:[%s1241 + $0xc9] sm:$0xff]
      %v1457 = vld [vmem:[%s1241 + $0xd1] sm:$0xff]
      %v1458 = vld [vmem:[%s1241 + $0xe9] sm:$0xff]
      %v1459 = vld [vmem:[%s1241 + $0xf1] sm:$0xff]
      %v1460 = vld [vmem:[%s1241 + $0x109] sm:$0xff]
      %v1461 = vld [vmem:[%s1241 + $0x111] sm:$0xff]
      %v1462 = vld [vmem:[%s1241 + $0x129] sm:$0xff]
      %v1463 = vld [vmem:[%s1241 + $0x131] sm:$0xff]
      %v1464 = vld [vmem:[%s1241 + $0x149] sm:$0xff]
      %v1465 = vld [vmem:[%s1241 + $0x151] sm:$0xff]
      %v1466 = vld [vmem:[%s1241 + $0x169] sm:$0xff]
      %v1467 = vld [vmem:[%s1241 + $0x171] sm:$0xff]
      %v1468 = vld [vmem:[%s1241 + $0x189] sm:$0xff]
      %v1469 = vld [vmem:[%s1241 + $0x191] sm:$0xff]
      %v1470 = vld [vmem:[%s1241 + $0x1a9] sm:$0xff]
      %v1471 = vld [vmem:[%s1241 + $0x1b1] sm:$0xff]
      %v1472 = vld [vmem:[%s1241 + $0x1c9] sm:$0xff]
      %v1473 = vld [vmem:[%s1241 + $0x1d1] sm:$0xff]
      %v1474 = vld [vmem:[%s1241 + $0x1e9] sm:$0xff]
      %v1475 = vld [vmem:[%s1241 + $0x1f1] sm:$0xff]
      %v1476 = vld [vmem:[%s1 + $0x8] sm:$0x1]
      %v1477 = vlaneseq
      %v1478 = vshrl.u32 %v1477, 7
      %v1479 = vsub.s32 0, %v1478
      %v1480 = vrot.slane %v1476, %v1479
      %v1481 = vmul.f32 %v1444, %v1480
      %v1482 = vmul.f32 %v1445, %v1480
      %v1483 = vmul.f32 %v1446, %v1480
      %v1484 = vmul.f32 %v1447, %v1480
      %v1485 = vmul.f32 %v1448, %v1480
      %v1486 = vmul.f32 %v1449, %v1480
      %v1487 = vmul.f32 %v1450, %v1480
      %v1488 = vmul.f32 %v1451, %v1480
      %v1489 = vmul.f32 %v1452, %v1480
      %v1490 = vmul.f32 %v1453, %v1480
      %v1491 = vmul.f32 %v1454, %v1480
      %v1492 = vmul.f32 %v1455, %v1480
      %v1493 = vmul.f32 %v1456, %v1480
      %v1494 = vmul.f32 %v1457, %v1480
      %v1495 = vmul.f32 %v1458, %v1480
      %v1496 = vmul.f32 %v1459, %v1480
      %v1497 = vmul.f32 %v1460, %v1480
      %v1498 = vmul.f32 %v1461, %v1480
      %v1499 = vmul.f32 %v1462, %v1480
      %v1500 = vmul.f32 %v1463, %v1480
      %v1501 = vmul.f32 %v1464, %v1480
      %v1502 = vmul.f32 %v1465, %v1480
      %v1503 = vmul.f32 %v1466, %v1480
      %v1504 = vmul.f32 %v1467, %v1480
      %v1505 = vmul.f32 %v1468, %v1480
      %v1506 = vmul.f32 %v1469, %v1480
      %v1507 = vmul.f32 %v1470, %v1480
      %v1508 = vmul.f32 %v1471, %v1480
      %v1509 = vmul.f32 %v1472, %v1480
      %v1510 = vmul.f32 %v1473, %v1480
      %v1511 = vmul.f32 %v1474, %v1480
      %v1512 = vmul.f32 %v1475, %v1480
      %v1513 = vadd.f32 %v1412, %v1481
      %v1514 = vadd.f32 %v1413, %v1482
      %v1515 = vadd.f32 %v1414, %v1483
      %v1516 = vadd.f32 %v1415, %v1484
      %v1517 = vadd.f32 %v1416, %v1485
      %v1518 = vadd.f32 %v1417, %v1486
      %v1519 = vadd.f32 %v1418, %v1487
      %v1520 = vadd.f32 %v1419, %v1488
      %v1521 = vadd.f32 %v1420, %v1489
      %v1522 = vadd.f32 %v1421, %v1490
      %v1523 = vadd.f32 %v1422, %v1491
      %v1524 = vadd.f32 %v1423, %v1492
      %v1525 = vadd.f32 %v1424, %v1493
      %v1526 = vadd.f32 %v1425, %v1494
      %v1527 = vadd.f32 %v1426, %v1495
      %v1528 = vadd.f32 %v1427, %v1496
      %v1529 = vadd.f32 %v1428, %v1497
      %v1530 = vadd.f32 %v1429, %v1498
      %v1531 = vadd.f32 %v1430, %v1499
      %v1532 = vadd.f32 %v1431, %v1500
      %v1533 = vadd.f32 %v1432, %v1501
      %v1534 = vadd.f32 %v1433, %v1502
      %v1535 = vadd.f32 %v1434, %v1503
      %v1536 = vadd.f32 %v1435, %v1504
      %v1537 = vadd.f32 %v1436, %v1505
      %v1538 = vadd.f32 %v1437, %v1506
      %v1539 = vadd.f32 %v1438, %v1507
      %v1540 = vadd.f32 %v1439, %v1508
      %v1541 = vadd.f32 %v1440, %v1509
      %v1542 = vadd.f32 %v1441, %v1510
      %v1543 = vadd.f32 %v1442, %v1511
      %v1544 = vadd.f32 %v1443, %v1512
      %v1545 = vld [vmem:[%s2] sm:$0x1]
      %v1546 = vlaneseq
      %v1547 = vshrl.u32 %v1546, 7
      %v1548 = vsub.s32 0, %v1547
      %v1549 = vrot.slane %v1545, %v1548
      %v1550 = vmul.f32 %v1513, %v1549
      %v1551 = vmul.f32 %v1514, %v1549
      %v1552 = vmul.f32 %v1515, %v1549
      %v1553 = vmul.f32 %v1516, %v1549
      %v1554 = vmul.f32 %v1517, %v1549
      %v1555 = vmul.f32 %v1518, %v1549
      %v1556 = vmul.f32 %v1519, %v1549
      %v1557 = vmul.f32 %v1520, %v1549
      %v1558 = vmul.f32 %v1521, %v1549
      %v1559 = vmul.f32 %v1522, %v1549
      %v1560 = vmul.f32 %v1523, %v1549
      %v1561 = vmul.f32 %v1524, %v1549
      %v1562 = vmul.f32 %v1525, %v1549
      %v1563 = vmul.f32 %v1526, %v1549
      %v1564 = vmul.f32 %v1527, %v1549
      %v1565 = vmul.f32 %v1528, %v1549
      %v1566 = vmul.f32 %v1529, %v1549
      %v1567 = vmul.f32 %v1530, %v1549
      %v1568 = vmul.f32 %v1531, %v1549
      %v1569 = vmul.f32 %v1532, %v1549
      %v1570 = vmul.f32 %v1533, %v1549
      %v1571 = vmul.f32 %v1534, %v1549
      %v1572 = vmul.f32 %v1535, %v1549
      %v1573 = vmul.f32 %v1536, %v1549
      %v1574 = vmul.f32 %v1537, %v1549
      %v1575 = vmul.f32 %v1538, %v1549
      %v1576 = vmul.f32 %v1539, %v1549
      %v1577 = vmul.f32 %v1540, %v1549
      %v1578 = vmul.f32 %v1541, %v1549
      %v1579 = vmul.f32 %v1542, %v1549
      %v1580 = vmul.f32 %v1543, %v1549
      %v1581 = vmul.f32 %v1544, %v1549
      %v1582 = vld [vmem:[%s2 + $0x1] sm:$0x1]
      %v1583 = vlaneseq
      %v1584 = vshrl.u32 %v1583, 7
      %v1585 = vsub.s32 0, %v1584
      %v1586 = vrot.slane %v1582, %v1585
      %v1587 = vadd.f32 %v1550, %v1586
      %v1588 = vadd.f32 %v1551, %v1586
      %v1589 = vadd.f32 %v1552, %v1586
      %v1590 = vadd.f32 %v1553, %v1586
      %v1591 = vadd.f32 %v1554, %v1586
      %v1592 = vadd.f32 %v1555, %v1586
      %v1593 = vadd.f32 %v1556, %v1586
      %v1594 = vadd.f32 %v1557, %v1586
      %v1595 = vadd.f32 %v1558, %v1586
      %v1596 = vadd.f32 %v1559, %v1586
      %v1597 = vadd.f32 %v1560, %v1586
      %v1598 = vadd.f32 %v1561, %v1586
      %v1599 = vadd.f32 %v1562, %v1586
      %v1600 = vadd.f32 %v1563, %v1586
      %v1601 = vadd.f32 %v1564, %v1586
      %v1602 = vadd.f32 %v1565, %v1586
      %v1603 = vadd.f32 %v1566, %v1586
      %v1604 = vadd.f32 %v1567, %v1586
      %v1605 = vadd.f32 %v1568, %v1586
      %v1606 = vadd.f32 %v1569, %v1586
      %v1607 = vadd.f32 %v1570, %v1586
      %v1608 = vadd.f32 %v1571, %v1586
      %v1609 = vadd.f32 %v1572, %v1586
      %v1610 = vadd.f32 %v1573, %v1586
      %v1611 = vadd.f32 %v1574, %v1586
      %v1612 = vadd.f32 %v1575, %v1586
      %v1613 = vadd.f32 %v1576, %v1586
      %v1614 = vadd.f32 %v1577, %v1586
      %v1615 = vadd.f32 %v1578, %v1586
      %v1616 = vadd.f32 %v1579, %v1586
      %v1617 = vadd.f32 %v1580, %v1586
      %v1618 = vadd.f32 %v1581, %v1586
      %v1619 = vpack.c.bf16 %v1588, %v1587
      %v1620 = vpack.c.bf16 %v1590, %v1589
      %v1621 = vpack.c.bf16 %v1592, %v1591
      %v1622 = vpack.c.bf16 %v1594, %v1593
      %v1623 = vpack.c.bf16 %v1596, %v1595
      %v1624 = vpack.c.bf16 %v1598, %v1597
      %v1625 = vpack.c.bf16 %v1600, %v1599
      %v1626 = vpack.c.bf16 %v1602, %v1601
      %v1627 = vpack.c.bf16 %v1604, %v1603
      %v1628 = vpack.c.bf16 %v1606, %v1605
      %v1629 = vpack.c.bf16 %v1608, %v1607
      %v1630 = vpack.c.bf16 %v1610, %v1609
      %v1631 = vpack.c.bf16 %v1612, %v1611
      %v1632 = vpack.c.bf16 %v1614, %v1613
      %v1633 = vpack.c.bf16 %v1616, %v1615
      %v1634 = vpack.c.bf16 %v1618, %v1617
      %v1635 = vld [vmem:[%s3] sm:$0xf]
      %v1637 = vsel %vm528, %v1619, 0
      %v1640 = vsel %vm528, %v1620, 0
      %v1643 = vsel %vm528, %v1621, 0
      %v1646 = vsel %vm528, %v1622, 0
      %v1649 = vsel %vm528, %v1623, 0
      %v1652 = vsel %vm528, %v1624, 0
      %v1655 = vsel %vm528, %v1625, 0
      %v1658 = vsel %vm528, %v1626, 0
      %v1661 = vsel %vm528, %v1627, 0
      %v1664 = vsel %vm528, %v1628, 0
      %v1667 = vsel %vm528, %v1629, 0
      %v1670 = vsel %vm528, %v1630, 0
      %v1673 = vsel %vm528, %v1631, 0
      %v1676 = vsel %vm528, %v1632, 0
      %v1679 = vsel %vm528, %v1633, 0
      %v1682 = vsel %vm528, %v1634, 0
      %vm1684 = vcmask 1043456
      %v1686 = vsel %vm1684, %v1635, 0
      %1688 = vmatprep.subr.bf16.mxu0 0
      %1689 = vmatpush1.bf16.msra.mxu0 %v1686
      %1690 = vmatprep.subr.bf16.mxu0 0
      %1691 = vmatpush1.bf16.msra.mxu0 0
      %1692 = vmatprep.subr.bf16.mxu0 0
      %1693 = vmatpush1.bf16.msra.mxu0 0
      %1694 = vmatprep.subr.bf16.mxu0 0
      %1695 = vmatpush1.bf16.msra.mxu0 0
      %1696 = vmatprep.subr.bf16.mxu0 0
      %1697 = vmatpush1.bf16.msra.mxu0 0
      %1698 = vmatprep.subr.bf16.mxu0 0
      %1699 = vmatpush1.bf16.msra.mxu0 0
      %1700 = vmatprep.subr.bf16.mxu0 0
      %1701 = vmatpush1.bf16.msra.mxu0 0
      %1702 = vmatprep.subr.bf16.mxu0 0
      %1703 = vmatpush1.bf16.msra.mxu0 0
      %1704 = vmatprep.subr.bf16.mxu0 0
      %1705 = vmatpush1.bf16.msra.mxu0 0
      %1706 = vmatprep.subr.bf16.mxu0 0
      %1707 = vmatpush1.bf16.msra.mxu0 0
      %1708 = vmatprep.subr.bf16.mxu0 0
      %1709 = vmatpush1.bf16.msra.mxu0 0
      %1710 = vmatprep.subr.bf16.mxu0 0
      %1711 = vmatpush1.bf16.msra.mxu0 0
      %1712 = vmatprep.subr.bf16.mxu0 0
      %1713 = vmatpush1.bf16.msra.mxu0 0
      %1714 = vmatprep.subr.bf16.mxu0 0
      %1715 = vmatpush1.bf16.msra.mxu0 0
      %1716 = vmatprep.subr.bf16.mxu0 0
      %1717 = vmatpush1.bf16.msra.mxu0 0
      %1718 = vmatprep.subr.bf16.mxu0 0
      %1719 = vmatpush1.bf16.msra.mxu0 0
      %1720 = vmatprep.mubr.bf16.mxu0 0
      %1721 = vmatmul.mubr.bf16.gmra.mrb[0].mxu0 %v1637
      %v1722 = vpop.f32.mrb[0].mxu0
      %v1723 = vadd.f32 0.0, %v1722
      %v1724 = vpop.f32.mrb[0].mxu0
      %v1725 = vpop.f32.mrb[0].mxu0
      %v1726 = vadd.f32 0.0, %v1725
      %v1727 = vpop.f32.mrb[0].mxu0
      %1728 = vmatprep.mubr.bf16.mxu0 0
      %1729 = vmatmul.mubr.bf16.gmra.mrb[0].mxu0 %v1640
      %v1730 = vpop.f32.mrb[0].mxu0
      %v1731 = vadd.f32 0.0, %v1730
      %v1732 = vpop.f32.mrb[0].mxu0
      %v1733 = vpop.f32.mrb[0].mxu0
      %v1734 = vadd.f32 0.0, %v1733
      %v1735 = vpop.f32.mrb[0].mxu0
      %1736 = vmatprep.mubr.bf16.mxu0 0
      %1737 = vmatmul.mubr.bf16.gmra.mrb[0].mxu0 %v1643
      %v1738 = vpop.f32.mrb[0].mxu0
      %v1739 = vadd.f32 0.0, %v1738
      %v1740 = vpop.f32.mrb[0].mxu0
      %v1741 = vpop.f32.mrb[0].mxu0
      %v1742 = vadd.f32 0.0, %v1741
      %v1743 = vpop.f32.mrb[0].mxu0
      %1744 = vmatprep.mubr.bf16.mxu0 0
      %1745 = vmatmul.mubr.bf16.gmra.mrb[0].mxu0 %v1646
      %v1746 = vpop.f32.mrb[0].mxu0
      %v1747 = vadd.f32 0.0, %v1746
      %v1748 = vpop.f32.mrb[0].mxu0
      %v1749 = vpop.f32.mrb[0].mxu0
      %v1750 = vadd.f32 0.0, %v1749
      %v1751 = vpop.f32.mrb[0].mxu0
      %1752 = vmatprep.mubr.bf16.mxu0 0
      %1753 = vmatmul.mubr.bf16.gmra.mrb[0].mxu0 %v1649
      %v1754 = vpop.f32.mrb[0].mxu0
      %v1755 = vadd.f32 0.0, %v1754
      %v1756 = vpop.f32.mrb[0].mxu0
      %v1757 = vpop.f32.mrb[0].mxu0
      %v1758 = vadd.f32 0.0, %v1757
      %v1759 = vpop.f32.mrb[0].mxu0
      %1760 = vmatprep.mubr.bf16.mxu0 0
      %1761 = vmatmul.mubr.bf16.gmra.mrb[0].mxu0 %v1652
      %v1762 = vpop.f32.mrb[0].mxu0
      %v1763 = vadd.f32 0.0, %v1762
      %v1764 = vpop.f32.mrb[0].mxu0
      %v1765 = vpop.f32.mrb[0].mxu0
      %v1766 = vadd.f32 0.0, %v1765
      %v1767 = vpop.f32.mrb[0].mxu0
      %1768 = vmatprep.mubr.bf16.mxu0 0
      %1769 = vmatmul.mubr.bf16.gmra.mrb[0].mxu0 %v1655
      %v1770 = vpop.f32.mrb[0].mxu0
      %v1771 = vadd.f32 0.0, %v1770
      %v1772 = vpop.f32.mrb[0].mxu0
      %v1773 = vpop.f32.mrb[0].mxu0
      %v1774 = vadd.f32 0.0, %v1773
      %v1775 = vpop.f32.mrb[0].mxu0
      %1776 = vmatprep.mubr.bf16.mxu0 0
      %1777 = vmatmul.mubr.bf16.gmra.mrb[0].mxu0 %v1658
      %v1778 = vpop.f32.mrb[0].mxu0
      %v1779 = vadd.f32 0.0, %v1778
      %v1780 = vpop.f32.mrb[0].mxu0
      %v1781 = vpop.f32.mrb[0].mxu0
      %v1782 = vadd.f32 0.0, %v1781
      %v1783 = vpop.f32.mrb[0].mxu0
      %1784 = vmatprep.mubr.bf16.mxu0 0
      %1785 = vmatmul.mubr.bf16.gmra.mrb[0].mxu0 %v1661
      %v1786 = vpop.f32.mrb[0].mxu0
      %v1787 = vadd.f32 0.0, %v1786
      %v1788 = vpop.f32.mrb[0].mxu0
      %v1789 = vpop.f32.mrb[0].mxu0
      %v1790 = vadd.f32 0.0, %v1789
      %v1791 = vpop.f32.mrb[0].mxu0
      %1792 = vmatprep.mubr.bf16.mxu0 0
      %1793 = vmatmul.mubr.bf16.gmra.mrb[0].mxu0 %v1664
      %v1794 = vpop.f32.mrb[0].mxu0
      %v1795 = vadd.f32 0.0, %v1794
      %v1796 = vpop.f32.mrb[0].mxu0
      %v1797 = vpop.f32.mrb[0].mxu0
      %v1798 = vadd.f32 0.0, %v1797
      %v1799 = vpop.f32.mrb[0].mxu0
      %1800 = vmatprep.mubr.bf16.mxu0 0
      %1801 = vmatmul.mubr.bf16.gmra.mrb[0].mxu0 %v1667
      %v1802 = vpop.f32.mrb[0].mxu0
      %v1803 = vadd.f32 0.0, %v1802
      %v1804 = vpop.f32.mrb[0].mxu0
      %v1805 = vpop.f32.mrb[0].mxu0
      %v1806 = vadd.f32 0.0, %v1805
      %v1807 = vpop.f32.mrb[0].mxu0
      %1808 = vmatprep.mubr.bf16.mxu0 0
      %1809 = vmatmul.mubr.bf16.gmra.mrb[0].mxu0 %v1670
      %v1810 = vpop.f32.mrb[0].mxu0
      %v1811 = vadd.f32 0.0, %v1810
      %v1812 = vpop.f32.mrb[0].mxu0
      %v1813 = vpop.f32.mrb[0].mxu0
      %v1814 = vadd.f32 0.0, %v1813
      %v1815 = vpop.f32.mrb[0].mxu0
      %1816 = vmatprep.mubr.bf16.mxu0 0
      %1817 = vmatmul.mubr.bf16.gmra.mrb[0].mxu0 %v1673
      %v1818 = vpop.f32.mrb[0].mxu0
      %v1819 = vadd.f32 0.0, %v1818
      %v1820 = vpop.f32.mrb[0].mxu0
      %v1821 = vpop.f32.mrb[0].mxu0
      %v1822 = vadd.f32 0.0, %v1821
      %v1823 = vpop.f32.mrb[0].mxu0
      %1824 = vmatprep.mubr.bf16.mxu0 0
      %1825 = vmatmul.mubr.bf16.gmra.mrb[0].mxu0 %v1676
      %v1826 = vpop.f32.mrb[0].mxu0
      %v1827 = vadd.f32 0.0, %v1826
      %v1828 = vpop.f32.mrb[0].mxu0
      %v1829 = vpop.f32.mrb[0].mxu0
      %v1830 = vadd.f32 0.0, %v1829
      %v1831 = vpop.f32.mrb[0].mxu0
      %1832 = vmatprep.mubr.bf16.mxu0 0
      %1833 = vmatmul.mubr.bf16.gmra.mrb[0].mxu0 %v1679
      %v1834 = vpop.f32.mrb[0].mxu0
      %v1835 = vadd.f32 0.0, %v1834
      %v1836 = vpop.f32.mrb[0].mxu0
      %v1837 = vpop.f32.mrb[0].mxu0
      %v1838 = vadd.f32 0.0, %v1837
      %v1839 = vpop.f32.mrb[0].mxu0
      %1840 = vmatprep.mubr.bf16.mxu0 0
      %1841 = vmatmul.mubr.bf16.gmra.mrb[0].mxu0 %v1682
      %v1842 = vpop.f32.mrb[0].mxu0
      %v1843 = vadd.f32 0.0, %v1842
      %v1844 = vpop.f32.mrb[0].mxu0
      %v1845 = vpop.f32.mrb[0].mxu0
      %v1846 = vadd.f32 0.0, %v1845
      %v1847 = vpop.f32.mrb[0].mxu0
      %1848 = vdwg.mxu0
      %v1849 = vld [vmem:[%s4] sm:$0x1]
      %v1850 = vlaneseq
      %v1851 = vshrl.u32 %v1850, 7
      %v1852 = vsub.s32 0, %v1851
      %v1853 = vrot.slane %v1849, %v1852
      %v1854 = vmul.f32 %v1723, %v1853
      %v1855 = vmul.f32 %v1726, %v1853
      %v1856 = vmul.f32 %v1731, %v1853
      %v1857 = vmul.f32 %v1734, %v1853
      %v1858 = vmul.f32 %v1739, %v1853
      %v1859 = vmul.f32 %v1742, %v1853
      %v1860 = vmul.f32 %v1747, %v1853
      %v1861 = vmul.f32 %v1750, %v1853
      %v1862 = vmul.f32 %v1755, %v1853
      %v1863 = vmul.f32 %v1758, %v1853
      %v1864 = vmul.f32 %v1763, %v1853
      %v1865 = vmul.f32 %v1766, %v1853
      %v1866 = vmul.f32 %v1771, %v1853
      %v1867 = vmul.f32 %v1774, %v1853
      %v1868 = vmul.f32 %v1779, %v1853
      %v1869 = vmul.f32 %v1782, %v1853
      %v1870 = vmul.f32 %v1787, %v1853
      %v1871 = vmul.f32 %v1790, %v1853
      %v1872 = vmul.f32 %v1795, %v1853
      %v1873 = vmul.f32 %v1798, %v1853
      %v1874 = vmul.f32 %v1803, %v1853
      %v1875 = vmul.f32 %v1806, %v1853
      %v1876 = vmul.f32 %v1811, %v1853
      %v1877 = vmul.f32 %v1814, %v1853
      %v1878 = vmul.f32 %v1819, %v1853
      %v1879 = vmul.f32 %v1822, %v1853
      %v1880 = vmul.f32 %v1827, %v1853
      %v1881 = vmul.f32 %v1830, %v1853
      %v1882 = vmul.f32 %v1835, %v1853
      %v1883 = vmul.f32 %v1838, %v1853
      %v1884 = vmul.f32 %v1843, %v1853
      %v1885 = vmul.f32 %v1846, %v1853
      %v1886 = vld [vmem:[%s4 + $0x1] sm:$0x1]
      %v1887 = vlaneseq
      %v1888 = vshrl.u32 %v1887, 7
      %v1889 = vsub.s32 0, %v1888
      %v1890 = vrot.slane %v1886, %v1889
      %v1891 = vadd.f32 %v1854, %v1890
      %v1892 = vadd.f32 %v1855, %v1890
      %v1893 = vadd.f32 %v1856, %v1890
      %v1894 = vadd.f32 %v1857, %v1890
      %v1895 = vadd.f32 %v1858, %v1890
      %v1896 = vadd.f32 %v1859, %v1890
      %v1897 = vadd.f32 %v1860, %v1890
      %v1898 = vadd.f32 %v1861, %v1890
      %v1899 = vadd.f32 %v1862, %v1890
      %v1900 = vadd.f32 %v1863, %v1890
      %v1901 = vadd.f32 %v1864, %v1890
      %v1902 = vadd.f32 %v1865, %v1890
      %v1903 = vadd.f32 %v1866, %v1890
      %v1904 = vadd.f32 %v1867, %v1890
      %v1905 = vadd.f32 %v1868, %v1890
      %v1906 = vadd.f32 %v1869, %v1890
      %v1907 = vadd.f32 %v1870, %v1890
      %v1908 = vadd.f32 %v1871, %v1890
      %v1909 = vadd.f32 %v1872, %v1890
      %v1910 = vadd.f32 %v1873, %v1890
      %v1911 = vadd.f32 %v1874, %v1890
      %v1912 = vadd.f32 %v1875, %v1890
      %v1913 = vadd.f32 %v1876, %v1890
      %v1914 = vadd.f32 %v1877, %v1890
      %v1915 = vadd.f32 %v1878, %v1890
      %v1916 = vadd.f32 %v1879, %v1890
      %v1917 = vadd.f32 %v1880, %v1890
      %v1918 = vadd.f32 %v1881, %v1890
      %v1919 = vadd.f32 %v1882, %v1890
      %v1920 = vadd.f32 %v1883, %v1890
      %v1921 = vadd.f32 %v1884, %v1890
      %v1922 = vadd.f32 %v1885, %v1890
      %v1923 = vmax.f32 %v1891, 0.0
      %v1924 = vmax.f32 %v1892, 0.0
      %v1925 = vmax.f32 %v1893, 0.0
      %v1926 = vmax.f32 %v1894, 0.0
      %v1927 = vmax.f32 %v1895, 0.0
      %v1928 = vmax.f32 %v1896, 0.0
      %v1929 = vmax.f32 %v1897, 0.0
      %v1930 = vmax.f32 %v1898, 0.0
      %v1931 = vmax.f32 %v1899, 0.0
      %v1932 = vmax.f32 %v1900, 0.0
      %v1933 = vmax.f32 %v1901, 0.0
      %v1934 = vmax.f32 %v1902, 0.0
      %v1935 = vmax.f32 %v1903, 0.0
      %v1936 = vmax.f32 %v1904, 0.0
      %v1937 = vmax.f32 %v1905, 0.0
      %v1938 = vmax.f32 %v1906, 0.0
      %v1939 = vmax.f32 %v1907, 0.0
      %v1940 = vmax.f32 %v1908, 0.0
      %v1941 = vmax.f32 %v1909, 0.0
      %v1942 = vmax.f32 %v1910, 0.0
      %v1943 = vmax.f32 %v1911, 0.0
      %v1944 = vmax.f32 %v1912, 0.0
      %v1945 = vmax.f32 %v1913, 0.0
      %v1946 = vmax.f32 %v1914, 0.0
      %v1947 = vmax.f32 %v1915, 0.0
      %v1948 = vmax.f32 %v1916, 0.0
      %v1949 = vmax.f32 %v1917, 0.0
      %v1950 = vmax.f32 %v1918, 0.0
      %v1951 = vmax.f32 %v1919, 0.0
      %v1952 = vmax.f32 %v1920, 0.0
      %v1953 = vmax.f32 %v1921, 0.0
      %v1954 = vmax.f32 %v1922, 0.0
      %vm1955 = vcmask 31744
      %1956 = vst.msk [vmem:[#allocation3] sm:$0xff] %vm1955, 0.0
      %1957 = vst.msk [vmem:[#allocation3 + $0x8] sm:$0xff] %vm1955, 0.0
      %1958 = vst.msk [vmem:[#allocation3 + $0x10] sm:$0xff] %vm1955, 0.0
      %vm1959 = vcmask 24576
      %1960 = vst.msk [vmem:[#allocation3 + $0x18] sm:$0x1] %vm1959, 0.0
      %1961 = vst.msk [vmem:[#allocation3 + $0x20] sm:$0xff] %vm1955, 0.0
      %1962 = vst.msk [vmem:[#allocation3 + $0x28] sm:$0xff] %vm1955, 0.0
      %1963 = vst.msk [vmem:[#allocation3 + $0x30] sm:$0xff] %vm1955, 0.0
      %1964 = vst.msk [vmem:[#allocation3 + $0x38] sm:$0x1] %vm1959, 0.0
      %1965 = vst.msk [vmem:[#allocation3 + $0x40] sm:$0xff] %vm1955, 0.0
      %1966 = vst.msk [vmem:[#allocation3 + $0x48] sm:$0xff] %vm1955, 0.0
      %1967 = vst.msk [vmem:[#allocation3 + $0x50] sm:$0xff] %vm1955, 0.0
      %1968 = vst.msk [vmem:[#allocation3 + $0x58] sm:$0x1] %vm1959, 0.0
      %1969 = vst.msk [vmem:[#allocation3 + $0x60] sm:$0xff] %vm1955, 0.0
      %1970 = vst.msk [vmem:[#allocation3 + $0x68] sm:$0xff] %vm1955, 0.0
      %1971 = vst.msk [vmem:[#allocation3 + $0x70] sm:$0xff] %vm1955, 0.0
      %1972 = vst.msk [vmem:[#allocation3 + $0x78] sm:$0x1] %vm1959, 0.0
      %1973 = vst.msk [vmem:[#allocation3 + $0x80] sm:$0xff] %vm1955, 0.0
      %1974 = vst.msk [vmem:[#allocation3 + $0x88] sm:$0xff] %vm1955, 0.0
      %1975 = vst.msk [vmem:[#allocation3 + $0x90] sm:$0xff] %vm1955, 0.0
      %1976 = vst.msk [vmem:[#allocation3 + $0x98] sm:$0x1] %vm1959, 0.0
      %1977 = vst.msk [vmem:[#allocation3 + $0xa0] sm:$0xff] %vm1955, 0.0
      %1978 = vst.msk [vmem:[#allocation3 + $0xa8] sm:$0xff] %vm1955, 0.0
      %1979 = vst.msk [vmem:[#allocation3 + $0xb0] sm:$0xff] %vm1955, 0.0
      %1980 = vst.msk [vmem:[#allocation3 + $0xb8] sm:$0x1] %vm1959, 0.0
      %1981 = vst.msk [vmem:[#allocation3 + $0xc0] sm:$0xff] %vm1955, 0.0
      %1982 = vst.msk [vmem:[#allocation3 + $0xc8] sm:$0xff] %vm1955, 0.0
      %1983 = vst.msk [vmem:[#allocation3 + $0xd0] sm:$0xff] %vm1955, 0.0
      %1984 = vst.msk [vmem:[#allocation3 + $0xd8] sm:$0x1] %vm1959, 0.0
      %1985 = vst.msk [vmem:[#allocation3 + $0xe0] sm:$0xff] %vm1955, 0.0
      %1986 = vst.msk [vmem:[#allocation3 + $0xe8] sm:$0xff] %vm1955, 0.0
      %1987 = vst.msk [vmem:[#allocation3 + $0xf0] sm:$0xff] %vm1955, 0.0
      %1988 = vst.msk [vmem:[#allocation3 + $0xf8] sm:$0x1] %vm1959, 0.0
      %1989 = vst.msk [vmem:[#allocation3 + $0x100] sm:$0xff] %vm1955, 0.0
      %1990 = vst.msk [vmem:[#allocation3 + $0x108] sm:$0xff] %vm1955, 0.0
      %1991 = vst.msk [vmem:[#allocation3 + $0x110] sm:$0xff] %vm1955, 0.0
      %1992 = vst.msk [vmem:[#allocation3 + $0x118] sm:$0x1] %vm1959, 0.0
      %1993 = vst.msk [vmem:[#allocation3 + $0x120] sm:$0xff] %vm1955, 0.0
      %1994 = vst.msk [vmem:[#allocation3 + $0x128] sm:$0xff] %vm1955, 0.0
      %1995 = vst.msk [vmem:[#allocation3 + $0x130] sm:$0xff] %vm1955, 0.0
      %1996 = vst.msk [vmem:[#allocation3 + $0x138] sm:$0x1] %vm1959, 0.0
      %1997 = vst.msk [vmem:[#allocation3 + $0x140] sm:$0xff] %vm1955, 0.0
      %1998 = vst.msk [vmem:[#allocation3 + $0x148] sm:$0xff] %vm1955, 0.0
      %1999 = vst.msk [vmem:[#allocation3 + $0x150] sm:$0xff] %vm1955, 0.0
      %2000 = vst.msk [vmem:[#allocation3 + $0x158] sm:$0x1] %vm1959, 0.0
      %2001 = vst.msk [vmem:[#allocation3 + $0x160] sm:$0xff] %vm1955, 0.0
      %2002 = vst.msk [vmem:[#allocation3 + $0x168] sm:$0xff] %vm1955, 0.0
      %2003 = vst.msk [vmem:[#allocation3 + $0x170] sm:$0xff] %vm1955, 0.0
      %2004 = vst.msk [vmem:[#allocation3 + $0x178] sm:$0x1] %vm1959, 0.0
      %2005 = vst.msk [vmem:[#allocation3 + $0x180] sm:$0xff] %vm1955, 0.0
      %2006 = vst.msk [vmem:[#allocation3 + $0x188] sm:$0xff] %vm1955, 0.0
      %2007 = vst.msk [vmem:[#allocation3 + $0x190] sm:$0xff] %vm1955, 0.0
      %2008 = vst.msk [vmem:[#allocation3 + $0x198] sm:$0x1] %vm1959, 0.0
      %2009 = vst.msk [vmem:[#allocation3 + $0x1a0] sm:$0xff] %vm1955, 0.0
      %2010 = vst.msk [vmem:[#allocation3 + $0x1a8] sm:$0xff] %vm1955, 0.0
      %2011 = vst.msk [vmem:[#allocation3 + $0x1b0] sm:$0xff] %vm1955, 0.0
      %2012 = vst.msk [vmem:[#allocation3 + $0x1b8] sm:$0x1] %vm1959, 0.0
      %2013 = vst.msk [vmem:[#allocation3 + $0x1c0] sm:$0xff] %vm1955, 0.0
      %2014 = vst.msk [vmem:[#allocation3 + $0x1c8] sm:$0xff] %vm1955, 0.0
      %2015 = vst.msk [vmem:[#allocation3 + $0x1d0] sm:$0xff] %vm1955, 0.0
      %2016 = vst.msk [vmem:[#allocation3 + $0x1d8] sm:$0x1] %vm1959, 0.0
      %2017 = vst.msk [vmem:[#allocation3 + $0x1e0] sm:$0xff] %vm1955, 0.0
      %2018 = vst.msk [vmem:[#allocation3 + $0x1e8] sm:$0xff] %vm1955, 0.0
      %2019 = vst.msk [vmem:[#allocation3 + $0x1f0] sm:$0xff] %vm1955, 0.0
      %2020 = vst.msk [vmem:[#allocation3 + $0x1f8] sm:$0x1] %vm1959, 0.0
      %2021 = vst.msk [vmem:[#allocation3 + $0x200] sm:$0xff] %vm1955, 0.0
      %2022 = vst.msk [vmem:[#allocation3 + $0x208] sm:$0xff] %vm1955, 0.0
      %2023 = vst.msk [vmem:[#allocation3 + $0x210] sm:$0xff] %vm1955, 0.0
      %2024 = vst.msk [vmem:[#allocation3 + $0x218] sm:$0x1] %vm1959, 0.0
      %2025 = vst.msk [vmem:[#allocation3 + $0x220] sm:$0xff] %vm1955, 0.0
      %2026 = vst.msk [vmem:[#allocation3 + $0x228] sm:$0xff] %vm1955, 0.0
      %2027 = vst.msk [vmem:[#allocation3 + $0x230] sm:$0xff] %vm1955, 0.0
      %2028 = vst.msk [vmem:[#allocation3 + $0x238] sm:$0x1] %vm1959, 0.0
      %s2029 = scalar_lea.vmem [#allocation3], 32
      %2030 = vst.msk [vmem:[%s2029 + $0x8] sm:$0xff] %vm1955, %v1923
      %2031 = vst.msk [vmem:[%s2029 + $0x10] sm:$0xff] %vm1955, %v1924
      %2032 = vst.msk [vmem:[%s2029 + $0x28] sm:$0xff] %vm1955, %v1925
      %2033 = vst.msk [vmem:[%s2029 + $0x30] sm:$0xff] %vm1955, %v1926
      %2034 = vst.msk [vmem:[%s2029 + $0x48] sm:$0xff] %vm1955, %v1927
      %2035 = vst.msk [vmem:[%s2029 + $0x50] sm:$0xff] %vm1955, %v1928
      %2036 = vst.msk [vmem:[%s2029 + $0x68] sm:$0xff] %vm1955, %v1929
      %2037 = vst.msk [vmem:[%s2029 + $0x70] sm:$0xff] %vm1955, %v1930
      %2038 = vst.msk [vmem:[%s2029 + $0x88] sm:$0xff] %vm1955, %v1931
      %2039 = vst.msk [vmem:[%s2029 + $0x90] sm:$0xff] %vm1955, %v1932
      %2040 = vst.msk [vmem:[%s2029 + $0xa8] sm:$0xff] %vm1955, %v1933
      %2041 = vst.msk [vmem:[%s2029 + $0xb0] sm:$0xff] %vm1955, %v1934
      %2042 = vst.msk [vmem:[%s2029 + $0xc8] sm:$0xff] %vm1955, %v1935
      %2043 = vst.msk [vmem:[%s2029 + $0xd0] sm:$0xff] %vm1955, %v1936
      %2044 = vst.msk [vmem:[%s2029 + $0xe8] sm:$0xff] %vm1955, %v1937
      %2045 = vst.msk [vmem:[%s2029 + $0xf0] sm:$0xff] %vm1955, %v1938
      %2046 = vst.msk [vmem:[%s2029 + $0x108] sm:$0xff] %vm1955, %v1939
      %2047 = vst.msk [vmem:[%s2029 + $0x110] sm:$0xff] %vm1955, %v1940
      %2048 = vst.msk [vmem:[%s2029 + $0x128] sm:$0xff] %vm1955, %v1941
      %2049 = vst.msk [vmem:[%s2029 + $0x130] sm:$0xff] %vm1955, %v1942
      %2050 = vst.msk [vmem:[%s2029 + $0x148] sm:$0xff] %vm1955, %v1943
      %2051 = vst.msk [vmem:[%s2029 + $0x150] sm:$0xff] %vm1955, %v1944
      %2052 = vst.msk [vmem:[%s2029 + $0x168] sm:$0xff] %vm1955, %v1945
      %2053 = vst.msk [vmem:[%s2029 + $0x170] sm:$0xff] %vm1955, %v1946
      %2054 = vst.msk [vmem:[%s2029 + $0x188] sm:$0xff] %vm1955, %v1947
      %2055 = vst.msk [vmem:[%s2029 + $0x190] sm:$0xff] %vm1955, %v1948
      %2056 = vst.msk [vmem:[%s2029 + $0x1a8] sm:$0xff] %vm1955, %v1949
      %2057 = vst.msk [vmem:[%s2029 + $0x1b0] sm:$0xff] %vm1955, %v1950
      %2058 = vst.msk [vmem:[%s2029 + $0x1c8] sm:$0xff] %vm1955, %v1951
      %2059 = vst.msk [vmem:[%s2029 + $0x1d0] sm:$0xff] %vm1955, %v1952
      %2060 = vst.msk [vmem:[%s2029 + $0x1e8] sm:$0xff] %vm1955, %v1953
      %2061 = vst.msk [vmem:[%s2029 + $0x1f0] sm:$0xff] %vm1955, %v1954
      %v2062 = vld [vmem:[#allocation3 + $0x7] sm:$0xff]
      %v2063 = vld [vmem:[#allocation3 + $0xf] sm:$0xff]
      %v2064 = vld [vmem:[#allocation3 + $0x27] sm:$0xff]
      %v2065 = vld [vmem:[#allocation3 + $0x2f] sm:$0xff]
      %v2066 = vld [vmem:[#allocation3 + $0x47] sm:$0xff]
      %v2067 = vld [vmem:[#allocation3 + $0x4f] sm:$0xff]
      %v2068 = vld [vmem:[#allocation3 + $0x67] sm:$0xff]
      %v2069 = vld [vmem:[#allocation3 + $0x6f] sm:$0xff]
      %v2070 = vld [vmem:[#allocation3 + $0x87] sm:$0xff]
      %v2071 = vld [vmem:[#allocation3 + $0x8f] sm:$0xff]
      %v2072 = vld [vmem:[#allocation3 + $0xa7] sm:$0xff]
      %v2073 = vld [vmem:[#allocation3 + $0xaf] sm:$0xff]
      %v2074 = vld [vmem:[#allocation3 + $0xc7] sm:$0xff]
      %v2075 = vld [vmem:[#allocation3 + $0xcf] sm:$0xff]
      %v2076 = vld [vmem:[#allocation3 + $0xe7] sm:$0xff]
      %v2077 = vld [vmem:[#allocation3 + $0xef] sm:$0xff]
      %v2078 = vld [vmem:[#allocation3 + $0x107] sm:$0xff]
      %v2079 = vld [vmem:[#allocation3 + $0x10f] sm:$0xff]
      %v2080 = vld [vmem:[#allocation3 + $0x127] sm:$0xff]
      %v2081 = vld [vmem:[#allocation3 + $0x12f] sm:$0xff]
      %v2082 = vld [vmem:[#allocation3 + $0x147] sm:$0xff]
      %v2083 = vld [vmem:[#allocation3 + $0x14f] sm:$0xff]
      %v2084 = vld [vmem:[#allocation3 + $0x167] sm:$0xff]
      %v2085 = vld [vmem:[#allocation3 + $0x16f] sm:$0xff]
      %v2086 = vld [vmem:[#allocation3 + $0x187] sm:$0xff]
      %v2087 = vld [vmem:[#allocation3 + $0x18f] sm:$0xff]
      %v2088 = vld [vmem:[#allocation3 + $0x1a7] sm:$0xff]
      %v2089 = vld [vmem:[#allocation3 + $0x1af] sm:$0xff]
      %v2090 = vld [vmem:[#allocation3 + $0x1c7] sm:$0xff]
      %v2091 = vld [vmem:[#allocation3 + $0x1cf] sm:$0xff]
      %v2092 = vld [vmem:[#allocation3 + $0x1e7] sm:$0xff]
      %v2093 = vld [vmem:[#allocation3 + $0x1ef] sm:$0xff]
      %v2094 = vld [vmem:[%s5] sm:$0x1]
      %v2095 = vlaneseq
      %v2096 = vshrl.u32 %v2095, 7
      %v2097 = vsub.s32 0, %v2096
      %v2098 = vrot.slane %v2094, %v2097
      %v2099 = vmul.f32 %v2062, %v2098
      %v2100 = vmul.f32 %v2063, %v2098
      %v2101 = vmul.f32 %v2064, %v2098
      %v2102 = vmul.f32 %v2065, %v2098
      %v2103 = vmul.f32 %v2066, %v2098
      %v2104 = vmul.f32 %v2067, %v2098
      %v2105 = vmul.f32 %v2068, %v2098
      %v2106 = vmul.f32 %v2069, %v2098
      %v2107 = vmul.f32 %v2070, %v2098
      %v2108 = vmul.f32 %v2071, %v2098
      %v2109 = vmul.f32 %v2072, %v2098
      %v2110 = vmul.f32 %v2073, %v2098
      %v2111 = vmul.f32 %v2074, %v2098
      %v2112 = vmul.f32 %v2075, %v2098
      %v2113 = vmul.f32 %v2076, %v2098
      %v2114 = vmul.f32 %v2077, %v2098
      %v2115 = vmul.f32 %v2078, %v2098
      %v2116 = vmul.f32 %v2079, %v2098
      %v2117 = vmul.f32 %v2080, %v2098
      %v2118 = vmul.f32 %v2081, %v2098
      %v2119 = vmul.f32 %v2082, %v2098
      %v2120 = vmul.f32 %v2083, %v2098
      %v2121 = vmul.f32 %v2084, %v2098
      %v2122 = vmul.f32 %v2085, %v2098
      %v2123 = vmul.f32 %v2086, %v2098
      %v2124 = vmul.f32 %v2087, %v2098
      %v2125 = vmul.f32 %v2088, %v2098
      %v2126 = vmul.f32 %v2089, %v2098
      %v2127 = vmul.f32 %v2090, %v2098
      %v2128 = vmul.f32 %v2091, %v2098
      %v2129 = vmul.f32 %v2092, %v2098
      %v2130 = vmul.f32 %v2093, %v2098
      %v2131 = vld [vmem:[#allocation3 + $0x8] sm:$0xff]
      %v2132 = vld [vmem:[#allocation3 + $0x10] sm:$0xff]
      %v2133 = vld [vmem:[#allocation3 + $0x28] sm:$0xff]
      %v2134 = vld [vmem:[#allocation3 + $0x30] sm:$0xff]
      %v2135 = vld [vmem:[#allocation3 + $0x48] sm:$0xff]
      %v2136 = vld [vmem:[#allocation3 + $0x50] sm:$0xff]
      %v2137 = vld [vmem:[#allocation3 + $0x68] sm:$0xff]
      %v2138 = vld [vmem:[#allocation3 + $0x70] sm:$0xff]
      %v2139 = vld [vmem:[#allocation3 + $0x88] sm:$0xff]
      %v2140 = vld [vmem:[#allocation3 + $0x90] sm:$0xff]
      %v2141 = vld [vmem:[#allocation3 + $0xa8] sm:$0xff]
      %v2142 = vld [vmem:[#allocation3 + $0xb0] sm:$0xff]
      %v2143 = vld [vmem:[#allocation3 + $0xc8] sm:$0xff]
      %v2144 = vld [vmem:[#allocation3 + $0xd0] sm:$0xff]
      %v2145 = vld [vmem:[#allocation3 + $0xe8] sm:$0xff]
      %v2146 = vld [vmem:[#allocation3 + $0xf0] sm:$0xff]
      %v2147 = vld [vmem:[#allocation3 + $0x108] sm:$0xff]
      %v2148 = vld [vmem:[#allocation3 + $0x110] sm:$0xff]
      %v2149 = vld [vmem:[#allocation3 + $0x128] sm:$0xff]
      %v2150 = vld [vmem:[#allocation3 + $0x130] sm:$0xff]
      %v2151 = vld [vmem:[#allocation3 + $0x148] sm:$0xff]
      %v2152 = vld [vmem:[#allocation3 + $0x150] sm:$0xff]
      %v2153 = vld [vmem:[#allocation3 + $0x168] sm:$0xff]
      %v2154 = vld [vmem:[#allocation3 + $0x170] sm:$0xff]
      %v2155 = vld [vmem:[#allocation3 + $0x188] sm:$0xff]
      %v2156 = vld [vmem:[#allocation3 + $0x190] sm:$0xff]
      %v2157 = vld [vmem:[#allocation3 + $0x1a8] sm:$0xff]
      %v2158 = vld [vmem:[#allocation3 + $0x1b0] sm:$0xff]
      %v2159 = vld [vmem:[#allocation3 + $0x1c8] sm:$0xff]
      %v2160 = vld [vmem:[#allocation3 + $0x1d0] sm:$0xff]
      %v2161 = vld [vmem:[#allocation3 + $0x1e8] sm:$0xff]
      %v2162 = vld [vmem:[#allocation3 + $0x1f0] sm:$0xff]
      %v2163 = vld [vmem:[%s5 + $0x1] sm:$0x1]
      %v2164 = vlaneseq
      %v2165 = vshrl.u32 %v2164, 7
      %v2166 = vsub.s32 0, %v2165
      %v2167 = vrot.slane %v2163, %v2166
      %v2168 = vmul.f32 %v2131, %v2167
      %v2169 = vmul.f32 %v2132, %v2167
      %v2170 = vmul.f32 %v2133, %v2167
      %v2171 = vmul.f32 %v2134, %v2167
      %v2172 = vmul.f32 %v2135, %v2167
      %v2173 = vmul.f32 %v2136, %v2167
      %v2174 = vmul.f32 %v2137, %v2167
      %v2175 = vmul.f32 %v2138, %v2167
      %v2176 = vmul.f32 %v2139, %v2167
      %v2177 = vmul.f32 %v2140, %v2167
      %v2178 = vmul.f32 %v2141, %v2167
      %v2179 = vmul.f32 %v2142, %v2167
      %v2180 = vmul.f32 %v2143, %v2167
      %v2181 = vmul.f32 %v2144, %v2167
      %v2182 = vmul.f32 %v2145, %v2167
      %v2183 = vmul.f32 %v2146, %v2167
      %v2184 = vmul.f32 %v2147, %v2167
      %v2185 = vmul.f32 %v2148, %v2167
      %v2186 = vmul.f32 %v2149, %v2167
      %v2187 = vmul.f32 %v2150, %v2167
      %v2188 = vmul.f32 %v2151, %v2167
      %v2189 = vmul.f32 %v2152, %v2167
      %v2190 = vmul.f32 %v2153, %v2167
      %v2191 = vmul.f32 %v2154, %v2167
      %v2192 = vmul.f32 %v2155, %v2167
      %v2193 = vmul.f32 %v2156, %v2167
      %v2194 = vmul.f32 %v2157, %v2167
      %v2195 = vmul.f32 %v2158, %v2167
      %v2196 = vmul.f32 %v2159, %v2167
      %v2197 = vmul.f32 %v2160, %v2167
      %v2198 = vmul.f32 %v2161, %v2167
      %v2199 = vmul.f32 %v2162, %v2167
      %v2200 = vadd.f32 %v2099, %v2168
      %v2201 = vadd.f32 %v2100, %v2169
      %v2202 = vadd.f32 %v2101, %v2170
      %v2203 = vadd.f32 %v2102, %v2171
      %v2204 = vadd.f32 %v2103, %v2172
      %v2205 = vadd.f32 %v2104, %v2173
      %v2206 = vadd.f32 %v2105, %v2174
      %v2207 = vadd.f32 %v2106, %v2175
      %v2208 = vadd.f32 %v2107, %v2176
      %v2209 = vadd.f32 %v2108, %v2177
      %v2210 = vadd.f32 %v2109, %v2178
      %v2211 = vadd.f32 %v2110, %v2179
      %v2212 = vadd.f32 %v2111, %v2180
      %v2213 = vadd.f32 %v2112, %v2181
      %v2214 = vadd.f32 %v2113, %v2182
      %v2215 = vadd.f32 %v2114, %v2183
      %v2216 = vadd.f32 %v2115, %v2184
      %v2217 = vadd.f32 %v2116, %v2185
      %v2218 = vadd.f32 %v2117, %v2186
      %v2219 = vadd.f32 %v2118, %v2187
      %v2220 = vadd.f32 %v2119, %v2188
      %v2221 = vadd.f32 %v2120, %v2189
      %v2222 = vadd.f32 %v2121, %v2190
      %v2223 = vadd.f32 %v2122, %v2191
      %v2224 = vadd.f32 %v2123, %v2192
      %v2225 = vadd.f32 %v2124, %v2193
      %v2226 = vadd.f32 %v2125, %v2194
      %v2227 = vadd.f32 %v2126, %v2195
      %v2228 = vadd.f32 %v2127, %v2196
      %v2229 = vadd.f32 %v2128, %v2197
      %v2230 = vadd.f32 %v2129, %v2198
      %v2231 = vadd.f32 %v2130, %v2199
      %v2232 = vld [vmem:[#allocation3 + $0x9] sm:$0xff]
      %v2233 = vld [vmem:[#allocation3 + $0x11] sm:$0xff]
      %v2234 = vld [vmem:[#allocation3 + $0x29] sm:$0xff]
      %v2235 = vld [vmem:[#allocation3 + $0x31] sm:$0xff]
      %v2236 = vld [vmem:[#allocation3 + $0x49] sm:$0xff]
      %v2237 = vld [vmem:[#allocation3 + $0x51] sm:$0xff]
      %v2238 = vld [vmem:[#allocation3 + $0x69] sm:$0xff]
      %v2239 = vld [vmem:[#allocation3 + $0x71] sm:$0xff]
      %v2240 = vld [vmem:[#allocation3 + $0x89] sm:$0xff]
      %v2241 = vld [vmem:[#allocation3 + $0x91] sm:$0xff]
      %v2242 = vld [vmem:[#allocation3 + $0xa9] sm:$0xff]
      %v2243 = vld [vmem:[#allocation3 + $0xb1] sm:$0xff]
      %v2244 = vld [vmem:[#allocation3 + $0xc9] sm:$0xff]
      %v2245 = vld [vmem:[#allocation3 + $0xd1] sm:$0xff]
      %v2246 = vld [vmem:[#allocation3 + $0xe9] sm:$0xff]
      %v2247 = vld [vmem:[#allocation3 + $0xf1] sm:$0xff]
      %v2248 = vld [vmem:[#allocation3 + $0x109] sm:$0xff]
      %v2249 = vld [vmem:[#allocation3 + $0x111] sm:$0xff]
      %v2250 = vld [vmem:[#allocation3 + $0x129] sm:$0xff]
      %v2251 = vld [vmem:[#allocation3 + $0x131] sm:$0xff]
      %v2252 = vld [vmem:[#allocation3 + $0x149] sm:$0xff]
      %v2253 = vld [vmem:[#allocation3 + $0x151] sm:$0xff]
      %v2254 = vld [vmem:[#allocation3 + $0x169] sm:$0xff]
      %v2255 = vld [vmem:[#allocation3 + $0x171] sm:$0xff]
      %v2256 = vld [vmem:[#allocation3 + $0x189] sm:$0xff]
      %v2257 = vld [vmem:[#allocation3 + $0x191] sm:$0xff]
      %v2258 = vld [vmem:[#allocation3 + $0x1a9] sm:$0xff]
      %v2259 = vld [vmem:[#allocation3 + $0x1b1] sm:$0xff]
      %v2260 = vld [vmem:[#allocation3 + $0x1c9] sm:$0xff]
      %v2261 = vld [vmem:[#allocation3 + $0x1d1] sm:$0xff]
      %v2262 = vld [vmem:[#allocation3 + $0x1e9] sm:$0xff]
      %v2263 = vld [vmem:[#allocation3 + $0x1f1] sm:$0xff]
      %v2264 = vld [vmem:[%s5 + $0x2] sm:$0x1]
      %v2265 = vlaneseq
      %v2266 = vshrl.u32 %v2265, 7
      %v2267 = vsub.s32 0, %v2266
      %v2268 = vrot.slane %v2264, %v2267
      %v2269 = vmul.f32 %v2232, %v2268
      %v2270 = vmul.f32 %v2233, %v2268
      %v2271 = vmul.f32 %v2234, %v2268
      %v2272 = vmul.f32 %v2235, %v2268
      %v2273 = vmul.f32 %v2236, %v2268
      %v2274 = vmul.f32 %v2237, %v2268
      %v2275 = vmul.f32 %v2238, %v2268
      %v2276 = vmul.f32 %v2239, %v2268
      %v2277 = vmul.f32 %v2240, %v2268
      %v2278 = vmul.f32 %v2241, %v2268
      %v2279 = vmul.f32 %v2242, %v2268
      %v2280 = vmul.f32 %v2243, %v2268
      %v2281 = vmul.f32 %v2244, %v2268
      %v2282 = vmul.f32 %v2245, %v2268
      %v2283 = vmul.f32 %v2246, %v2268
      %v2284 = vmul.f32 %v2247, %v2268
      %v2285 = vmul.f32 %v2248, %v2268
      %v2286 = vmul.f32 %v2249, %v2268
      %v2287 = vmul.f32 %v2250, %v2268
      %v2288 = vmul.f32 %v2251, %v2268
      %v2289 = vmul.f32 %v2252, %v2268
      %v2290 = vmul.f32 %v2253, %v2268
      %v2291 = vmul.f32 %v2254, %v2268
      %v2292 = vmul.f32 %v2255, %v2268
      %v2293 = vmul.f32 %v2256, %v2268
      %v2294 = vmul.f32 %v2257, %v2268
      %v2295 = vmul.f32 %v2258, %v2268
      %v2296 = vmul.f32 %v2259, %v2268
      %v2297 = vmul.f32 %v2260, %v2268
      %v2298 = vmul.f32 %v2261, %v2268
      %v2299 = vmul.f32 %v2262, %v2268
      %v2300 = vmul.f32 %v2263, %v2268
      %v2301 = vadd.f32 %v2200, %v2269
      %v2302 = vadd.f32 %v2201, %v2270
      %v2303 = vadd.f32 %v2202, %v2271
      %v2304 = vadd.f32 %v2203, %v2272
      %v2305 = vadd.f32 %v2204, %v2273
      %v2306 = vadd.f32 %v2205, %v2274
      %v2307 = vadd.f32 %v2206, %v2275
      %v2308 = vadd.f32 %v2207, %v2276
      %v2309 = vadd.f32 %v2208, %v2277
      %v2310 = vadd.f32 %v2209, %v2278
      %v2311 = vadd.f32 %v2210, %v2279
      %v2312 = vadd.f32 %v2211, %v2280
      %v2313 = vadd.f32 %v2212, %v2281
      %v2314 = vadd.f32 %v2213, %v2282
      %v2315 = vadd.f32 %v2214, %v2283
      %v2316 = vadd.f32 %v2215, %v2284
      %v2317 = vadd.f32 %v2216, %v2285
      %v2318 = vadd.f32 %v2217, %v2286
      %v2319 = vadd.f32 %v2218, %v2287
      %v2320 = vadd.f32 %v2219, %v2288
      %v2321 = vadd.f32 %v2220, %v2289
      %v2322 = vadd.f32 %v2221, %v2290
      %v2323 = vadd.f32 %v2222, %v2291
      %v2324 = vadd.f32 %v2223, %v2292
      %v2325 = vadd.f32 %v2224, %v2293
      %v2326 = vadd.f32 %v2225, %v2294
      %v2327 = vadd.f32 %v2226, %v2295
      %v2328 = vadd.f32 %v2227, %v2296
      %v2329 = vadd.f32 %v2228, %v2297
      %v2330 = vadd.f32 %v2229, %v2298
      %v2331 = vadd.f32 %v2230, %v2299
      %v2332 = vadd.f32 %v2231, %v2300
      %v2333 = vld [vmem:[%s2029 + $0x7] sm:$0xff]
      %v2334 = vld [vmem:[%s2029 + $0xf] sm:$0xff]
      %v2335 = vld [vmem:[%s2029 + $0x27] sm:$0xff]
      %v2336 = vld [vmem:[%s2029 + $0x2f] sm:$0xff]
      %v2337 = vld [vmem:[%s2029 + $0x47] sm:$0xff]
      %v2338 = vld [vmem:[%s2029 + $0x4f] sm:$0xff]
      %v2339 = vld [vmem:[%s2029 + $0x67] sm:$0xff]
      %v2340 = vld [vmem:[%s2029 + $0x6f] sm:$0xff]
      %v2341 = vld [vmem:[%s2029 + $0x87] sm:$0xff]
      %v2342 = vld [vmem:[%s2029 + $0x8f] sm:$0xff]
      %v2343 = vld [vmem:[%s2029 + $0xa7] sm:$0xff]
      %v2344 = vld [vmem:[%s2029 + $0xaf] sm:$0xff]
      %v2345 = vld [vmem:[%s2029 + $0xc7] sm:$0xff]
      %v2346 = vld [vmem:[%s2029 + $0xcf] sm:$0xff]
      %v2347 = vld [vmem:[%s2029 + $0xe7] sm:$0xff]
      %v2348 = vld [vmem:[%s2029 + $0xef] sm:$0xff]
      %v2349 = vld [vmem:[%s2029 + $0x107] sm:$0xff]
      %v2350 = vld [vmem:[%s2029 + $0x10f] sm:$0xff]
      %v2351 = vld [vmem:[%s2029 + $0x127] sm:$0xff]
      %v2352 = vld [vmem:[%s2029 + $0x12f] sm:$0xff]
      %v2353 = vld [vmem:[%s2029 + $0x147] sm:$0xff]
      %v2354 = vld [vmem:[%s2029 + $0x14f] sm:$0xff]
      %v2355 = vld [vmem:[%s2029 + $0x167] sm:$0xff]
      %v2356 = vld [vmem:[%s2029 + $0x16f] sm:$0xff]
      %v2357 = vld [vmem:[%s2029 + $0x187] sm:$0xff]
      %v2358 = vld [vmem:[%s2029 + $0x18f] sm:$0xff]
      %v2359 = vld [vmem:[%s2029 + $0x1a7] sm:$0xff]
      %v2360 = vld [vmem:[%s2029 + $0x1af] sm:$0xff]
      %v2361 = vld [vmem:[%s2029 + $0x1c7] sm:$0xff]
      %v2362 = vld [vmem:[%s2029 + $0x1cf] sm:$0xff]
      %v2363 = vld [vmem:[%s2029 + $0x1e7] sm:$0xff]
      %v2364 = vld [vmem:[%s2029 + $0x1ef] sm:$0xff]
      %v2365 = vld [vmem:[%s5 + $0x3] sm:$0x1]
      %v2366 = vlaneseq
      %v2367 = vshrl.u32 %v2366, 7
      %v2368 = vsub.s32 0, %v2367
      %v2369 = vrot.slane %v2365, %v2368
      %v2370 = vmul.f32 %v2333, %v2369
      %v2371 = vmul.f32 %v2334, %v2369
      %v2372 = vmul.f32 %v2335, %v2369
      %v2373 = vmul.f32 %v2336, %v2369
      %v2374 = vmul.f32 %v2337, %v2369
      %v2375 = vmul.f32 %v2338, %v2369
      %v2376 = vmul.f32 %v2339, %v2369
      %v2377 = vmul.f32 %v2340, %v2369
      %v2378 = vmul.f32 %v2341, %v2369
      %v2379 = vmul.f32 %v2342, %v2369
      %v2380 = vmul.f32 %v2343, %v2369
      %v2381 = vmul.f32 %v2344, %v2369
      %v2382 = vmul.f32 %v2345, %v2369
      %v2383 = vmul.f32 %v2346, %v2369
      %v2384 = vmul.f32 %v2347, %v2369
      %v2385 = vmul.f32 %v2348, %v2369
      %v2386 = vmul.f32 %v2349, %v2369
      %v2387 = vmul.f32 %v2350, %v2369
      %v2388 = vmul.f32 %v2351, %v2369
      %v2389 = vmul.f32 %v2352, %v2369
      %v2390 = vmul.f32 %v2353, %v2369
      %v2391 = vmul.f32 %v2354, %v2369
      %v2392 = vmul.f32 %v2355, %v2369
      %v2393 = vmul.f32 %v2356, %v2369
      %v2394 = vmul.f32 %v2357, %v2369
      %v2395 = vmul.f32 %v2358, %v2369
      %v2396 = vmul.f32 %v2359, %v2369
      %v2397 = vmul.f32 %v2360, %v2369
      %v2398 = vmul.f32 %v2361, %v2369
      %v2399 = vmul.f32 %v2362, %v2369
      %v2400 = vmul.f32 %v2363, %v2369
      %v2401 = vmul.f32 %v2364, %v2369
      %v2402 = vadd.f32 %v2301, %v2370
      %v2403 = vadd.f32 %v2302, %v2371
      %v2404 = vadd.f32 %v2303, %v2372
      %v2405 = vadd.f32 %v2304, %v2373
      %v2406 = vadd.f32 %v2305, %v2374
      %v2407 = vadd.f32 %v2306, %v2375
      %v2408 = vadd.f32 %v2307, %v2376
      %v2409 = vadd.f32 %v2308, %v2377
      %v2410 = vadd.f32 %v2309, %v2378
      %v2411 = vadd.f32 %v2310, %v2379
      %v2412 = vadd.f32 %v2311, %v2380
      %v2413 = vadd.f32 %v2312, %v2381
      %v2414 = vadd.f32 %v2313, %v2382
      %v2415 = vadd.f32 %v2314, %v2383
      %v2416 = vadd.f32 %v2315, %v2384
      %v2417 = vadd.f32 %v2316, %v2385
      %v2418 = vadd.f32 %v2317, %v2386
      %v2419 = vadd.f32 %v2318, %v2387
      %v2420 = vadd.f32 %v2319, %v2388
      %v2421 = vadd.f32 %v2320, %v2389
      %v2422 = vadd.f32 %v2321, %v2390
      %v2423 = vadd.f32 %v2322, %v2391
      %v2424 = vadd.f32 %v2323, %v2392
      %v2425 = vadd.f32 %v2324, %v2393
      %v2426 = vadd.f32 %v2325, %v2394
      %v2427 = vadd.f32 %v2326, %v2395
      %v2428 = vadd.f32 %v2327, %v2396
      %v2429 = vadd.f32 %v2328, %v2397
      %v2430 = vadd.f32 %v2329, %v2398
      %v2431 = vadd.f32 %v2330, %v2399
      %v2432 = vadd.f32 %v2331, %v2400
      %v2433 = vadd.f32 %v2332, %v2401
      %v2434 = vld [vmem:[%s2029 + $0x8] sm:$0xff]
      %v2435 = vld [vmem:[%s2029 + $0x10] sm:$0xff]
      %v2436 = vld [vmem:[%s2029 + $0x28] sm:$0xff]
      %v2437 = vld [vmem:[%s2029 + $0x30] sm:$0xff]
      %v2438 = vld [vmem:[%s2029 + $0x48] sm:$0xff]
      %v2439 = vld [vmem:[%s2029 + $0x50] sm:$0xff]
      %v2440 = vld [vmem:[%s2029 + $0x68] sm:$0xff]
      %v2441 = vld [vmem:[%s2029 + $0x70] sm:$0xff]
      %v2442 = vld [vmem:[%s2029 + $0x88] sm:$0xff]
      %v2443 = vld [vmem:[%s2029 + $0x90] sm:$0xff]
      %v2444 = vld [vmem:[%s2029 + $0xa8] sm:$0xff]
      %v2445 = vld [vmem:[%s2029 + $0xb0] sm:$0xff]
      %v2446 = vld [vmem:[%s2029 + $0xc8] sm:$0xff]
      %v2447 = vld [vmem:[%s2029 + $0xd0] sm:$0xff]
      %v2448 = vld [vmem:[%s2029 + $0xe8] sm:$0xff]
      %v2449 = vld [vmem:[%s2029 + $0xf0] sm:$0xff]
      %v2450 = vld [vmem:[%s2029 + $0x108] sm:$0xff]
      %v2451 = vld [vmem:[%s2029 + $0x110] sm:$0xff]
      %v2452 = vld [vmem:[%s2029 + $0x128] sm:$0xff]
      %v2453 = vld [vmem:[%s2029 + $0x130] sm:$0xff]
      %v2454 = vld [vmem:[%s2029 + $0x148] sm:$0xff]
      %v2455 = vld [vmem:[%s2029 + $0x150] sm:$0xff]
      %v2456 = vld [vmem:[%s2029 + $0x168] sm:$0xff]
      %v2457 = vld [vmem:[%s2029 + $0x170] sm:$0xff]
      %v2458 = vld [vmem:[%s2029 + $0x188] sm:$0xff]
      %v2459 = vld [vmem:[%s2029 + $0x190] sm:$0xff]
      %v2460 = vld [vmem:[%s2029 + $0x1a8] sm:$0xff]
      %v2461 = vld [vmem:[%s2029 + $0x1b0] sm:$0xff]
      %v2462 = vld [vmem:[%s2029 + $0x1c8] sm:$0xff]
      %v2463 = vld [vmem:[%s2029 + $0x1d0] sm:$0xff]
      %v2464 = vld [vmem:[%s2029 + $0x1e8] sm:$0xff]
      %v2465 = vld [vmem:[%s2029 + $0x1f0] sm:$0xff]
      %v2466 = vld [vmem:[%s5 + $0x4] sm:$0x1]
      %v2467 = vlaneseq
      %v2468 = vshrl.u32 %v2467, 7
      %v2469 = vsub.s32 0, %v2468
      %v2470 = vrot.slane %v2466, %v2469
      %v2471 = vmul.f32 %v2434, %v2470
      %v2472 = vmul.f32 %v2435, %v2470
      %v2473 = vmul.f32 %v2436, %v2470
      %v2474 = vmul.f32 %v2437, %v2470
      %v2475 = vmul.f32 %v2438, %v2470
      %v2476 = vmul.f32 %v2439, %v2470
      %v2477 = vmul.f32 %v2440, %v2470
      %v2478 = vmul.f32 %v2441, %v2470
      %v2479 = vmul.f32 %v2442, %v2470
      %v2480 = vmul.f32 %v2443, %v2470
      %v2481 = vmul.f32 %v2444, %v2470
      %v2482 = vmul.f32 %v2445, %v2470
      %v2483 = vmul.f32 %v2446, %v2470
      %v2484 = vmul.f32 %v2447, %v2470
      %v2485 = vmul.f32 %v2448, %v2470
      %v2486 = vmul.f32 %v2449, %v2470
      %v2487 = vmul.f32 %v2450, %v2470
      %v2488 = vmul.f32 %v2451, %v2470
      %v2489 = vmul.f32 %v2452, %v2470
      %v2490 = vmul.f32 %v2453, %v2470
      %v2491 = vmul.f32 %v2454, %v2470
      %v2492 = vmul.f32 %v2455, %v2470
      %v2493 = vmul.f32 %v2456, %v2470
      %v2494 = vmul.f32 %v2457, %v2470
      %v2495 = vmul.f32 %v2458, %v2470
      %v2496 = vmul.f32 %v2459, %v2470
      %v2497 = vmul.f32 %v2460, %v2470
      %v2498 = vmul.f32 %v2461, %v2470
      %v2499 = vmul.f32 %v2462, %v2470
      %v2500 = vmul.f32 %v2463, %v2470
      %v2501 = vmul.f32 %v2464, %v2470
      %v2502 = vmul.f32 %v2465, %v2470
      %v2503 = vadd.f32 %v2402, %v2471
      %v2504 = vadd.f32 %v2403, %v2472
      %v2505 = vadd.f32 %v2404, %v2473
      %v2506 = vadd.f32 %v2405, %v2474
      %v2507 = vadd.f32 %v2406, %v2475
      %v2508 = vadd.f32 %v2407, %v2476
      %v2509 = vadd.f32 %v2408, %v2477
      %v2510 = vadd.f32 %v2409, %v2478
      %v2511 = vadd.f32 %v2410, %v2479
      %v2512 = vadd.f32 %v2411, %v2480
      %v2513 = vadd.f32 %v2412, %v2481
      %v2514 = vadd.f32 %v2413, %v2482
      %v2515 = vadd.f32 %v2414, %v2483
      %v2516 = vadd.f32 %v2415, %v2484
      %v2517 = vadd.f32 %v2416, %v2485
      %v2518 = vadd.f32 %v2417, %v2486
      %v2519 = vadd.f32 %v2418, %v2487
      %v2520 = vadd.f32 %v2419, %v2488
      %v2521 = vadd.f32 %v2420, %v2489
      %v2522 = vadd.f32 %v2421, %v2490
      %v2523 = vadd.f32 %v2422, %v2491
      %v2524 = vadd.f32 %v2423, %v2492
      %v2525 = vadd.f32 %v2424, %v2493
      %v2526 = vadd.f32 %v2425, %v2494
      %v2527 = vadd.f32 %v2426, %v2495
      %v2528 = vadd.f32 %v2427, %v2496
      %v2529 = vadd.f32 %v2428, %v2497
      %v2530 = vadd.f32 %v2429, %v2498
      %v2531 = vadd.f32 %v2430, %v2499
      %v2532 = vadd.f32 %v2431, %v2500
      %v2533 = vadd.f32 %v2432, %v2501
      %v2534 = vadd.f32 %v2433, %v2502
      %v2535 = vld [vmem:[%s2029 + $0x9] sm:$0xff]
      %v2536 = vld [vmem:[%s2029 + $0x11] sm:$0xff]
      %v2537 = vld [vmem:[%s2029 + $0x29] sm:$0xff]
      %v2538 = vld [vmem:[%s2029 + $0x31] sm:$0xff]
      %v2539 = vld [vmem:[%s2029 + $0x49] sm:$0xff]
      %v2540 = vld [vmem:[%s2029 + $0x51] sm:$0xff]
      %v2541 = vld [vmem:[%s2029 + $0x69] sm:$0xff]
      %v2542 = vld [vmem:[%s2029 + $0x71] sm:$0xff]
      %v2543 = vld [vmem:[%s2029 + $0x89] sm:$0xff]
      %v2544 = vld [vmem:[%s2029 + $0x91] sm:$0xff]
      %v2545 = vld [vmem:[%s2029 + $0xa9] sm:$0xff]
      %v2546 = vld [vmem:[%s2029 + $0xb1] sm:$0xff]
      %v2547 = vld [vmem:[%s2029 + $0xc9] sm:$0xff]
      %v2548 = vld [vmem:[%s2029 + $0xd1] sm:$0xff]
      %v2549 = vld [vmem:[%s2029 + $0xe9] sm:$0xff]
      %v2550 = vld [vmem:[%s2029 + $0xf1] sm:$0xff]
      %v2551 = vld [vmem:[%s2029 + $0x109] sm:$0xff]
      %v2552 = vld [vmem:[%s2029 + $0x111] sm:$0xff]
      %v2553 = vld [vmem:[%s2029 + $0x129] sm:$0xff]
      %v2554 = vld [vmem:[%s2029 + $0x131] sm:$0xff]
      %v2555 = vld [vmem:[%s2029 + $0x149] sm:$0xff]
      %v2556 = vld [vmem:[%s2029 + $0x151] sm:$0xff]
      %v2557 = vld [vmem:[%s2029 + $0x169] sm:$0xff]
      %v2558 = vld [vmem:[%s2029 + $0x171] sm:$0xff]
      %v2559 = vld [vmem:[%s2029 + $0x189] sm:$0xff]
      %v2560 = vld [vmem:[%s2029 + $0x191] sm:$0xff]
      %v2561 = vld [vmem:[%s2029 + $0x1a9] sm:$0xff]
      %v2562 = vld [vmem:[%s2029 + $0x1b1] sm:$0xff]
      %v2563 = vld [vmem:[%s2029 + $0x1c9] sm:$0xff]
      %v2564 = vld [vmem:[%s2029 + $0x1d1] sm:$0xff]
      %v2565 = vld [vmem:[%s2029 + $0x1e9] sm:$0xff]
      %v2566 = vld [vmem:[%s2029 + $0x1f1] sm:$0xff]
      %v2567 = vld [vmem:[%s5 + $0x5] sm:$0x1]
      %v2568 = vlaneseq
      %v2569 = vshrl.u32 %v2568, 7
      %v2570 = vsub.s32 0, %v2569
      %v2571 = vrot.slane %v2567, %v2570
      %v2572 = vmul.f32 %v2535, %v2571
      %v2573 = vmul.f32 %v2536, %v2571
      %v2574 = vmul.f32 %v2537, %v2571
      %v2575 = vmul.f32 %v2538, %v2571
      %v2576 = vmul.f32 %v2539, %v2571
      %v2577 = vmul.f32 %v2540, %v2571
      %v2578 = vmul.f32 %v2541, %v2571
      %v2579 = vmul.f32 %v2542, %v2571
      %v2580 = vmul.f32 %v2543, %v2571
      %v2581 = vmul.f32 %v2544, %v2571
      %v2582 = vmul.f32 %v2545, %v2571
      %v2583 = vmul.f32 %v2546, %v2571
      %v2584 = vmul.f32 %v2547, %v2571
      %v2585 = vmul.f32 %v2548, %v2571
      %v2586 = vmul.f32 %v2549, %v2571
      %v2587 = vmul.f32 %v2550, %v2571
      %v2588 = vmul.f32 %v2551, %v2571
      %v2589 = vmul.f32 %v2552, %v2571
      %v2590 = vmul.f32 %v2553, %v2571
      %v2591 = vmul.f32 %v2554, %v2571
      %v2592 = vmul.f32 %v2555, %v2571
      %v2593 = vmul.f32 %v2556, %v2571
      %v2594 = vmul.f32 %v2557, %v2571
      %v2595 = vmul.f32 %v2558, %v2571
      %v2596 = vmul.f32 %v2559, %v2571
      %v2597 = vmul.f32 %v2560, %v2571
      %v2598 = vmul.f32 %v2561, %v2571
      %v2599 = vmul.f32 %v2562, %v2571
      %v2600 = vmul.f32 %v2563, %v2571
      %v2601 = vmul.f32 %v2564, %v2571
      %v2602 = vmul.f32 %v2565, %v2571
      %v2603 = vmul.f32 %v2566, %v2571
      %v2604 = vadd.f32 %v2503, %v2572
      %v2605 = vadd.f32 %v2504, %v2573
      %v2606 = vadd.f32 %v2505, %v2574
      %v2607 = vadd.f32 %v2506, %v2575
      %v2608 = vadd.f32 %v2507, %v2576
      %v2609 = vadd.f32 %v2508, %v2577
      %v2610 = vadd.f32 %v2509, %v2578
      %v2611 = vadd.f32 %v2510, %v2579
      %v2612 = vadd.f32 %v2511, %v2580
      %v2613 = vadd.f32 %v2512, %v2581
      %v2614 = vadd.f32 %v2513, %v2582
      %v2615 = vadd.f32 %v2514, %v2583
      %v2616 = vadd.f32 %v2515, %v2584
      %v2617 = vadd.f32 %v2516, %v2585
      %v2618 = vadd.f32 %v2517, %v2586
      %v2619 = vadd.f32 %v2518, %v2587
      %v2620 = vadd.f32 %v2519, %v2588
      %v2621 = vadd.f32 %v2520, %v2589
      %v2622 = vadd.f32 %v2521, %v2590
      %v2623 = vadd.f32 %v2522, %v2591
      %v2624 = vadd.f32 %v2523, %v2592
      %v2625 = vadd.f32 %v2524, %v2593
      %v2626 = vadd.f32 %v2525, %v2594
      %v2627 = vadd.f32 %v2526, %v2595
      %v2628 = vadd.f32 %v2527, %v2596
      %v2629 = vadd.f32 %v2528, %v2597
      %v2630 = vadd.f32 %v2529, %v2598
      %v2631 = vadd.f32 %v2530, %v2599
      %v2632 = vadd.f32 %v2531, %v2600
      %v2633 = vadd.f32 %v2532, %v2601
      %v2634 = vadd.f32 %v2533, %v2602
      %v2635 = vadd.f32 %v2534, %v2603
      %s2636 = scalar_lea.vmem [#allocation3], 64
      %v2637 = vld [vmem:[%s2636 + $0x7] sm:$0xff]
      %v2638 = vld [vmem:[%s2636 + $0xf] sm:$0xff]
      %v2639 = vld [vmem:[%s2636 + $0x27] sm:$0xff]
      %v2640 = vld [vmem:[%s2636 + $0x2f] sm:$0xff]
      %v2641 = vld [vmem:[%s2636 + $0x47] sm:$0xff]
      %v2642 = vld [vmem:[%s2636 + $0x4f] sm:$0xff]
      %v2643 = vld [vmem:[%s2636 + $0x67] sm:$0xff]
      %v2644 = vld [vmem:[%s2636 + $0x6f] sm:$0xff]
      %v2645 = vld [vmem:[%s2636 + $0x87] sm:$0xff]
      %v2646 = vld [vmem:[%s2636 + $0x8f] sm:$0xff]
      %v2647 = vld [vmem:[%s2636 + $0xa7] sm:$0xff]
      %v2648 = vld [vmem:[%s2636 + $0xaf] sm:$0xff]
      %v2649 = vld [vmem:[%s2636 + $0xc7] sm:$0xff]
      %v2650 = vld [vmem:[%s2636 + $0xcf] sm:$0xff]
      %v2651 = vld [vmem:[%s2636 + $0xe7] sm:$0xff]
      %v2652 = vld [vmem:[%s2636 + $0xef] sm:$0xff]
      %v2653 = vld [vmem:[%s2636 + $0x107] sm:$0xff]
      %v2654 = vld [vmem:[%s2636 + $0x10f] sm:$0xff]
      %v2655 = vld [vmem:[%s2636 + $0x127] sm:$0xff]
      %v2656 = vld [vmem:[%s2636 + $0x12f] sm:$0xff]
      %v2657 = vld [vmem:[%s2636 + $0x147] sm:$0xff]
      %v2658 = vld [vmem:[%s2636 + $0x14f] sm:$0xff]
      %v2659 = vld [vmem:[%s2636 + $0x167] sm:$0xff]
      %v2660 = vld [vmem:[%s2636 + $0x16f] sm:$0xff]
      %v2661 = vld [vmem:[%s2636 + $0x187] sm:$0xff]
      %v2662 = vld [vmem:[%s2636 + $0x18f] sm:$0xff]
      %v2663 = vld [vmem:[%s2636 + $0x1a7] sm:$0xff]
      %v2664 = vld [vmem:[%s2636 + $0x1af] sm:$0xff]
      %v2665 = vld [vmem:[%s2636 + $0x1c7] sm:$0xff]
      %v2666 = vld [vmem:[%s2636 + $0x1cf] sm:$0xff]
      %v2667 = vld [vmem:[%s2636 + $0x1e7] sm:$0xff]
      %v2668 = vld [vmem:[%s2636 + $0x1ef] sm:$0xff]
      %v2669 = vld [vmem:[%s5 + $0x6] sm:$0x1]
      %v2670 = vlaneseq
      %v2671 = vshrl.u32 %v2670, 7
      %v2672 = vsub.s32 0, %v2671
      %v2673 = vrot.slane %v2669, %v2672
      %v2674 = vmul.f32 %v2637, %v2673
      %v2675 = vmul.f32 %v2638, %v2673
      %v2676 = vmul.f32 %v2639, %v2673
      %v2677 = vmul.f32 %v2640, %v2673
      %v2678 = vmul.f32 %v2641, %v2673
      %v2679 = vmul.f32 %v2642, %v2673
      %v2680 = vmul.f32 %v2643, %v2673
      %v2681 = vmul.f32 %v2644, %v2673
      %v2682 = vmul.f32 %v2645, %v2673
      %v2683 = vmul.f32 %v2646, %v2673
      %v2684 = vmul.f32 %v2647, %v2673
      %v2685 = vmul.f32 %v2648, %v2673
      %v2686 = vmul.f32 %v2649, %v2673
      %v2687 = vmul.f32 %v2650, %v2673
      %v2688 = vmul.f32 %v2651, %v2673
      %v2689 = vmul.f32 %v2652, %v2673
      %v2690 = vmul.f32 %v2653, %v2673
      %v2691 = vmul.f32 %v2654, %v2673
      %v2692 = vmul.f32 %v2655, %v2673
      %v2693 = vmul.f32 %v2656, %v2673
      %v2694 = vmul.f32 %v2657, %v2673
      %v2695 = vmul.f32 %v2658, %v2673
      %v2696 = vmul.f32 %v2659, %v2673
      %v2697 = vmul.f32 %v2660, %v2673
      %v2698 = vmul.f32 %v2661, %v2673
      %v2699 = vmul.f32 %v2662, %v2673
      %v2700 = vmul.f32 %v2663, %v2673
      %v2701 = vmul.f32 %v2664, %v2673
      %v2702 = vmul.f32 %v2665, %v2673
      %v2703 = vmul.f32 %v2666, %v2673
      %v2704 = vmul.f32 %v2667, %v2673
      %v2705 = vmul.f32 %v2668, %v2673
      %v2706 = vadd.f32 %v2604, %v2674
      %v2707 = vadd.f32 %v2605, %v2675
      %v2708 = vadd.f32 %v2606, %v2676
      %v2709 = vadd.f32 %v2607, %v2677
      %v2710 = vadd.f32 %v2608, %v2678
      %v2711 = vadd.f32 %v2609, %v2679
      %v2712 = vadd.f32 %v2610, %v2680
      %v2713 = vadd.f32 %v2611, %v2681
      %v2714 = vadd.f32 %v2612, %v2682
      %v2715 = vadd.f32 %v2613, %v2683
      %v2716 = vadd.f32 %v2614, %v2684
      %v2717 = vadd.f32 %v2615, %v2685
      %v2718 = vadd.f32 %v2616, %v2686
      %v2719 = vadd.f32 %v2617, %v2687
      %v2720 = vadd.f32 %v2618, %v2688
      %v2721 = vadd.f32 %v2619, %v2689
      %v2722 = vadd.f32 %v2620, %v2690
      %v2723 = vadd.f32 %v2621, %v2691
      %v2724 = vadd.f32 %v2622, %v2692
      %v2725 = vadd.f32 %v2623, %v2693
      %v2726 = vadd.f32 %v2624, %v2694
      %v2727 = vadd.f32 %v2625, %v2695
      %v2728 = vadd.f32 %v2626, %v2696
      %v2729 = vadd.f32 %v2627, %v2697
      %v2730 = vadd.f32 %v2628, %v2698
      %v2731 = vadd.f32 %v2629, %v2699
      %v2732 = vadd.f32 %v2630, %v2700
      %v2733 = vadd.f32 %v2631, %v2701
      %v2734 = vadd.f32 %v2632, %v2702
      %v2735 = vadd.f32 %v2633, %v2703
      %v2736 = vadd.f32 %v2634, %v2704
      %v2737 = vadd.f32 %v2635, %v2705
      %v2738 = vld [vmem:[%s2636 + $0x8] sm:$0xff]
      %v2739 = vld [vmem:[%s2636 + $0x10] sm:$0xff]
      %v2740 = vld [vmem:[%s2636 + $0x28] sm:$0xff]
      %v2741 = vld [vmem:[%s2636 + $0x30] sm:$0xff]
      %v2742 = vld [vmem:[%s2636 + $0x48] sm:$0xff]
      %v2743 = vld [vmem:[%s2636 + $0x50] sm:$0xff]
      %v2744 = vld [vmem:[%s2636 + $0x68] sm:$0xff]
      %v2745 = vld [vmem:[%s2636 + $0x70] sm:$0xff]
      %v2746 = vld [vmem:[%s2636 + $0x88] sm:$0xff]
      %v2747 = vld [vmem:[%s2636 + $0x90] sm:$0xff]
      %v2748 = vld [vmem:[%s2636 + $0xa8] sm:$0xff]
      %v2749 = vld [vmem:[%s2636 + $0xb0] sm:$0xff]
      %v2750 = vld [vmem:[%s2636 + $0xc8] sm:$0xff]
      %v2751 = vld [vmem:[%s2636 + $0xd0] sm:$0xff]
      %v2752 = vld [vmem:[%s2636 + $0xe8] sm:$0xff]
      %v2753 = vld [vmem:[%s2636 + $0xf0] sm:$0xff]
      %v2754 = vld [vmem:[%s2636 + $0x108] sm:$0xff]
      %v2755 = vld [vmem:[%s2636 + $0x110] sm:$0xff]
      %v2756 = vld [vmem:[%s2636 + $0x128] sm:$0xff]
      %v2757 = vld [vmem:[%s2636 + $0x130] sm:$0xff]
      %v2758 = vld [vmem:[%s2636 + $0x148] sm:$0xff]
      %v2759 = vld [vmem:[%s2636 + $0x150] sm:$0xff]
      %v2760 = vld [vmem:[%s2636 + $0x168] sm:$0xff]
      %v2761 = vld [vmem:[%s2636 + $0x170] sm:$0xff]
      %v2762 = vld [vmem:[%s2636 + $0x188] sm:$0xff]
      %v2763 = vld [vmem:[%s2636 + $0x190] sm:$0xff]
      %v2764 = vld [vmem:[%s2636 + $0x1a8] sm:$0xff]
      %v2765 = vld [vmem:[%s2636 + $0x1b0] sm:$0xff]
      %v2766 = vld [vmem:[%s2636 + $0x1c8] sm:$0xff]
      %v2767 = vld [vmem:[%s2636 + $0x1d0] sm:$0xff]
      %v2768 = vld [vmem:[%s2636 + $0x1e8] sm:$0xff]
      %v2769 = vld [vmem:[%s2636 + $0x1f0] sm:$0xff]
      %v2770 = vld [vmem:[%s5 + $0x7] sm:$0x1]
      %v2771 = vlaneseq
      %v2772 = vshrl.u32 %v2771, 7
      %v2773 = vsub.s32 0, %v2772
      %v2774 = vrot.slane %v2770, %v2773
      %v2775 = vmul.f32 %v2738, %v2774
      %v2776 = vmul.f32 %v2739, %v2774
      %v2777 = vmul.f32 %v2740, %v2774
      %v2778 = vmul.f32 %v2741, %v2774
      %v2779 = vmul.f32 %v2742, %v2774
      %v2780 = vmul.f32 %v2743, %v2774
      %v2781 = vmul.f32 %v2744, %v2774
      %v2782 = vmul.f32 %v2745, %v2774
      %v2783 = vmul.f32 %v2746, %v2774
      %v2784 = vmul.f32 %v2747, %v2774
      %v2785 = vmul.f32 %v2748, %v2774
      %v2786 = vmul.f32 %v2749, %v2774
      %v2787 = vmul.f32 %v2750, %v2774
      %v2788 = vmul.f32 %v2751, %v2774
      %v2789 = vmul.f32 %v2752, %v2774
      %v2790 = vmul.f32 %v2753, %v2774
      %v2791 = vmul.f32 %v2754, %v2774
      %v2792 = vmul.f32 %v2755, %v2774
      %v2793 = vmul.f32 %v2756, %v2774
      %v2794 = vmul.f32 %v2757, %v2774
      %v2795 = vmul.f32 %v2758, %v2774
      %v2796 = vmul.f32 %v2759, %v2774
      %v2797 = vmul.f32 %v2760, %v2774
      %v2798 = vmul.f32 %v2761, %v2774
      %v2799 = vmul.f32 %v2762, %v2774
      %v2800 = vmul.f32 %v2763, %v2774
      %v2801 = vmul.f32 %v2764, %v2774
      %v2802 = vmul.f32 %v2765, %v2774
      %v2803 = vmul.f32 %v2766, %v2774
      %v2804 = vmul.f32 %v2767, %v2774
      %v2805 = vmul.f32 %v2768, %v2774
      %v2806 = vmul.f32 %v2769, %v2774
      %v2807 = vadd.f32 %v2706, %v2775
      %v2808 = vadd.f32 %v2707, %v2776
      %v2809 = vadd.f32 %v2708, %v2777
      %v2810 = vadd.f32 %v2709, %v2778
      %v2811 = vadd.f32 %v2710, %v2779
      %v2812 = vadd.f32 %v2711, %v2780
      %v2813 = vadd.f32 %v2712, %v2781
      %v2814 = vadd.f32 %v2713, %v2782
      %v2815 = vadd.f32 %v2714, %v2783
      %v2816 = vadd.f32 %v2715, %v2784
      %v2817 = vadd.f32 %v2716, %v2785
      %v2818 = vadd.f32 %v2717, %v2786
      %v2819 = vadd.f32 %v2718, %v2787
      %v2820 = vadd.f32 %v2719, %v2788
      %v2821 = vadd.f32 %v2720, %v2789
      %v2822 = vadd.f32 %v2721, %v2790
      %v2823 = vadd.f32 %v2722, %v2791
      %v2824 = vadd.f32 %v2723, %v2792
      %v2825 = vadd.f32 %v2724, %v2793
      %v2826 = vadd.f32 %v2725, %v2794
      %v2827 = vadd.f32 %v2726, %v2795
      %v2828 = vadd.f32 %v2727, %v2796
      %v2829 = vadd.f32 %v2728, %v2797
      %v2830 = vadd.f32 %v2729, %v2798
      %v2831 = vadd.f32 %v2730, %v2799
      %v2832 = vadd.f32 %v2731, %v2800
      %v2833 = vadd.f32 %v2732, %v2801
      %v2834 = vadd.f32 %v2733, %v2802
      %v2835 = vadd.f32 %v2734, %v2803
      %v2836 = vadd.f32 %v2735, %v2804
      %v2837 = vadd.f32 %v2736, %v2805
      %v2838 = vadd.f32 %v2737, %v2806
      %v2839 = vld [vmem:[%s2636 + $0x9] sm:$0xff]
      %v2840 = vld [vmem:[%s2636 + $0x11] sm:$0xff]
      %v2841 = vld [vmem:[%s2636 + $0x29] sm:$0xff]
      %v2842 = vld [vmem:[%s2636 + $0x31] sm:$0xff]
      %v2843 = vld [vmem:[%s2636 + $0x49] sm:$0xff]
      %v2844 = vld [vmem:[%s2636 + $0x51] sm:$0xff]
      %v2845 = vld [vmem:[%s2636 + $0x69] sm:$0xff]
      %v2846 = vld [vmem:[%s2636 + $0x71] sm:$0xff]
      %v2847 = vld [vmem:[%s2636 + $0x89] sm:$0xff]
      %v2848 = vld [vmem:[%s2636 + $0x91] sm:$0xff]
      %v2849 = vld [vmem:[%s2636 + $0xa9] sm:$0xff]
      %v2850 = vld [vmem:[%s2636 + $0xb1] sm:$0xff]
      %v2851 = vld [vmem:[%s2636 + $0xc9] sm:$0xff]
      %v2852 = vld [vmem:[%s2636 + $0xd1] sm:$0xff]
      %v2853 = vld [vmem:[%s2636 + $0xe9] sm:$0xff]
      %v2854 = vld [vmem:[%s2636 + $0xf1] sm:$0xff]
      %v2855 = vld [vmem:[%s2636 + $0x109] sm:$0xff]
      %v2856 = vld [vmem:[%s2636 + $0x111] sm:$0xff]
      %v2857 = vld [vmem:[%s2636 + $0x129] sm:$0xff]
      %v2858 = vld [vmem:[%s2636 + $0x131] sm:$0xff]
      %v2859 = vld [vmem:[%s2636 + $0x149] sm:$0xff]
      %v2860 = vld [vmem:[%s2636 + $0x151] sm:$0xff]
      %v2861 = vld [vmem:[%s2636 + $0x169] sm:$0xff]
      %v2862 = vld [vmem:[%s2636 + $0x171] sm:$0xff]
      %v2863 = vld [vmem:[%s2636 + $0x189] sm:$0xff]
      %v2864 = vld [vmem:[%s2636 + $0x191] sm:$0xff]
      %v2865 = vld [vmem:[%s2636 + $0x1a9] sm:$0xff]
      %v2866 = vld [vmem:[%s2636 + $0x1b1] sm:$0xff]
      %v2867 = vld [vmem:[%s2636 + $0x1c9] sm:$0xff]
      %v2868 = vld [vmem:[%s2636 + $0x1d1] sm:$0xff]
      %v2869 = vld [vmem:[%s2636 + $0x1e9] sm:$0xff]
      %v2870 = vld [vmem:[%s2636 + $0x1f1] sm:$0xff]
      %v2871 = vld [vmem:[%s5 + $0x8] sm:$0x1]
      %v2872 = vlaneseq
      %v2873 = vshrl.u32 %v2872, 7
      %v2874 = vsub.s32 0, %v2873
      %v2875 = vrot.slane %v2871, %v2874
      %v2876 = vmul.f32 %v2839, %v2875
      %v2877 = vmul.f32 %v2840, %v2875
      %v2878 = vmul.f32 %v2841, %v2875
      %v2879 = vmul.f32 %v2842, %v2875
      %v2880 = vmul.f32 %v2843, %v2875
      %v2881 = vmul.f32 %v2844, %v2875
      %v2882 = vmul.f32 %v2845, %v2875
      %v2883 = vmul.f32 %v2846, %v2875
      %v2884 = vmul.f32 %v2847, %v2875
      %v2885 = vmul.f32 %v2848, %v2875
      %v2886 = vmul.f32 %v2849, %v2875
      %v2887 = vmul.f32 %v2850, %v2875
      %v2888 = vmul.f32 %v2851, %v2875
      %v2889 = vmul.f32 %v2852, %v2875
      %v2890 = vmul.f32 %v2853, %v2875
      %v2891 = vmul.f32 %v2854, %v2875
      %v2892 = vmul.f32 %v2855, %v2875
      %v2893 = vmul.f32 %v2856, %v2875
      %v2894 = vmul.f32 %v2857, %v2875
      %v2895 = vmul.f32 %v2858, %v2875
      %v2896 = vmul.f32 %v2859, %v2875
      %v2897 = vmul.f32 %v2860, %v2875
      %v2898 = vmul.f32 %v2861, %v2875
      %v2899 = vmul.f32 %v2862, %v2875
      %v2900 = vmul.f32 %v2863, %v2875
      %v2901 = vmul.f32 %v2864, %v2875
      %v2902 = vmul.f32 %v2865, %v2875
      %v2903 = vmul.f32 %v2866, %v2875
      %v2904 = vmul.f32 %v2867, %v2875
      %v2905 = vmul.f32 %v2868, %v2875
      %v2906 = vmul.f32 %v2869, %v2875
      %v2907 = vmul.f32 %v2870, %v2875
      %v2908 = vadd.f32 %v2807, %v2876
      %v2909 = vadd.f32 %v2808, %v2877
      %v2910 = vadd.f32 %v2809, %v2878
      %v2911 = vadd.f32 %v2810, %v2879
      %v2912 = vadd.f32 %v2811, %v2880
      %v2913 = vadd.f32 %v2812, %v2881
      %v2914 = vadd.f32 %v2813, %v2882
      %v2915 = vadd.f32 %v2814, %v2883
      %v2916 = vadd.f32 %v2815, %v2884
      %v2917 = vadd.f32 %v2816, %v2885
      %v2918 = vadd.f32 %v2817, %v2886
      %v2919 = vadd.f32 %v2818, %v2887
      %v2920 = vadd.f32 %v2819, %v2888
      %v2921 = vadd.f32 %v2820, %v2889
      %v2922 = vadd.f32 %v2821, %v2890
      %v2923 = vadd.f32 %v2822, %v2891
      %v2924 = vadd.f32 %v2823, %v2892
      %v2925 = vadd.f32 %v2824, %v2893
      %v2926 = vadd.f32 %v2825, %v2894
      %v2927 = vadd.f32 %v2826, %v2895
      %v2928 = vadd.f32 %v2827, %v2896
      %v2929 = vadd.f32 %v2828, %v2897
      %v2930 = vadd.f32 %v2829, %v2898
      %v2931 = vadd.f32 %v2830, %v2899
      %v2932 = vadd.f32 %v2831, %v2900
      %v2933 = vadd.f32 %v2832, %v2901
      %v2934 = vadd.f32 %v2833, %v2902
      %v2935 = vadd.f32 %v2834, %v2903
      %v2936 = vadd.f32 %v2835, %v2904
      %v2937 = vadd.f32 %v2836, %v2905
      %v2938 = vadd.f32 %v2837, %v2906
      %v2939 = vadd.f32 %v2838, %v2907
      %v2940 = vld [vmem:[%s6] sm:$0x1]
      %v2941 = vlaneseq
      %v2942 = vshrl.u32 %v2941, 7
      %v2943 = vsub.s32 0, %v2942
      %v2944 = vrot.slane %v2940, %v2943
      %v2945 = vmul.f32 %v2908, %v2944
      %v2946 = vmul.f32 %v2909, %v2944
      %v2947 = vmul.f32 %v2910, %v2944
      %v2948 = vmul.f32 %v2911, %v2944
      %v2949 = vmul.f32 %v2912, %v2944
      %v2950 = vmul.f32 %v2913, %v2944
      %v2951 = vmul.f32 %v2914, %v2944
      %v2952 = vmul.f32 %v2915, %v2944
      %v2953 = vmul.f32 %v2916, %v2944
      %v2954 = vmul.f32 %v2917, %v2944
      %v2955 = vmul.f32 %v2918, %v2944
      %v2956 = vmul.f32 %v2919, %v2944
      %v2957 = vmul.f32 %v2920, %v2944
      %v2958 = vmul.f32 %v2921, %v2944
      %v2959 = vmul.f32 %v2922, %v2944
      %v2960 = vmul.f32 %v2923, %v2944
      %v2961 = vmul.f32 %v2924, %v2944
      %v2962 = vmul.f32 %v2925, %v2944
      %v2963 = vmul.f32 %v2926, %v2944
      %v2964 = vmul.f32 %v2927, %v2944
      %v2965 = vmul.f32 %v2928, %v2944
      %v2966 = vmul.f32 %v2929, %v2944
      %v2967 = vmul.f32 %v2930, %v2944
      %v2968 = vmul.f32 %v2931, %v2944
      %v2969 = vmul.f32 %v2932, %v2944
      %v2970 = vmul.f32 %v2933, %v2944
      %v2971 = vmul.f32 %v2934, %v2944
      %v2972 = vmul.f32 %v2935, %v2944
      %v2973 = vmul.f32 %v2936, %v2944
      %v2974 = vmul.f32 %v2937, %v2944
      %v2975 = vmul.f32 %v2938, %v2944
      %v2976 = vmul.f32 %v2939, %v2944
      %v2977 = vld [vmem:[%s6 + $0x1] sm:$0x1]
      %v2978 = vlaneseq
      %v2979 = vshrl.u32 %v2978, 7
      %v2980 = vsub.s32 0, %v2979
      %v2981 = vrot.slane %v2977, %v2980
      %v2982 = vadd.f32 %v2945, %v2981
      %v2983 = vadd.f32 %v2946, %v2981
      %v2984 = vadd.f32 %v2947, %v2981
      %v2985 = vadd.f32 %v2948, %v2981
      %v2986 = vadd.f32 %v2949, %v2981
      %v2987 = vadd.f32 %v2950, %v2981
      %v2988 = vadd.f32 %v2951, %v2981
      %v2989 = vadd.f32 %v2952, %v2981
      %v2990 = vadd.f32 %v2953, %v2981
      %v2991 = vadd.f32 %v2954, %v2981
      %v2992 = vadd.f32 %v2955, %v2981
      %v2993 = vadd.f32 %v2956, %v2981
      %v2994 = vadd.f32 %v2957, %v2981
      %v2995 = vadd.f32 %v2958, %v2981
      %v2996 = vadd.f32 %v2959, %v2981
      %v2997 = vadd.f32 %v2960, %v2981
      %v2998 = vadd.f32 %v2961, %v2981
      %v2999 = vadd.f32 %v2962, %v2981
      %v3000 = vadd.f32 %v2963, %v2981
      %v3001 = vadd.f32 %v2964, %v2981
      %v3002 = vadd.f32 %v2965, %v2981
      %v3003 = vadd.f32 %v2966, %v2981
      %v3004 = vadd.f32 %v2967, %v2981
      %v3005 = vadd.f32 %v2968, %v2981
      %v3006 = vadd.f32 %v2969, %v2981
      %v3007 = vadd.f32 %v2970, %v2981
      %v3008 = vadd.f32 %v2971, %v2981
      %v3009 = vadd.f32 %v2972, %v2981
      %v3010 = vadd.f32 %v2973, %v2981
      %v3011 = vadd.f32 %v2974, %v2981
      %v3012 = vadd.f32 %v2975, %v2981
      %v3013 = vadd.f32 %v2976, %v2981
      %v3014 = vpack.c.bf16 %v2983, %v2982
      %v3015 = vpack.c.bf16 %v2985, %v2984
      %v3016 = vpack.c.bf16 %v2987, %v2986
      %v3017 = vpack.c.bf16 %v2989, %v2988
      %v3018 = vpack.c.bf16 %v2991, %v2990
      %v3019 = vpack.c.bf16 %v2993, %v2992
      %v3020 = vpack.c.bf16 %v2995, %v2994
      %v3021 = vpack.c.bf16 %v2997, %v2996
      %v3022 = vpack.c.bf16 %v2999, %v2998
      %v3023 = vpack.c.bf16 %v3001, %v3000
      %v3024 = vpack.c.bf16 %v3003, %v3002
      %v3025 = vpack.c.bf16 %v3005, %v3004
      %v3026 = vpack.c.bf16 %v3007, %v3006
      %v3027 = vpack.c.bf16 %v3009, %v3008
      %v3028 = vpack.c.bf16 %v3011, %v3010
      %v3029 = vpack.c.bf16 %v3013, %v3012
      %v3030 = vld [vmem:[%s7] sm:$0x3]
      %v3032 = vsel %vm1955, %v3014, 0
      %v3035 = vsel %vm1955, %v3015, 0
      %v3038 = vsel %vm1955, %v3016, 0
      %v3041 = vsel %vm1955, %v3017, 0
      %v3044 = vsel %vm1955, %v3018, 0
      %v3047 = vsel %vm1955, %v3019, 0
      %v3050 = vsel %vm1955, %v3020, 0
      %v3053 = vsel %vm1955, %v3021, 0
      %v3056 = vsel %vm1955, %v3022, 0
      %v3059 = vsel %vm1955, %v3023, 0
      %v3062 = vsel %vm1955, %v3024, 0
      %v3065 = vsel %vm1955, %v3025, 0
      %v3068 = vsel %vm1955, %v3026, 0
      %v3071 = vsel %vm1955, %v3027, 0
      %v3074 = vsel %vm1955, %v3028, 0
      %v3077 = vsel %vm1955, %v3029, 0
      %vm3079 = vcmask 1041408
      %v3081 = vsel %vm3079, %v3030, 0
      %3083 = vmatprep.subr.bf16.mxu0 0
      %3084 = vmatpush1.bf16.msra.mxu0 %v3081
      %3085 = vmatprep.subr.bf16.mxu0 0
      %3086 = vmatpush1.bf16.msra.mxu0 0
      %3087 = vmatprep.subr.bf16.mxu0 0
      %3088 = vmatpush1.bf16.msra.mxu0 0
      %3089 = vmatprep.subr.bf16.mxu0 0
      %3090 = vmatpush1.bf16.msra.mxu0 0
      %3091 = vmatprep.subr.bf16.mxu0 0
      %3092 = vmatpush1.bf16.msra.mxu0 0
      %3093 = vmatprep.subr.bf16.mxu0 0
      %3094 = vmatpush1.bf16.msra.mxu0 0
      %3095 = vmatprep.subr.bf16.mxu0 0
      %3096 = vmatpush1.bf16.msra.mxu0 0
      %3097 = vmatprep.subr.bf16.mxu0 0
      %3098 = vmatpush1.bf16.msra.mxu0 0
      %3099 = vmatprep.subr.bf16.mxu0 0
      %3100 = vmatpush1.bf16.msra.mxu0 0
      %3101 = vmatprep.subr.bf16.mxu0 0
      %3102 = vmatpush1.bf16.msra.mxu0 0
      %3103 = vmatprep.subr.bf16.mxu0 0
      %3104 = vmatpush1.bf16.msra.mxu0 0
      %3105 = vmatprep.subr.bf16.mxu0 0
      %3106 = vmatpush1.bf16.msra.mxu0 0
      %3107 = vmatprep.subr.bf16.mxu0 0
      %3108 = vmatpush1.bf16.msra.mxu0 0
      %3109 = vmatprep.subr.bf16.mxu0 0
      %3110 = vmatpush1.bf16.msra.mxu0 0
      %3111 = vmatprep.subr.bf16.mxu0 0
      %3112 = vmatpush1.bf16.msra.mxu0 0
      %3113 = vmatprep.subr.bf16.mxu0 0
      %3114 = vmatpush1.bf16.msra.mxu0 0
      %3115 = vmatprep.mubr.bf16.mxu0 0
      %3116 = vmatmul.mubr.bf16.gmra.mrb[0].mxu0 %v3032
      %v3117 = vpop.f32.mrb[0].mxu0
      %v3118 = vadd.f32 0.0, %v3117
      %v3119 = vpop.f32.mrb[0].mxu0
      %v3120 = vpop.f32.mrb[0].mxu0
      %v3121 = vadd.f32 0.0, %v3120
      %v3122 = vpop.f32.mrb[0].mxu0
      %3123 = vmatprep.mubr.bf16.mxu0 0
      %3124 = vmatmul.mubr.bf16.gmra.mrb[0].mxu0 %v3035
      %v3125 = vpop.f32.mrb[0].mxu0
      %v3126 = vadd.f32 0.0, %v3125
      %v3127 = vpop.f32.mrb[0].mxu0
      %v3128 = vpop.f32.mrb[0].mxu0
      %v3129 = vadd.f32 0.0, %v3128
      %v3130 = vpop.f32.mrb[0].mxu0
      %3131 = vmatprep.mubr.bf16.mxu0 0
      %3132 = vmatmul.mubr.bf16.gmra.mrb[0].mxu0 %v3038
      %v3133 = vpop.f32.mrb[0].mxu0
      %v3134 = vadd.f32 0.0, %v3133
      %v3135 = vpop.f32.mrb[0].mxu0
      %v3136 = vpop.f32.mrb[0].mxu0
      %v3137 = vadd.f32 0.0, %v3136
      %v3138 = vpop.f32.mrb[0].mxu0
      %3139 = vmatprep.mubr.bf16.mxu0 0
      %3140 = vmatmul.mubr.bf16.gmra.mrb[0].mxu0 %v3041
      %v3141 = vpop.f32.mrb[0].mxu0
      %v3142 = vadd.f32 0.0, %v3141
      %v3143 = vpop.f32.mrb[0].mxu0
      %v3144 = vpop.f32.mrb[0].mxu0
      %v3145 = vadd.f32 0.0, %v3144
      %v3146 = vpop.f32.mrb[0].mxu0
      %3147 = vmatprep.mubr.bf16.mxu0 0
      %3148 = vmatmul.mubr.bf16.gmra.mrb[0].mxu0 %v3044
      %v3149 = vpop.f32.mrb[0].mxu0
      %v3150 = vadd.f32 0.0, %v3149
      %v3151 = vpop.f32.mrb[0].mxu0
      %v3152 = vpop.f32.mrb[0].mxu0
      %v3153 = vadd.f32 0.0, %v3152
      %v3154 = vpop.f32.mrb[0].mxu0
      %3155 = vmatprep.mubr.bf16.mxu0 0
      %3156 = vmatmul.mubr.bf16.gmra.mrb[0].mxu0 %v3047
      %v3157 = vpop.f32.mrb[0].mxu0
      %v3158 = vadd.f32 0.0, %v3157
      %v3159 = vpop.f32.mrb[0].mxu0
      %v3160 = vpop.f32.mrb[0].mxu0
      %v3161 = vadd.f32 0.0, %v3160
      %v3162 = vpop.f32.mrb[0].mxu0
      %3163 = vmatprep.mubr.bf16.mxu0 0
      %3164 = vmatmul.mubr.bf16.gmra.mrb[0].mxu0 %v3050
      %v3165 = vpop.f32.mrb[0].mxu0
      %v3166 = vadd.f32 0.0, %v3165
      %v3167 = vpop.f32.mrb[0].mxu0
      %v3168 = vpop.f32.mrb[0].mxu0
      %v3169 = vadd.f32 0.0, %v3168
      %v3170 = vpop.f32.mrb[0].mxu0
      %3171 = vmatprep.mubr.bf16.mxu0 0
      %3172 = vmatmul.mubr.bf16.gmra.mrb[0].mxu0 %v3053
      %v3173 = vpop.f32.mrb[0].mxu0
      %v3174 = vadd.f32 0.0, %v3173
      %v3175 = vpop.f32.mrb[0].mxu0
      %v3176 = vpop.f32.mrb[0].mxu0
      %v3177 = vadd.f32 0.0, %v3176
      %v3178 = vpop.f32.mrb[0].mxu0
      %3179 = vmatprep.mubr.bf16.mxu0 0
      %3180 = vmatmul.mubr.bf16.gmra.mrb[0].mxu0 %v3056
      %v3181 = vpop.f32.mrb[0].mxu0
      %v3182 = vadd.f32 0.0, %v3181
      %v3183 = vpop.f32.mrb[0].mxu0
      %v3184 = vpop.f32.mrb[0].mxu0
      %v3185 = vadd.f32 0.0, %v3184
      %v3186 = vpop.f32.mrb[0].mxu0
      %3187 = vmatprep.mubr.bf16.mxu0 0
      %3188 = vmatmul.mubr.bf16.gmra.mrb[0].mxu0 %v3059
      %v3189 = vpop.f32.mrb[0].mxu0
      %v3190 = vadd.f32 0.0, %v3189
      %v3191 = vpop.f32.mrb[0].mxu0
      %v3192 = vpop.f32.mrb[0].mxu0
      %v3193 = vadd.f32 0.0, %v3192
      %v3194 = vpop.f32.mrb[0].mxu0
      %3195 = vmatprep.mubr.bf16.mxu0 0
      %3196 = vmatmul.mubr.bf16.gmra.mrb[0].mxu0 %v3062
      %v3197 = vpop.f32.mrb[0].mxu0
      %v3198 = vadd.f32 0.0, %v3197
      %v3199 = vpop.f32.mrb[0].mxu0
      %v3200 = vpop.f32.mrb[0].mxu0
      %v3201 = vadd.f32 0.0, %v3200
      %v3202 = vpop.f32.mrb[0].mxu0
      %3203 = vmatprep.mubr.bf16.mxu0 0
      %3204 = vmatmul.mubr.bf16.gmra.mrb[0].mxu0 %v3065
      %v3205 = vpop.f32.mrb[0].mxu0
      %v3206 = vadd.f32 0.0, %v3205
      %v3207 = vpop.f32.mrb[0].mxu0
      %v3208 = vpop.f32.mrb[0].mxu0
      %v3209 = vadd.f32 0.0, %v3208
      %v3210 = vpop.f32.mrb[0].mxu0
      %3211 = vmatprep.mubr.bf16.mxu0 0
      %3212 = vmatmul.mubr.bf16.gmra.mrb[0].mxu0 %v3068
      %v3213 = vpop.f32.mrb[0].mxu0
      %v3214 = vadd.f32 0.0, %v3213
      %v3215 = vpop.f32.mrb[0].mxu0
      %v3216 = vpop.f32.mrb[0].mxu0
      %v3217 = vadd.f32 0.0, %v3216
      %v3218 = vpop.f32.mrb[0].mxu0
      %3219 = vmatprep.mubr.bf16.mxu0 0
      %3220 = vmatmul.mubr.bf16.gmra.mrb[0].mxu0 %v3071
      %v3221 = vpop.f32.mrb[0].mxu0
      %v3222 = vadd.f32 0.0, %v3221
      %v3223 = vpop.f32.mrb[0].mxu0
      %v3224 = vpop.f32.mrb[0].mxu0
      %v3225 = vadd.f32 0.0, %v3224
      %v3226 = vpop.f32.mrb[0].mxu0
      %3227 = vmatprep.mubr.bf16.mxu0 0
      %3228 = vmatmul.mubr.bf16.gmra.mrb[0].mxu0 %v3074
      %v3229 = vpop.f32.mrb[0].mxu0
      %v3230 = vadd.f32 0.0, %v3229
      %v3231 = vpop.f32.mrb[0].mxu0
      %v3232 = vpop.f32.mrb[0].mxu0
      %v3233 = vadd.f32 0.0, %v3232
      %v3234 = vpop.f32.mrb[0].mxu0
      %3235 = vmatprep.mubr.bf16.mxu0 0
      %3236 = vmatmul.mubr.bf16.gmra.mrb[0].mxu0 %v3077
      %v3237 = vpop.f32.mrb[0].mxu0
      %v3238 = vadd.f32 0.0, %v3237
      %v3239 = vpop.f32.mrb[0].mxu0
      %v3240 = vpop.f32.mrb[0].mxu0
      %v3241 = vadd.f32 0.0, %v3240
      %v3242 = vpop.f32.mrb[0].mxu0
      %3243 = vdwg.mxu0
      %v3244 = vld [vmem:[%s8] sm:$0x1]
      %v3245 = vlaneseq
      %v3246 = vshrl.u32 %v3245, 7
      %v3247 = vsub.s32 0, %v3246
      %v3248 = vrot.slane %v3244, %v3247
      %v3249 = vmul.f32 %v3118, %v3248
      %v3250 = vmul.f32 %v3121, %v3248
      %v3251 = vmul.f32 %v3126, %v3248
      %v3252 = vmul.f32 %v3129, %v3248
      %v3253 = vmul.f32 %v3134, %v3248
      %v3254 = vmul.f32 %v3137, %v3248
      %v3255 = vmul.f32 %v3142, %v3248
      %v3256 = vmul.f32 %v3145, %v3248
      %v3257 = vmul.f32 %v3150, %v3248
      %v3258 = vmul.f32 %v3153, %v3248
      %v3259 = vmul.f32 %v3158, %v3248
      %v3260 = vmul.f32 %v3161, %v3248
      %v3261 = vmul.f32 %v3166, %v3248
      %v3262 = vmul.f32 %v3169, %v3248
      %v3263 = vmul.f32 %v3174, %v3248
      %v3264 = vmul.f32 %v3177, %v3248
      %v3265 = vmul.f32 %v3182, %v3248
      %v3266 = vmul.f32 %v3185, %v3248
      %v3267 = vmul.f32 %v3190, %v3248
      %v3268 = vmul.f32 %v3193, %v3248
      %v3269 = vmul.f32 %v3198, %v3248
      %v3270 = vmul.f32 %v3201, %v3248
      %v3271 = vmul.f32 %v3206, %v3248
      %v3272 = vmul.f32 %v3209, %v3248
      %v3273 = vmul.f32 %v3214, %v3248
      %v3274 = vmul.f32 %v3217, %v3248
      %v3275 = vmul.f32 %v3222, %v3248
      %v3276 = vmul.f32 %v3225, %v3248
      %v3277 = vmul.f32 %v3230, %v3248
      %v3278 = vmul.f32 %v3233, %v3248
      %v3279 = vmul.f32 %v3238, %v3248
      %v3280 = vmul.f32 %v3241, %v3248
      %v3281 = vld [vmem:[%s8 + $0x1] sm:$0x1]
      %v3282 = vlaneseq
      %v3283 = vshrl.u32 %v3282, 7
      %v3284 = vsub.s32 0, %v3283
      %v3285 = vrot.slane %v3281, %v3284
      %v3286 = vadd.f32 %v3249, %v3285
      %v3287 = vadd.f32 %v3250, %v3285
      %v3288 = vadd.f32 %v3251, %v3285
      %v3289 = vadd.f32 %v3252, %v3285
      %v3290 = vadd.f32 %v3253, %v3285
      %v3291 = vadd.f32 %v3254, %v3285
      %v3292 = vadd.f32 %v3255, %v3285
      %v3293 = vadd.f32 %v3256, %v3285
      %v3294 = vadd.f32 %v3257, %v3285
      %v3295 = vadd.f32 %v3258, %v3285
      %v3296 = vadd.f32 %v3259, %v3285
      %v3297 = vadd.f32 %v3260, %v3285
      %v3298 = vadd.f32 %v3261, %v3285
      %v3299 = vadd.f32 %v3262, %v3285
      %v3300 = vadd.f32 %v3263, %v3285
      %v3301 = vadd.f32 %v3264, %v3285
      %v3302 = vadd.f32 %v3265, %v3285
      %v3303 = vadd.f32 %v3266, %v3285
      %v3304 = vadd.f32 %v3267, %v3285
      %v3305 = vadd.f32 %v3268, %v3285
      %v3306 = vadd.f32 %v3269, %v3285
      %v3307 = vadd.f32 %v3270, %v3285
      %v3308 = vadd.f32 %v3271, %v3285
      %v3309 = vadd.f32 %v3272, %v3285
      %v3310 = vadd.f32 %v3273, %v3285
      %v3311 = vadd.f32 %v3274, %v3285
      %v3312 = vadd.f32 %v3275, %v3285
      %v3313 = vadd.f32 %v3276, %v3285
      %v3314 = vadd.f32 %v3277, %v3285
      %v3315 = vadd.f32 %v3278, %v3285
      %v3316 = vadd.f32 %v3279, %v3285
      %v3317 = vadd.f32 %v3280, %v3285
      %v3318 = vmax.f32 %v3286, 0.0
      %v3319 = vmax.f32 %v3287, 0.0
      %v3320 = vmax.f32 %v3288, 0.0
      %v3321 = vmax.f32 %v3289, 0.0
      %v3322 = vmax.f32 %v3290, 0.0
      %v3323 = vmax.f32 %v3291, 0.0
      %v3324 = vmax.f32 %v3292, 0.0
      %v3325 = vmax.f32 %v3293, 0.0
      %v3326 = vmax.f32 %v3294, 0.0
      %v3327 = vmax.f32 %v3295, 0.0
      %v3328 = vmax.f32 %v3296, 0.0
      %v3329 = vmax.f32 %v3297, 0.0
      %v3330 = vmax.f32 %v3298, 0.0
      %v3331 = vmax.f32 %v3299, 0.0
      %v3332 = vmax.f32 %v3300, 0.0
      %v3333 = vmax.f32 %v3301, 0.0
      %v3334 = vmax.f32 %v3302, 0.0
      %v3335 = vmax.f32 %v3303, 0.0
      %v3336 = vmax.f32 %v3304, 0.0
      %v3337 = vmax.f32 %v3305, 0.0
      %v3338 = vmax.f32 %v3306, 0.0
      %v3339 = vmax.f32 %v3307, 0.0
      %v3340 = vmax.f32 %v3308, 0.0
      %v3341 = vmax.f32 %v3309, 0.0
      %v3342 = vmax.f32 %v3310, 0.0
      %v3343 = vmax.f32 %v3311, 0.0
      %v3344 = vmax.f32 %v3312, 0.0
      %v3345 = vmax.f32 %v3313, 0.0
      %v3346 = vmax.f32 %v3314, 0.0
      %v3347 = vmax.f32 %v3315, 0.0
      %v3348 = vmax.f32 %v3316, 0.0
      %v3349 = vmax.f32 %v3317, 0.0
      %3350 = vst.msk [vmem:[#allocation4] sm:$0xff] %vm1955, 0.0
      %3351 = vst.msk [vmem:[#allocation4 + $0x8] sm:$0xff] %vm1955, 0.0
      %3352 = vst.msk [vmem:[#allocation4 + $0x10] sm:$0xff] %vm1955, 0.0
      %3353 = vst.msk [vmem:[#allocation4 + $0x18] sm:$0x1] %vm1959, 0.0
      %3354 = vst.msk [vmem:[#allocation4 + $0x20] sm:$0xff] %vm1955, 0.0
      %3355 = vst.msk [vmem:[#allocation4 + $0x28] sm:$0xff] %vm1955, 0.0
      %3356 = vst.msk [vmem:[#allocation4 + $0x30] sm:$0xff] %vm1955, 0.0
      %3357 = vst.msk [vmem:[#allocation4 + $0x38] sm:$0x1] %vm1959, 0.0
      %3358 = vst.msk [vmem:[#allocation4 + $0x40] sm:$0xff] %vm1955, 0.0
      %3359 = vst.msk [vmem:[#allocation4 + $0x48] sm:$0xff] %vm1955, 0.0
      %3360 = vst.msk [vmem:[#allocation4 + $0x50] sm:$0xff] %vm1955, 0.0
      %3361 = vst.msk [vmem:[#allocation4 + $0x58] sm:$0x1] %vm1959, 0.0
      %3362 = vst.msk [vmem:[#allocation4 + $0x60] sm:$0xff] %vm1955, 0.0
      %3363 = vst.msk [vmem:[#allocation4 + $0x68] sm:$0xff] %vm1955, 0.0
      %3364 = vst.msk [vmem:[#allocation4 + $0x70] sm:$0xff] %vm1955, 0.0
      %3365 = vst.msk [vmem:[#allocation4 + $0x78] sm:$0x1] %vm1959, 0.0
      %3366 = vst.msk [vmem:[#allocation4 + $0x80] sm:$0xff] %vm1955, 0.0
      %3367 = vst.msk [vmem:[#allocation4 + $0x88] sm:$0xff] %vm1955, 0.0
      %3368 = vst.msk [vmem:[#allocation4 + $0x90] sm:$0xff] %vm1955, 0.0
      %3369 = vst.msk [vmem:[#allocation4 + $0x98] sm:$0x1] %vm1959, 0.0
      %3370 = vst.msk [vmem:[#allocation4 + $0xa0] sm:$0xff] %vm1955, 0.0
      %3371 = vst.msk [vmem:[#allocation4 + $0xa8] sm:$0xff] %vm1955, 0.0
      %3372 = vst.msk [vmem:[#allocation4 + $0xb0] sm:$0xff] %vm1955, 0.0
      %3373 = vst.msk [vmem:[#allocation4 + $0xb8] sm:$0x1] %vm1959, 0.0
      %3374 = vst.msk [vmem:[#allocation4 + $0xc0] sm:$0xff] %vm1955, 0.0
      %3375 = vst.msk [vmem:[#allocation4 + $0xc8] sm:$0xff] %vm1955, 0.0
      %3376 = vst.msk [vmem:[#allocation4 + $0xd0] sm:$0xff] %vm1955, 0.0
      %3377 = vst.msk [vmem:[#allocation4 + $0xd8] sm:$0x1] %vm1959, 0.0
      %3378 = vst.msk [vmem:[#allocation4 + $0xe0] sm:$0xff] %vm1955, 0.0
      %3379 = vst.msk [vmem:[#allocation4 + $0xe8] sm:$0xff] %vm1955, 0.0
      %3380 = vst.msk [vmem:[#allocation4 + $0xf0] sm:$0xff] %vm1955, 0.0
      %3381 = vst.msk [vmem:[#allocation4 + $0xf8] sm:$0x1] %vm1959, 0.0
      %3382 = vst.msk [vmem:[#allocation4 + $0x100] sm:$0xff] %vm1955, 0.0
      %3383 = vst.msk [vmem:[#allocation4 + $0x108] sm:$0xff] %vm1955, 0.0
      %3384 = vst.msk [vmem:[#allocation4 + $0x110] sm:$0xff] %vm1955, 0.0
      %3385 = vst.msk [vmem:[#allocation4 + $0x118] sm:$0x1] %vm1959, 0.0
      %3386 = vst.msk [vmem:[#allocation4 + $0x120] sm:$0xff] %vm1955, 0.0
      %3387 = vst.msk [vmem:[#allocation4 + $0x128] sm:$0xff] %vm1955, 0.0
      %3388 = vst.msk [vmem:[#allocation4 + $0x130] sm:$0xff] %vm1955, 0.0
      %3389 = vst.msk [vmem:[#allocation4 + $0x138] sm:$0x1] %vm1959, 0.0
      %3390 = vst.msk [vmem:[#allocation4 + $0x140] sm:$0xff] %vm1955, 0.0
      %3391 = vst.msk [vmem:[#allocation4 + $0x148] sm:$0xff] %vm1955, 0.0
      %3392 = vst.msk [vmem:[#allocation4 + $0x150] sm:$0xff] %vm1955, 0.0
      %3393 = vst.msk [vmem:[#allocation4 + $0x158] sm:$0x1] %vm1959, 0.0
      %3394 = vst.msk [vmem:[#allocation4 + $0x160] sm:$0xff] %vm1955, 0.0
      %3395 = vst.msk [vmem:[#allocation4 + $0x168] sm:$0xff] %vm1955, 0.0
      %3396 = vst.msk [vmem:[#allocation4 + $0x170] sm:$0xff] %vm1955, 0.0
      %3397 = vst.msk [vmem:[#allocation4 + $0x178] sm:$0x1] %vm1959, 0.0
      %3398 = vst.msk [vmem:[#allocation4 + $0x180] sm:$0xff] %vm1955, 0.0
      %3399 = vst.msk [vmem:[#allocation4 + $0x188] sm:$0xff] %vm1955, 0.0
      %3400 = vst.msk [vmem:[#allocation4 + $0x190] sm:$0xff] %vm1955, 0.0
      %3401 = vst.msk [vmem:[#allocation4 + $0x198] sm:$0x1] %vm1959, 0.0
      %3402 = vst.msk [vmem:[#allocation4 + $0x1a0] sm:$0xff] %vm1955, 0.0
      %3403 = vst.msk [vmem:[#allocation4 + $0x1a8] sm:$0xff] %vm1955, 0.0
      %3404 = vst.msk [vmem:[#allocation4 + $0x1b0] sm:$0xff] %vm1955, 0.0
      %3405 = vst.msk [vmem:[#allocation4 + $0x1b8] sm:$0x1] %vm1959, 0.0
      %3406 = vst.msk [vmem:[#allocation4 + $0x1c0] sm:$0xff] %vm1955, 0.0
      %3407 = vst.msk [vmem:[#allocation4 + $0x1c8] sm:$0xff] %vm1955, 0.0
      %3408 = vst.msk [vmem:[#allocation4 + $0x1d0] sm:$0xff] %vm1955, 0.0
      %3409 = vst.msk [vmem:[#allocation4 + $0x1d8] sm:$0x1] %vm1959, 0.0
      %3410 = vst.msk [vmem:[#allocation4 + $0x1e0] sm:$0xff] %vm1955, 0.0
      %3411 = vst.msk [vmem:[#allocation4 + $0x1e8] sm:$0xff] %vm1955, 0.0
      %3412 = vst.msk [vmem:[#allocation4 + $0x1f0] sm:$0xff] %vm1955, 0.0
      %3413 = vst.msk [vmem:[#allocation4 + $0x1f8] sm:$0x1] %vm1959, 0.0
      %3414 = vst.msk [vmem:[#allocation4 + $0x200] sm:$0xff] %vm1955, 0.0
      %3415 = vst.msk [vmem:[#allocation4 + $0x208] sm:$0xff] %vm1955, 0.0
      %3416 = vst.msk [vmem:[#allocation4 + $0x210] sm:$0xff] %vm1955, 0.0
      %3417 = vst.msk [vmem:[#allocation4 + $0x218] sm:$0x1] %vm1959, 0.0
      %3418 = vst.msk [vmem:[#allocation4 + $0x220] sm:$0xff] %vm1955, 0.0
      %3419 = vst.msk [vmem:[#allocation4 + $0x228] sm:$0xff] %vm1955, 0.0
      %3420 = vst.msk [vmem:[#allocation4 + $0x230] sm:$0xff] %vm1955, 0.0
      %3421 = vst.msk [vmem:[#allocation4 + $0x238] sm:$0x1] %vm1959, 0.0
      %s3422 = scalar_lea.vmem [#allocation4], 32
      %3423 = vst.msk [vmem:[%s3422 + $0x8] sm:$0xff] %vm1955, %v3318
      %3424 = vst.msk [vmem:[%s3422 + $0x10] sm:$0xff] %vm1955, %v3319
      %3425 = vst.msk [vmem:[%s3422 + $0x28] sm:$0xff] %vm1955, %v3320
      %3426 = vst.msk [vmem:[%s3422 + $0x30] sm:$0xff] %vm1955, %v3321
      %3427 = vst.msk [vmem:[%s3422 + $0x48] sm:$0xff] %vm1955, %v3322
      %3428 = vst.msk [vmem:[%s3422 + $0x50] sm:$0xff] %vm1955, %v3323
      %3429 = vst.msk [vmem:[%s3422 + $0x68] sm:$0xff] %vm1955, %v3324
      %3430 = vst.msk [vmem:[%s3422 + $0x70] sm:$0xff] %vm1955, %v3325
      %3431 = vst.msk [vmem:[%s3422 + $0x88] sm:$0xff] %vm1955, %v3326
      %3432 = vst.msk [vmem:[%s3422 + $0x90] sm:$0xff] %vm1955, %v3327
      %3433 = vst.msk [vmem:[%s3422 + $0xa8] sm:$0xff] %vm1955, %v3328
      %3434 = vst.msk [vmem:[%s3422 + $0xb0] sm:$0xff] %vm1955, %v3329
      %3435 = vst.msk [vmem:[%s3422 + $0xc8] sm:$0xff] %vm1955, %v3330
      %3436 = vst.msk [vmem:[%s3422 + $0xd0] sm:$0xff] %vm1955, %v3331
      %3437 = vst.msk [vmem:[%s3422 + $0xe8] sm:$0xff] %vm1955, %v3332
      %3438 = vst.msk [vmem:[%s3422 + $0xf0] sm:$0xff] %vm1955, %v3333
      %3439 = vst.msk [vmem:[%s3422 + $0x108] sm:$0xff] %vm1955, %v3334
      %3440 = vst.msk [vmem:[%s3422 + $0x110] sm:$0xff] %vm1955, %v3335
      %3441 = vst.msk [vmem:[%s3422 + $0x128] sm:$0xff] %vm1955, %v3336
      %3442 = vst.msk [vmem:[%s3422 + $0x130] sm:$0xff] %vm1955, %v3337
      %3443 = vst.msk [vmem:[%s3422 + $0x148] sm:$0xff] %vm1955, %v3338
      %3444 = vst.msk [vmem:[%s3422 + $0x150] sm:$0xff] %vm1955, %v3339
      %3445 = vst.msk [vmem:[%s3422 + $0x168] sm:$0xff] %vm1955, %v3340
      %3446 = vst.msk [vmem:[%s3422 + $0x170] sm:$0xff] %vm1955, %v3341
      %3447 = vst.msk [vmem:[%s3422 + $0x188] sm:$0xff] %vm1955, %v3342
      %3448 = vst.msk [vmem:[%s3422 + $0x190] sm:$0xff] %vm1955, %v3343
      %3449 = vst.msk [vmem:[%s3422 + $0x1a8] sm:$0xff] %vm1955, %v3344
      %3450 = vst.msk [vmem:[%s3422 + $0x1b0] sm:$0xff] %vm1955, %v3345
      %3451 = vst.msk [vmem:[%s3422 + $0x1c8] sm:$0xff] %vm1955, %v3346
      %3452 = vst.msk [vmem:[%s3422 + $0x1d0] sm:$0xff] %vm1955, %v3347
      %3453 = vst.msk [vmem:[%s3422 + $0x1e8] sm:$0xff] %vm1955, %v3348
      %3454 = vst.msk [vmem:[%s3422 + $0x1f0] sm:$0xff] %vm1955, %v3349
      %v3455 = vld [vmem:[#allocation4 + $0x7] sm:$0xff]
      %v3456 = vld [vmem:[#allocation4 + $0xf] sm:$0xff]
      %v3457 = vld [vmem:[#allocation4 + $0x27] sm:$0xff]
      %v3458 = vld [vmem:[#allocation4 + $0x2f] sm:$0xff]
      %v3459 = vld [vmem:[#allocation4 + $0x47] sm:$0xff]
      %v3460 = vld [vmem:[#allocation4 + $0x4f] sm:$0xff]
      %v3461 = vld [vmem:[#allocation4 + $0x67] sm:$0xff]
      %v3462 = vld [vmem:[#allocation4 + $0x6f] sm:$0xff]
      %v3463 = vld [vmem:[#allocation4 + $0x87] sm:$0xff]
      %v3464 = vld [vmem:[#allocation4 + $0x8f] sm:$0xff]
      %v3465 = vld [vmem:[#allocation4 + $0xa7] sm:$0xff]
      %v3466 = vld [vmem:[#allocation4 + $0xaf] sm:$0xff]
      %v3467 = vld [vmem:[#allocation4 + $0xc7] sm:$0xff]
      %v3468 = vld [vmem:[#allocation4 + $0xcf] sm:$0xff]
      %v3469 = vld [vmem:[#allocation4 + $0xe7] sm:$0xff]
      %v3470 = vld [vmem:[#allocation4 + $0xef] sm:$0xff]
      %v3471 = vld [vmem:[#allocation4 + $0x107] sm:$0xff]
      %v3472 = vld [vmem:[#allocation4 + $0x10f] sm:$0xff]
      %v3473 = vld [vmem:[#allocation4 + $0x127] sm:$0xff]
      %v3474 = vld [vmem:[#allocation4 + $0x12f] sm:$0xff]
      %v3475 = vld [vmem:[#allocation4 + $0x147] sm:$0xff]
      %v3476 = vld [vmem:[#allocation4 + $0x14f] sm:$0xff]
      %v3477 = vld [vmem:[#allocation4 + $0x167] sm:$0xff]
      %v3478 = vld [vmem:[#allocation4 + $0x16f] sm:$0xff]
      %v3479 = vld [vmem:[#allocation4 + $0x187] sm:$0xff]
      %v3480 = vld [vmem:[#allocation4 + $0x18f] sm:$0xff]
      %v3481 = vld [vmem:[#allocation4 + $0x1a7] sm:$0xff]
      %v3482 = vld [vmem:[#allocation4 + $0x1af] sm:$0xff]
      %v3483 = vld [vmem:[#allocation4 + $0x1c7] sm:$0xff]
      %v3484 = vld [vmem:[#allocation4 + $0x1cf] sm:$0xff]
      %v3485 = vld [vmem:[#allocation4 + $0x1e7] sm:$0xff]
      %v3486 = vld [vmem:[#allocation4 + $0x1ef] sm:$0xff]
      %v3487 = vld [vmem:[%s9] sm:$0x1]
      %v3488 = vlaneseq
      %v3489 = vshrl.u32 %v3488, 7
      %v3490 = vsub.s32 0, %v3489
      %v3491 = vrot.slane %v3487, %v3490
      %v3492 = vmul.f32 %v3455, %v3491
      %v3493 = vmul.f32 %v3456, %v3491
      %v3494 = vmul.f32 %v3457, %v3491
      %v3495 = vmul.f32 %v3458, %v3491
      %v3496 = vmul.f32 %v3459, %v3491
      %v3497 = vmul.f32 %v3460, %v3491
      %v3498 = vmul.f32 %v3461, %v3491
      %v3499 = vmul.f32 %v3462, %v3491
      %v3500 = vmul.f32 %v3463, %v3491
      %v3501 = vmul.f32 %v3464, %v3491
      %v3502 = vmul.f32 %v3465, %v3491
      %v3503 = vmul.f32 %v3466, %v3491
      %v3504 = vmul.f32 %v3467, %v3491
      %v3505 = vmul.f32 %v3468, %v3491
      %v3506 = vmul.f32 %v3469, %v3491
      %v3507 = vmul.f32 %v3470, %v3491
      %v3508 = vmul.f32 %v3471, %v3491
      %v3509 = vmul.f32 %v3472, %v3491
      %v3510 = vmul.f32 %v3473, %v3491
      %v3511 = vmul.f32 %v3474, %v3491
      %v3512 = vmul.f32 %v3475, %v3491
      %v3513 = vmul.f32 %v3476, %v3491
      %v3514 = vmul.f32 %v3477, %v3491
      %v3515 = vmul.f32 %v3478, %v3491
      %v3516 = vmul.f32 %v3479, %v3491
      %v3517 = vmul.f32 %v3480, %v3491
      %v3518 = vmul.f32 %v3481, %v3491
      %v3519 = vmul.f32 %v3482, %v3491
      %v3520 = vmul.f32 %v3483, %v3491
      %v3521 = vmul.f32 %v3484, %v3491
      %v3522 = vmul.f32 %v3485, %v3491
      %v3523 = vmul.f32 %v3486, %v3491
      %v3524 = vld [vmem:[#allocation4 + $0x8] sm:$0xff]
      %v3525 = vld [vmem:[#allocation4 + $0x10] sm:$0xff]
      %v3526 = vld [vmem:[#allocation4 + $0x28] sm:$0xff]
      %v3527 = vld [vmem:[#allocation4 + $0x30] sm:$0xff]
      %v3528 = vld [vmem:[#allocation4 + $0x48] sm:$0xff]
      %v3529 = vld [vmem:[#allocation4 + $0x50] sm:$0xff]
      %v3530 = vld [vmem:[#allocation4 + $0x68] sm:$0xff]
      %v3531 = vld [vmem:[#allocation4 + $0x70] sm:$0xff]
      %v3532 = vld [vmem:[#allocation4 + $0x88] sm:$0xff]
      %v3533 = vld [vmem:[#allocation4 + $0x90] sm:$0xff]
      %v3534 = vld [vmem:[#allocation4 + $0xa8] sm:$0xff]
      %v3535 = vld [vmem:[#allocation4 + $0xb0] sm:$0xff]
      %v3536 = vld [vmem:[#allocation4 + $0xc8] sm:$0xff]
      %v3537 = vld [vmem:[#allocation4 + $0xd0] sm:$0xff]
      %v3538 = vld [vmem:[#allocation4 + $0xe8] sm:$0xff]
      %v3539 = vld [vmem:[#allocation4 + $0xf0] sm:$0xff]
      %v3540 = vld [vmem:[#allocation4 + $0x108] sm:$0xff]
      %v3541 = vld [vmem:[#allocation4 + $0x110] sm:$0xff]
      %v3542 = vld [vmem:[#allocation4 + $0x128] sm:$0xff]
      %v3543 = vld [vmem:[#allocation4 + $0x130] sm:$0xff]
      %v3544 = vld [vmem:[#allocation4 + $0x148] sm:$0xff]
      %v3545 = vld [vmem:[#allocation4 + $0x150] sm:$0xff]
      %v3546 = vld [vmem:[#allocation4 + $0x168] sm:$0xff]
      %v3547 = vld [vmem:[#allocation4 + $0x170] sm:$0xff]
      %v3548 = vld [vmem:[#allocation4 + $0x188] sm:$0xff]
      %v3549 = vld [vmem:[#allocation4 + $0x190] sm:$0xff]
      %v3550 = vld [vmem:[#allocation4 + $0x1a8] sm:$0xff]
      %v3551 = vld [vmem:[#allocation4 + $0x1b0] sm:$0xff]
      %v3552 = vld [vmem:[#allocation4 + $0x1c8] sm:$0xff]
      %v3553 = vld [vmem:[#allocation4 + $0x1d0] sm:$0xff]
      %v3554 = vld [vmem:[#allocation4 + $0x1e8] sm:$0xff]
      %v3555 = vld [vmem:[#allocation4 + $0x1f0] sm:$0xff]
      %v3556 = vld [vmem:[%s9 + $0x1] sm:$0x1]
      %v3557 = vlaneseq
      %v3558 = vshrl.u32 %v3557, 7
      %v3559 = vsub.s32 0, %v3558
      %v3560 = vrot.slane %v3556, %v3559
      %v3561 = vmul.f32 %v3524, %v3560
      %v3562 = vmul.f32 %v3525, %v3560
      %v3563 = vmul.f32 %v3526, %v3560
      %v3564 = vmul.f32 %v3527, %v3560
      %v3565 = vmul.f32 %v3528, %v3560
      %v3566 = vmul.f32 %v3529, %v3560
      %v3567 = vmul.f32 %v3530, %v3560
      %v3568 = vmul.f32 %v3531, %v3560
      %v3569 = vmul.f32 %v3532, %v3560
      %v3570 = vmul.f32 %v3533, %v3560
      %v3571 = vmul.f32 %v3534, %v3560
      %v3572 = vmul.f32 %v3535, %v3560
      %v3573 = vmul.f32 %v3536, %v3560
      %v3574 = vmul.f32 %v3537, %v3560
      %v3575 = vmul.f32 %v3538, %v3560
      %v3576 = vmul.f32 %v3539, %v3560
      %v3577 = vmul.f32 %v3540, %v3560
      %v3578 = vmul.f32 %v3541, %v3560
      %v3579 = vmul.f32 %v3542, %v3560
      %v3580 = vmul.f32 %v3543, %v3560
      %v3581 = vmul.f32 %v3544, %v3560
      %v3582 = vmul.f32 %v3545, %v3560
      %v3583 = vmul.f32 %v3546, %v3560
      %v3584 = vmul.f32 %v3547, %v3560
      %v3585 = vmul.f32 %v3548, %v3560
      %v3586 = vmul.f32 %v3549, %v3560
      %v3587 = vmul.f32 %v3550, %v3560
      %v3588 = vmul.f32 %v3551, %v3560
      %v3589 = vmul.f32 %v3552, %v3560
      %v3590 = vmul.f32 %v3553, %v3560
      %v3591 = vmul.f32 %v3554, %v3560
      %v3592 = vmul.f32 %v3555, %v3560
      %v3593 = vadd.f32 %v3492, %v3561
      %v3594 = vadd.f32 %v3493, %v3562
      %v3595 = vadd.f32 %v3494, %v3563
      %v3596 = vadd.f32 %v3495, %v3564
      %v3597 = vadd.f32 %v3496, %v3565
      %v3598 = vadd.f32 %v3497, %v3566
      %v3599 = vadd.f32 %v3498, %v3567
      %v3600 = vadd.f32 %v3499, %v3568
      %v3601 = vadd.f32 %v3500, %v3569
      %v3602 = vadd.f32 %v3501, %v3570
      %v3603 = vadd.f32 %v3502, %v3571
      %v3604 = vadd.f32 %v3503, %v3572
      %v3605 = vadd.f32 %v3504, %v3573
      %v3606 = vadd.f32 %v3505, %v3574
      %v3607 = vadd.f32 %v3506, %v3575
      %v3608 = vadd.f32 %v3507, %v3576
      %v3609 = vadd.f32 %v3508, %v3577
      %v3610 = vadd.f32 %v3509, %v3578
      %v3611 = vadd.f32 %v3510, %v3579
      %v3612 = vadd.f32 %v3511, %v3580
      %v3613 = vadd.f32 %v3512, %v3581
      %v3614 = vadd.f32 %v3513, %v3582
      %v3615 = vadd.f32 %v3514, %v3583
      %v3616 = vadd.f32 %v3515, %v3584
      %v3617 = vadd.f32 %v3516, %v3585
      %v3618 = vadd.f32 %v3517, %v3586
      %v3619 = vadd.f32 %v3518, %v3587
      %v3620 = vadd.f32 %v3519, %v3588
      %v3621 = vadd.f32 %v3520, %v3589
      %v3622 = vadd.f32 %v3521, %v3590
      %v3623 = vadd.f32 %v3522, %v3591
      %v3624 = vadd.f32 %v3523, %v3592
      %v3625 = vld [vmem:[#allocation4 + $0x9] sm:$0xff]
      %v3626 = vld [vmem:[#allocation4 + $0x11] sm:$0xff]
      %v3627 = vld [vmem:[#allocation4 + $0x29] sm:$0xff]
      %v3628 = vld [vmem:[#allocation4 + $0x31] sm:$0xff]
      %v3629 = vld [vmem:[#allocation4 + $0x49] sm:$0xff]
      %v3630 = vld [vmem:[#allocation4 + $0x51] sm:$0xff]
      %v3631 = vld [vmem:[#allocation4 + $0x69] sm:$0xff]
      %v3632 = vld [vmem:[#allocation4 + $0x71] sm:$0xff]
      %v3633 = vld [vmem:[#allocation4 + $0x89] sm:$0xff]
      %v3634 = vld [vmem:[#allocation4 + $0x91] sm:$0xff]
      %v3635 = vld [vmem:[#allocation4 + $0xa9] sm:$0xff]
      %v3636 = vld [vmem:[#allocation4 + $0xb1] sm:$0xff]
      %v3637 = vld [vmem:[#allocation4 + $0xc9] sm:$0xff]
      %v3638 = vld [vmem:[#allocation4 + $0xd1] sm:$0xff]
      %v3639 = vld [vmem:[#allocation4 + $0xe9] sm:$0xff]
      %v3640 = vld [vmem:[#allocation4 + $0xf1] sm:$0xff]
      %v3641 = vld [vmem:[#allocation4 + $0x109] sm:$0xff]
      %v3642 = vld [vmem:[#allocation4 + $0x111] sm:$0xff]
      %v3643 = vld [vmem:[#allocation4 + $0x129] sm:$0xff]
      %v3644 = vld [vmem:[#allocation4 + $0x131] sm:$0xff]
      %v3645 = vld [vmem:[#allocation4 + $0x149] sm:$0xff]
      %v3646 = vld [vmem:[#allocation4 + $0x151] sm:$0xff]
      %v3647 = vld [vmem:[#allocation4 + $0x169] sm:$0xff]
      %v3648 = vld [vmem:[#allocation4 + $0x171] sm:$0xff]
      %v3649 = vld [vmem:[#allocation4 + $0x189] sm:$0xff]
      %v3650 = vld [vmem:[#allocation4 + $0x191] sm:$0xff]
      %v3651 = vld [vmem:[#allocation4 + $0x1a9] sm:$0xff]
      %v3652 = vld [vmem:[#allocation4 + $0x1b1] sm:$0xff]
      %v3653 = vld [vmem:[#allocation4 + $0x1c9] sm:$0xff]
      %v3654 = vld [vmem:[#allocation4 + $0x1d1] sm:$0xff]
      %v3655 = vld [vmem:[#allocation4 + $0x1e9] sm:$0xff]
      %v3656 = vld [vmem:[#allocation4 + $0x1f1] sm:$0xff]
      %v3657 = vld [vmem:[%s9 + $0x2] sm:$0x1]
      %v3658 = vlaneseq
      %v3659 = vshrl.u32 %v3658, 7
      %v3660 = vsub.s32 0, %v3659
      %v3661 = vrot.slane %v3657, %v3660
      %v3662 = vmul.f32 %v3625, %v3661
      %v3663 = vmul.f32 %v3626, %v3661
      %v3664 = vmul.f32 %v3627, %v3661
      %v3665 = vmul.f32 %v3628, %v3661
      %v3666 = vmul.f32 %v3629, %v3661
      %v3667 = vmul.f32 %v3630, %v3661
      %v3668 = vmul.f32 %v3631, %v3661
      %v3669 = vmul.f32 %v3632, %v3661
      %v3670 = vmul.f32 %v3633, %v3661
      %v3671 = vmul.f32 %v3634, %v3661
      %v3672 = vmul.f32 %v3635, %v3661
      %v3673 = vmul.f32 %v3636, %v3661
      %v3674 = vmul.f32 %v3637, %v3661
      %v3675 = vmul.f32 %v3638, %v3661
      %v3676 = vmul.f32 %v3639, %v3661
      %v3677 = vmul.f32 %v3640, %v3661
      %v3678 = vmul.f32 %v3641, %v3661
      %v3679 = vmul.f32 %v3642, %v3661
      %v3680 = vmul.f32 %v3643, %v3661
      %v3681 = vmul.f32 %v3644, %v3661
      %v3682 = vmul.f32 %v3645, %v3661
      %v3683 = vmul.f32 %v3646, %v3661
      %v3684 = vmul.f32 %v3647, %v3661
      %v3685 = vmul.f32 %v3648, %v3661
      %v3686 = vmul.f32 %v3649, %v3661
      %v3687 = vmul.f32 %v3650, %v3661
      %v3688 = vmul.f32 %v3651, %v3661
      %v3689 = vmul.f32 %v3652, %v3661
      %v3690 = vmul.f32 %v3653, %v3661
      %v3691 = vmul.f32 %v3654, %v3661
      %v3692 = vmul.f32 %v3655, %v3661
      %v3693 = vmul.f32 %v3656, %v3661
      %v3694 = vadd.f32 %v3593, %v3662
      %v3695 = vadd.f32 %v3594, %v3663
      %v3696 = vadd.f32 %v3595, %v3664
      %v3697 = vadd.f32 %v3596, %v3665
      %v3698 = vadd.f32 %v3597, %v3666
      %v3699 = vadd.f32 %v3598, %v3667
      %v3700 = vadd.f32 %v3599, %v3668
      %v3701 = vadd.f32 %v3600, %v3669
      %v3702 = vadd.f32 %v3601, %v3670
      %v3703 = vadd.f32 %v3602, %v3671
      %v3704 = vadd.f32 %v3603, %v3672
      %v3705 = vadd.f32 %v3604, %v3673
      %v3706 = vadd.f32 %v3605, %v3674
      %v3707 = vadd.f32 %v3606, %v3675
      %v3708 = vadd.f32 %v3607, %v3676
      %v3709 = vadd.f32 %v3608, %v3677
      %v3710 = vadd.f32 %v3609, %v3678
      %v3711 = vadd.f32 %v3610, %v3679
      %v3712 = vadd.f32 %v3611, %v3680
      %v3713 = vadd.f32 %v3612, %v3681
      %v3714 = vadd.f32 %v3613, %v3682
      %v3715 = vadd.f32 %v3614, %v3683
      %v3716 = vadd.f32 %v3615, %v3684
      %v3717 = vadd.f32 %v3616, %v3685
      %v3718 = vadd.f32 %v3617, %v3686
      %v3719 = vadd.f32 %v3618, %v3687
      %v3720 = vadd.f32 %v3619, %v3688
      %v3721 = vadd.f32 %v3620, %v3689
      %v3722 = vadd.f32 %v3621, %v3690
      %v3723 = vadd.f32 %v3622, %v3691
      %v3724 = vadd.f32 %v3623, %v3692
      %v3725 = vadd.f32 %v3624, %v3693
      %v3726 = vld [vmem:[%s3422 + $0x7] sm:$0xff]
      %v3727 = vld [vmem:[%s3422 + $0xf] sm:$0xff]
      %v3728 = vld [vmem:[%s3422 + $0x27] sm:$0xff]
      %v3729 = vld [vmem:[%s3422 + $0x2f] sm:$0xff]
      %v3730 = vld [vmem:[%s3422 + $0x47] sm:$0xff]
      %v3731 = vld [vmem:[%s3422 + $0x4f] sm:$0xff]
      %v3732 = vld [vmem:[%s3422 + $0x67] sm:$0xff]
      %v3733 = vld [vmem:[%s3422 + $0x6f] sm:$0xff]
      %v3734 = vld [vmem:[%s3422 + $0x87] sm:$0xff]
      %v3735 = vld [vmem:[%s3422 + $0x8f] sm:$0xff]
      %v3736 = vld [vmem:[%s3422 + $0xa7] sm:$0xff]
      %v3737 = vld [vmem:[%s3422 + $0xaf] sm:$0xff]
      %v3738 = vld [vmem:[%s3422 + $0xc7] sm:$0xff]
      %v3739 = vld [vmem:[%s3422 + $0xcf] sm:$0xff]
      %v3740 = vld [vmem:[%s3422 + $0xe7] sm:$0xff]
      %v3741 = vld [vmem:[%s3422 + $0xef] sm:$0xff]
      %v3742 = vld [vmem:[%s3422 + $0x107] sm:$0xff]
      %v3743 = vld [vmem:[%s3422 + $0x10f] sm:$0xff]
      %v3744 = vld [vmem:[%s3422 + $0x127] sm:$0xff]
      %v3745 = vld [vmem:[%s3422 + $0x12f] sm:$0xff]
      %v3746 = vld [vmem:[%s3422 + $0x147] sm:$0xff]
      %v3747 = vld [vmem:[%s3422 + $0x14f] sm:$0xff]
      %v3748 = vld [vmem:[%s3422 + $0x167] sm:$0xff]
      %v3749 = vld [vmem:[%s3422 + $0x16f] sm:$0xff]
      %v3750 = vld [vmem:[%s3422 + $0x187] sm:$0xff]
      %v3751 = vld [vmem:[%s3422 + $0x18f] sm:$0xff]
      %v3752 = vld [vmem:[%s3422 + $0x1a7] sm:$0xff]
      %v3753 = vld [vmem:[%s3422 + $0x1af] sm:$0xff]
      %v3754 = vld [vmem:[%s3422 + $0x1c7] sm:$0xff]
      %v3755 = vld [vmem:[%s3422 + $0x1cf] sm:$0xff]
      %v3756 = vld [vmem:[%s3422 + $0x1e7] sm:$0xff]
      %v3757 = vld [vmem:[%s3422 + $0x1ef] sm:$0xff]
      %v3758 = vld [vmem:[%s9 + $0x3] sm:$0x1]
      %v3759 = vlaneseq
      %v3760 = vshrl.u32 %v3759, 7
      %v3761 = vsub.s32 0, %v3760
      %v3762 = vrot.slane %v3758, %v3761
      %v3763 = vmul.f32 %v3726, %v3762
      %v3764 = vmul.f32 %v3727, %v3762
      %v3765 = vmul.f32 %v3728, %v3762
      %v3766 = vmul.f32 %v3729, %v3762
      %v3767 = vmul.f32 %v3730, %v3762
      %v3768 = vmul.f32 %v3731, %v3762
      %v3769 = vmul.f32 %v3732, %v3762
      %v3770 = vmul.f32 %v3733, %v3762
      %v3771 = vmul.f32 %v3734, %v3762
      %v3772 = vmul.f32 %v3735, %v3762
      %v3773 = vmul.f32 %v3736, %v3762
      %v3774 = vmul.f32 %v3737, %v3762
      %v3775 = vmul.f32 %v3738, %v3762
      %v3776 = vmul.f32 %v3739, %v3762
      %v3777 = vmul.f32 %v3740, %v3762
      %v3778 = vmul.f32 %v3741, %v3762
      %v3779 = vmul.f32 %v3742, %v3762
      %v3780 = vmul.f32 %v3743, %v3762
      %v3781 = vmul.f32 %v3744, %v3762
      %v3782 = vmul.f32 %v3745, %v3762
      %v3783 = vmul.f32 %v3746, %v3762
      %v3784 = vmul.f32 %v3747, %v3762
      %v3785 = vmul.f32 %v3748, %v3762
      %v3786 = vmul.f32 %v3749, %v3762
      %v3787 = vmul.f32 %v3750, %v3762
      %v3788 = vmul.f32 %v3751, %v3762
      %v3789 = vmul.f32 %v3752, %v3762
      %v3790 = vmul.f32 %v3753, %v3762
      %v3791 = vmul.f32 %v3754, %v3762
      %v3792 = vmul.f32 %v3755, %v3762
      %v3793 = vmul.f32 %v3756, %v3762
      %v3794 = vmul.f32 %v3757, %v3762
      %v3795 = vadd.f32 %v3694, %v3763
      %v3796 = vadd.f32 %v3695, %v3764
      %v3797 = vadd.f32 %v3696, %v3765
      %v3798 = vadd.f32 %v3697, %v3766
      %v3799 = vadd.f32 %v3698, %v3767
      %v3800 = vadd.f32 %v3699, %v3768
      %v3801 = vadd.f32 %v3700, %v3769
      %v3802 = vadd.f32 %v3701, %v3770
      %v3803 = vadd.f32 %v3702, %v3771
      %v3804 = vadd.f32 %v3703, %v3772
      %v3805 = vadd.f32 %v3704, %v3773
      %v3806 = vadd.f32 %v3705, %v3774
      %v3807 = vadd.f32 %v3706, %v3775
      %v3808 = vadd.f32 %v3707, %v3776
      %v3809 = vadd.f32 %v3708, %v3777
      %v3810 = vadd.f32 %v3709, %v3778
      %v3811 = vadd.f32 %v3710, %v3779
      %v3812 = vadd.f32 %v3711, %v3780
      %v3813 = vadd.f32 %v3712, %v3781
      %v3814 = vadd.f32 %v3713, %v3782
      %v3815 = vadd.f32 %v3714, %v3783
      %v3816 = vadd.f32 %v3715, %v3784
      %v3817 = vadd.f32 %v3716, %v3785
      %v3818 = vadd.f32 %v3717, %v3786
      %v3819 = vadd.f32 %v3718, %v3787
      %v3820 = vadd.f32 %v3719, %v3788
      %v3821 = vadd.f32 %v3720, %v3789
      %v3822 = vadd.f32 %v3721, %v3790
      %v3823 = vadd.f32 %v3722, %v3791
      %v3824 = vadd.f32 %v3723, %v3792
      %v3825 = vadd.f32 %v3724, %v3793
      %v3826 = vadd.f32 %v3725, %v3794
      %v3827 = vld [vmem:[%s3422 + $0x8] sm:$0xff]
      %v3828 = vld [vmem:[%s3422 + $0x10] sm:$0xff]
      %v3829 = vld [vmem:[%s3422 + $0x28] sm:$0xff]
      %v3830 = vld [vmem:[%s3422 + $0x30] sm:$0xff]
      %v3831 = vld [vmem:[%s3422 + $0x48] sm:$0xff]
      %v3832 = vld [vmem:[%s3422 + $0x50] sm:$0xff]
      %v3833 = vld [vmem:[%s3422 + $0x68] sm:$0xff]
      %v3834 = vld [vmem:[%s3422 + $0x70] sm:$0xff]
      %v3835 = vld [vmem:[%s3422 + $0x88] sm:$0xff]
      %v3836 = vld [vmem:[%s3422 + $0x90] sm:$0xff]
      %v3837 = vld [vmem:[%s3422 + $0xa8] sm:$0xff]
      %v3838 = vld [vmem:[%s3422 + $0xb0] sm:$0xff]
      %v3839 = vld [vmem:[%s3422 + $0xc8] sm:$0xff]
      %v3840 = vld [vmem:[%s3422 + $0xd0] sm:$0xff]
      %v3841 = vld [vmem:[%s3422 + $0xe8] sm:$0xff]
      %v3842 = vld [vmem:[%s3422 + $0xf0] sm:$0xff]
      %v3843 = vld [vmem:[%s3422 + $0x108] sm:$0xff]
      %v3844 = vld [vmem:[%s3422 + $0x110] sm:$0xff]
      %v3845 = vld [vmem:[%s3422 + $0x128] sm:$0xff]
      %v3846 = vld [vmem:[%s3422 + $0x130] sm:$0xff]
      %v3847 = vld [vmem:[%s3422 + $0x148] sm:$0xff]
      %v3848 = vld [vmem:[%s3422 + $0x150] sm:$0xff]
      %v3849 = vld [vmem:[%s3422 + $0x168] sm:$0xff]
      %v3850 = vld [vmem:[%s3422 + $0x170] sm:$0xff]
      %v3851 = vld [vmem:[%s3422 + $0x188] sm:$0xff]
      %v3852 = vld [vmem:[%s3422 + $0x190] sm:$0xff]
      %v3853 = vld [vmem:[%s3422 + $0x1a8] sm:$0xff]
      %v3854 = vld [vmem:[%s3422 + $0x1b0] sm:$0xff]
      %v3855 = vld [vmem:[%s3422 + $0x1c8] sm:$0xff]
      %v3856 = vld [vmem:[%s3422 + $0x1d0] sm:$0xff]
      %v3857 = vld [vmem:[%s3422 + $0x1e8] sm:$0xff]
      %v3858 = vld [vmem:[%s3422 + $0x1f0] sm:$0xff]
      %v3859 = vld [vmem:[%s9 + $0x4] sm:$0x1]
      %v3860 = vlaneseq
      %v3861 = vshrl.u32 %v3860, 7
      %v3862 = vsub.s32 0, %v3861
      %v3863 = vrot.slane %v3859, %v3862
      %v3864 = vmul.f32 %v3827, %v3863
      %v3865 = vmul.f32 %v3828, %v3863
      %v3866 = vmul.f32 %v3829, %v3863
      %v3867 = vmul.f32 %v3830, %v3863
      %v3868 = vmul.f32 %v3831, %v3863
      %v3869 = vmul.f32 %v3832, %v3863
      %v3870 = vmul.f32 %v3833, %v3863
      %v3871 = vmul.f32 %v3834, %v3863
      %v3872 = vmul.f32 %v3835, %v3863
      %v3873 = vmul.f32 %v3836, %v3863
      %v3874 = vmul.f32 %v3837, %v3863
      %v3875 = vmul.f32 %v3838, %v3863
      %v3876 = vmul.f32 %v3839, %v3863
      %v3877 = vmul.f32 %v3840, %v3863
      %v3878 = vmul.f32 %v3841, %v3863
      %v3879 = vmul.f32 %v3842, %v3863
      %v3880 = vmul.f32 %v3843, %v3863
      %v3881 = vmul.f32 %v3844, %v3863
      %v3882 = vmul.f32 %v3845, %v3863
      %v3883 = vmul.f32 %v3846, %v3863
      %v3884 = vmul.f32 %v3847, %v3863
      %v3885 = vmul.f32 %v3848, %v3863
      %v3886 = vmul.f32 %v3849, %v3863
      %v3887 = vmul.f32 %v3850, %v3863
      %v3888 = vmul.f32 %v3851, %v3863
      %v3889 = vmul.f32 %v3852, %v3863
      %v3890 = vmul.f32 %v3853, %v3863
      %v3891 = vmul.f32 %v3854, %v3863
      %v3892 = vmul.f32 %v3855, %v3863
      %v3893 = vmul.f32 %v3856, %v3863
      %v3894 = vmul.f32 %v3857, %v3863
      %v3895 = vmul.f32 %v3858, %v3863
      %v3896 = vadd.f32 %v3795, %v3864
      %v3897 = vadd.f32 %v3796, %v3865
      %v3898 = vadd.f32 %v3797, %v3866
      %v3899 = vadd.f32 %v3798, %v3867
      %v3900 = vadd.f32 %v3799, %v3868
      %v3901 = vadd.f32 %v3800, %v3869
      %v3902 = vadd.f32 %v3801, %v3870
      %v3903 = vadd.f32 %v3802, %v3871
      %v3904 = vadd.f32 %v3803, %v3872
      %v3905 = vadd.f32 %v3804, %v3873
      %v3906 = vadd.f32 %v3805, %v3874
      %v3907 = vadd.f32 %v3806, %v3875
      %v3908 = vadd.f32 %v3807, %v3876
      %v3909 = vadd.f32 %v3808, %v3877
      %v3910 = vadd.f32 %v3809, %v3878
      %v3911 = vadd.f32 %v3810, %v3879
      %v3912 = vadd.f32 %v3811, %v3880
      %v3913 = vadd.f32 %v3812, %v3881
      %v3914 = vadd.f32 %v3813, %v3882
      %v3915 = vadd.f32 %v3814, %v3883
      %v3916 = vadd.f32 %v3815, %v3884
      %v3917 = vadd.f32 %v3816, %v3885
      %v3918 = vadd.f32 %v3817, %v3886
      %v3919 = vadd.f32 %v3818, %v3887
      %v3920 = vadd.f32 %v3819, %v3888
      %v3921 = vadd.f32 %v3820, %v3889
      %v3922 = vadd.f32 %v3821, %v3890
      %v3923 = vadd.f32 %v3822, %v3891
      %v3924 = vadd.f32 %v3823, %v3892
      %v3925 = vadd.f32 %v3824, %v3893
      %v3926 = vadd.f32 %v3825, %v3894
      %v3927 = vadd.f32 %v3826, %v3895
      %v3928 = vld [vmem:[%s3422 + $0x9] sm:$0xff]
      %v3929 = vld [vmem:[%s3422 + $0x11] sm:$0xff]
      %v3930 = vld [vmem:[%s3422 + $0x29] sm:$0xff]
      %v3931 = vld [vmem:[%s3422 + $0x31] sm:$0xff]
      %v3932 = vld [vmem:[%s3422 + $0x49] sm:$0xff]
      %v3933 = vld [vmem:[%s3422 + $0x51] sm:$0xff]
      %v3934 = vld [vmem:[%s3422 + $0x69] sm:$0xff]
      %v3935 = vld [vmem:[%s3422 + $0x71] sm:$0xff]
      %v3936 = vld [vmem:[%s3422 + $0x89] sm:$0xff]
      %v3937 = vld [vmem:[%s3422 + $0x91] sm:$0xff]
      %v3938 = vld [vmem:[%s3422 + $0xa9] sm:$0xff]
      %v3939 = vld [vmem:[%s3422 + $0xb1] sm:$0xff]
      %v3940 = vld [vmem:[%s3422 + $0xc9] sm:$0xff]
      %v3941 = vld [vmem:[%s3422 + $0xd1] sm:$0xff]
      %v3942 = vld [vmem:[%s3422 + $0xe9] sm:$0xff]
      %v3943 = vld [vmem:[%s3422 + $0xf1] sm:$0xff]
      %v3944 = vld [vmem:[%s3422 + $0x109] sm:$0xff]
      %v3945 = vld [vmem:[%s3422 + $0x111] sm:$0xff]
      %v3946 = vld [vmem:[%s3422 + $0x129] sm:$0xff]
      %v3947 = vld [vmem:[%s3422 + $0x131] sm:$0xff]
      %v3948 = vld [vmem:[%s3422 + $0x149] sm:$0xff]
      %v3949 = vld [vmem:[%s3422 + $0x151] sm:$0xff]
      %v3950 = vld [vmem:[%s3422 + $0x169] sm:$0xff]
      %v3951 = vld [vmem:[%s3422 + $0x171] sm:$0xff]
      %v3952 = vld [vmem:[%s3422 + $0x189] sm:$0xff]
      %v3953 = vld [vmem:[%s3422 + $0x191] sm:$0xff]
      %v3954 = vld [vmem:[%s3422 + $0x1a9] sm:$0xff]
      %v3955 = vld [vmem:[%s3422 + $0x1b1] sm:$0xff]
      %v3956 = vld [vmem:[%s3422 + $0x1c9] sm:$0xff]
      %v3957 = vld [vmem:[%s3422 + $0x1d1] sm:$0xff]
      %v3958 = vld [vmem:[%s3422 + $0x1e9] sm:$0xff]
      %v3959 = vld [vmem:[%s3422 + $0x1f1] sm:$0xff]
      %v3960 = vld [vmem:[%s9 + $0x5] sm:$0x1]
      %v3961 = vlaneseq
      %v3962 = vshrl.u32 %v3961, 7
      %v3963 = vsub.s32 0, %v3962
      %v3964 = vrot.slane %v3960, %v3963
      %v3965 = vmul.f32 %v3928, %v3964
      %v3966 = vmul.f32 %v3929, %v3964
      %v3967 = vmul.f32 %v3930, %v3964
      %v3968 = vmul.f32 %v3931, %v3964
      %v3969 = vmul.f32 %v3932, %v3964
      %v3970 = vmul.f32 %v3933, %v3964
      %v3971 = vmul.f32 %v3934, %v3964
      %v3972 = vmul.f32 %v3935, %v3964
      %v3973 = vmul.f32 %v3936, %v3964
      %v3974 = vmul.f32 %v3937, %v3964
      %v3975 = vmul.f32 %v3938, %v3964
      %v3976 = vmul.f32 %v3939, %v3964
      %v3977 = vmul.f32 %v3940, %v3964
      %v3978 = vmul.f32 %v3941, %v3964
      %v3979 = vmul.f32 %v3942, %v3964
      %v3980 = vmul.f32 %v3943, %v3964
      %v3981 = vmul.f32 %v3944, %v3964
      %v3982 = vmul.f32 %v3945, %v3964
      %v3983 = vmul.f32 %v3946, %v3964
      %v3984 = vmul.f32 %v3947, %v3964
      %v3985 = vmul.f32 %v3948, %v3964
      %v3986 = vmul.f32 %v3949, %v3964
      %v3987 = vmul.f32 %v3950, %v3964
      %v3988 = vmul.f32 %v3951, %v3964
      %v3989 = vmul.f32 %v3952, %v3964
      %v3990 = vmul.f32 %v3953, %v3964
      %v3991 = vmul.f32 %v3954, %v3964
      %v3992 = vmul.f32 %v3955, %v3964
      %v3993 = vmul.f32 %v3956, %v3964
      %v3994 = vmul.f32 %v3957, %v3964
      %v3995 = vmul.f32 %v3958, %v3964
      %v3996 = vmul.f32 %v3959, %v3964
      %v3997 = vadd.f32 %v3896, %v3965
      %v3998 = vadd.f32 %v3897, %v3966
      %v3999 = vadd.f32 %v3898, %v3967
      %v4000 = vadd.f32 %v3899, %v3968
      %v4001 = vadd.f32 %v3900, %v3969
      %v4002 = vadd.f32 %v3901, %v3970
      %v4003 = vadd.f32 %v3902, %v3971
      %v4004 = vadd.f32 %v3903, %v3972
      %v4005 = vadd.f32 %v3904, %v3973
      %v4006 = vadd.f32 %v3905, %v3974
      %v4007 = vadd.f32 %v3906, %v3975
      %v4008 = vadd.f32 %v3907, %v3976
      %v4009 = vadd.f32 %v3908, %v3977
      %v4010 = vadd.f32 %v3909, %v3978
      %v4011 = vadd.f32 %v3910, %v3979
      %v4012 = vadd.f32 %v3911, %v3980
      %v4013 = vadd.f32 %v3912, %v3981
      %v4014 = vadd.f32 %v3913, %v3982
      %v4015 = vadd.f32 %v3914, %v3983
      %v4016 = vadd.f32 %v3915, %v3984
      %v4017 = vadd.f32 %v3916, %v3985
      %v4018 = vadd.f32 %v3917, %v3986
      %v4019 = vadd.f32 %v3918, %v3987
      %v4020 = vadd.f32 %v3919, %v3988
      %v4021 = vadd.f32 %v3920, %v3989
      %v4022 = vadd.f32 %v3921, %v3990
      %v4023 = vadd.f32 %v3922, %v3991
      %v4024 = vadd.f32 %v3923, %v3992
      %v4025 = vadd.f32 %v3924, %v3993
      %v4026 = vadd.f32 %v3925, %v3994
      %v4027 = vadd.f32 %v3926, %v3995
      %v4028 = vadd.f32 %v3927, %v3996
      %s4029 = scalar_lea.vmem [#allocation4], 64
      %v4030 = vld [vmem:[%s4029 + $0x7] sm:$0xff]
      %v4031 = vld [vmem:[%s4029 + $0xf] sm:$0xff]
      %v4032 = vld [vmem:[%s4029 + $0x27] sm:$0xff]
      %v4033 = vld [vmem:[%s4029 + $0x2f] sm:$0xff]
      %v4034 = vld [vmem:[%s4029 + $0x47] sm:$0xff]
      %v4035 = vld [vmem:[%s4029 + $0x4f] sm:$0xff]
      %v4036 = vld [vmem:[%s4029 + $0x67] sm:$0xff]
      %v4037 = vld [vmem:[%s4029 + $0x6f] sm:$0xff]
      %v4038 = vld [vmem:[%s4029 + $0x87] sm:$0xff]
      %v4039 = vld [vmem:[%s4029 + $0x8f] sm:$0xff]
      %v4040 = vld [vmem:[%s4029 + $0xa7] sm:$0xff]
      %v4041 = vld [vmem:[%s4029 + $0xaf] sm:$0xff]
      %v4042 = vld [vmem:[%s4029 + $0xc7] sm:$0xff]
      %v4043 = vld [vmem:[%s4029 + $0xcf] sm:$0xff]
      %v4044 = vld [vmem:[%s4029 + $0xe7] sm:$0xff]
      %v4045 = vld [vmem:[%s4029 + $0xef] sm:$0xff]
      %v4046 = vld [vmem:[%s4029 + $0x107] sm:$0xff]
      %v4047 = vld [vmem:[%s4029 + $0x10f] sm:$0xff]
      %v4048 = vld [vmem:[%s4029 + $0x127] sm:$0xff]
      %v4049 = vld [vmem:[%s4029 + $0x12f] sm:$0xff]
      %v4050 = vld [vmem:[%s4029 + $0x147] sm:$0xff]
      %v4051 = vld [vmem:[%s4029 + $0x14f] sm:$0xff]
      %v4052 = vld [vmem:[%s4029 + $0x167] sm:$0xff]
      %v4053 = vld [vmem:[%s4029 + $0x16f] sm:$0xff]
      %v4054 = vld [vmem:[%s4029 + $0x187] sm:$0xff]
      %v4055 = vld [vmem:[%s4029 + $0x18f] sm:$0xff]
      %v4056 = vld [vmem:[%s4029 + $0x1a7] sm:$0xff]
      %v4057 = vld [vmem:[%s4029 + $0x1af] sm:$0xff]
      %v4058 = vld [vmem:[%s4029 + $0x1c7] sm:$0xff]
      %v4059 = vld [vmem:[%s4029 + $0x1cf] sm:$0xff]
      %v4060 = vld [vmem:[%s4029 + $0x1e7] sm:$0xff]
      %v4061 = vld [vmem:[%s4029 + $0x1ef] sm:$0xff]
      %v4062 = vld [vmem:[%s9 + $0x6] sm:$0x1]
      %v4063 = vlaneseq
      %v4064 = vshrl.u32 %v4063, 7
      %v4065 = vsub.s32 0, %v4064
      %v4066 = vrot.slane %v4062, %v4065
      %v4067 = vmul.f32 %v4030, %v4066
      %v4068 = vmul.f32 %v4031, %v4066
      %v4069 = vmul.f32 %v4032, %v4066
      %v4070 = vmul.f32 %v4033, %v4066
      %v4071 = vmul.f32 %v4034, %v4066
      %v4072 = vmul.f32 %v4035, %v4066
      %v4073 = vmul.f32 %v4036, %v4066
      %v4074 = vmul.f32 %v4037, %v4066
      %v4075 = vmul.f32 %v4038, %v4066
      %v4076 = vmul.f32 %v4039, %v4066
      %v4077 = vmul.f32 %v4040, %v4066
      %v4078 = vmul.f32 %v4041, %v4066
      %v4079 = vmul.f32 %v4042, %v4066
      %v4080 = vmul.f32 %v4043, %v4066
      %v4081 = vmul.f32 %v4044, %v4066
      %v4082 = vmul.f32 %v4045, %v4066
      %v4083 = vmul.f32 %v4046, %v4066
      %v4084 = vmul.f32 %v4047, %v4066
      %v4085 = vmul.f32 %v4048, %v4066
      %v4086 = vmul.f32 %v4049, %v4066
      %v4087 = vmul.f32 %v4050, %v4066
      %v4088 = vmul.f32 %v4051, %v4066
      %v4089 = vmul.f32 %v4052, %v4066
      %v4090 = vmul.f32 %v4053, %v4066
      %v4091 = vmul.f32 %v4054, %v4066
      %v4092 = vmul.f32 %v4055, %v4066
      %v4093 = vmul.f32 %v4056, %v4066
      %v4094 = vmul.f32 %v4057, %v4066
      %v4095 = vmul.f32 %v4058, %v4066
      %v4096 = vmul.f32 %v4059, %v4066
      %v4097 = vmul.f32 %v4060, %v4066
      %v4098 = vmul.f32 %v4061, %v4066
      %v4099 = vadd.f32 %v3997, %v4067
      %v4100 = vadd.f32 %v3998, %v4068
      %v4101 = vadd.f32 %v3999, %v4069
      %v4102 = vadd.f32 %v4000, %v4070
      %v4103 = vadd.f32 %v4001, %v4071
      %v4104 = vadd.f32 %v4002, %v4072
      %v4105 = vadd.f32 %v4003, %v4073
      %v4106 = vadd.f32 %v4004, %v4074
      %v4107 = vadd.f32 %v4005, %v4075
      %v4108 = vadd.f32 %v4006, %v4076
      %v4109 = vadd.f32 %v4007, %v4077
      %v4110 = vadd.f32 %v4008, %v4078
      %v4111 = vadd.f32 %v4009, %v4079
      %v4112 = vadd.f32 %v4010, %v4080
      %v4113 = vadd.f32 %v4011, %v4081
      %v4114 = vadd.f32 %v4012, %v4082
      %v4115 = vadd.f32 %v4013, %v4083
      %v4116 = vadd.f32 %v4014, %v4084
      %v4117 = vadd.f32 %v4015, %v4085
      %v4118 = vadd.f32 %v4016, %v4086
      %v4119 = vadd.f32 %v4017, %v4087
      %v4120 = vadd.f32 %v4018, %v4088
      %v4121 = vadd.f32 %v4019, %v4089
      %v4122 = vadd.f32 %v4020, %v4090
      %v4123 = vadd.f32 %v4021, %v4091
      %v4124 = vadd.f32 %v4022, %v4092
      %v4125 = vadd.f32 %v4023, %v4093
      %v4126 = vadd.f32 %v4024, %v4094
      %v4127 = vadd.f32 %v4025, %v4095
      %v4128 = vadd.f32 %v4026, %v4096
      %v4129 = vadd.f32 %v4027, %v4097
      %v4130 = vadd.f32 %v4028, %v4098
      %v4131 = vld [vmem:[%s4029 + $0x8] sm:$0xff]
      %v4132 = vld [vmem:[%s4029 + $0x10] sm:$0xff]
      %v4133 = vld [vmem:[%s4029 + $0x28] sm:$0xff]
      %v4134 = vld [vmem:[%s4029 + $0x30] sm:$0xff]
      %v4135 = vld [vmem:[%s4029 + $0x48] sm:$0xff]
      %v4136 = vld [vmem:[%s4029 + $0x50] sm:$0xff]
      %v4137 = vld [vmem:[%s4029 + $0x68] sm:$0xff]
      %v4138 = vld [vmem:[%s4029 + $0x70] sm:$0xff]
      %v4139 = vld [vmem:[%s4029 + $0x88] sm:$0xff]
      %v4140 = vld [vmem:[%s4029 + $0x90] sm:$0xff]
      %v4141 = vld [vmem:[%s4029 + $0xa8] sm:$0xff]
      %v4142 = vld [vmem:[%s4029 + $0xb0] sm:$0xff]
      %v4143 = vld [vmem:[%s4029 + $0xc8] sm:$0xff]
      %v4144 = vld [vmem:[%s4029 + $0xd0] sm:$0xff]
      %v4145 = vld [vmem:[%s4029 + $0xe8] sm:$0xff]
      %v4146 = vld [vmem:[%s4029 + $0xf0] sm:$0xff]
      %v4147 = vld [vmem:[%s4029 + $0x108] sm:$0xff]
      %v4148 = vld [vmem:[%s4029 + $0x110] sm:$0xff]
      %v4149 = vld [vmem:[%s4029 + $0x128] sm:$0xff]
      %v4150 = vld [vmem:[%s4029 + $0x130] sm:$0xff]
      %v4151 = vld [vmem:[%s4029 + $0x148] sm:$0xff]
      %v4152 = vld [vmem:[%s4029 + $0x150] sm:$0xff]
      %v4153 = vld [vmem:[%s4029 + $0x168] sm:$0xff]
      %v4154 = vld [vmem:[%s4029 + $0x170] sm:$0xff]
      %v4155 = vld [vmem:[%s4029 + $0x188] sm:$0xff]
      %v4156 = vld [vmem:[%s4029 + $0x190] sm:$0xff]
      %v4157 = vld [vmem:[%s4029 + $0x1a8] sm:$0xff]
      %v4158 = vld [vmem:[%s4029 + $0x1b0] sm:$0xff]
      %v4159 = vld [vmem:[%s4029 + $0x1c8] sm:$0xff]
      %v4160 = vld [vmem:[%s4029 + $0x1d0] sm:$0xff]
      %v4161 = vld [vmem:[%s4029 + $0x1e8] sm:$0xff]
      %v4162 = vld [vmem:[%s4029 + $0x1f0] sm:$0xff]
      %v4163 = vld [vmem:[%s9 + $0x7] sm:$0x1]
      %v4164 = vlaneseq
      %v4165 = vshrl.u32 %v4164, 7
      %v4166 = vsub.s32 0, %v4165
      %v4167 = vrot.slane %v4163, %v4166
      %v4168 = vmul.f32 %v4131, %v4167
      %v4169 = vmul.f32 %v4132, %v4167
      %v4170 = vmul.f32 %v4133, %v4167
      %v4171 = vmul.f32 %v4134, %v4167
      %v4172 = vmul.f32 %v4135, %v4167
      %v4173 = vmul.f32 %v4136, %v4167
      %v4174 = vmul.f32 %v4137, %v4167
      %v4175 = vmul.f32 %v4138, %v4167
      %v4176 = vmul.f32 %v4139, %v4167
      %v4177 = vmul.f32 %v4140, %v4167
      %v4178 = vmul.f32 %v4141, %v4167
      %v4179 = vmul.f32 %v4142, %v4167
      %v4180 = vmul.f32 %v4143, %v4167
      %v4181 = vmul.f32 %v4144, %v4167
      %v4182 = vmul.f32 %v4145, %v4167
      %v4183 = vmul.f32 %v4146, %v4167
      %v4184 = vmul.f32 %v4147, %v4167
      %v4185 = vmul.f32 %v4148, %v4167
      %v4186 = vmul.f32 %v4149, %v4167
      %v4187 = vmul.f32 %v4150, %v4167
      %v4188 = vmul.f32 %v4151, %v4167
      %v4189 = vmul.f32 %v4152, %v4167
      %v4190 = vmul.f32 %v4153, %v4167
      %v4191 = vmul.f32 %v4154, %v4167
      %v4192 = vmul.f32 %v4155, %v4167
      %v4193 = vmul.f32 %v4156, %v4167
      %v4194 = vmul.f32 %v4157, %v4167
      %v4195 = vmul.f32 %v4158, %v4167
      %v4196 = vmul.f32 %v4159, %v4167
      %v4197 = vmul.f32 %v4160, %v4167
      %v4198 = vmul.f32 %v4161, %v4167
      %v4199 = vmul.f32 %v4162, %v4167
      %v4200 = vadd.f32 %v4099, %v4168
      %v4201 = vadd.f32 %v4100, %v4169
      %v4202 = vadd.f32 %v4101, %v4170
      %v4203 = vadd.f32 %v4102, %v4171
      %v4204 = vadd.f32 %v4103, %v4172
      %v4205 = vadd.f32 %v4104, %v4173
      %v4206 = vadd.f32 %v4105, %v4174
      %v4207 = vadd.f32 %v4106, %v4175
      %v4208 = vadd.f32 %v4107, %v4176
      %v4209 = vadd.f32 %v4108, %v4177
      %v4210 = vadd.f32 %v4109, %v4178
      %v4211 = vadd.f32 %v4110, %v4179
      %v4212 = vadd.f32 %v4111, %v4180
      %v4213 = vadd.f32 %v4112, %v4181
      %v4214 = vadd.f32 %v4113, %v4182
      %v4215 = vadd.f32 %v4114, %v4183
      %v4216 = vadd.f32 %v4115, %v4184
      %v4217 = vadd.f32 %v4116, %v4185
      %v4218 = vadd.f32 %v4117, %v4186
      %v4219 = vadd.f32 %v4118, %v4187
      %v4220 = vadd.f32 %v4119, %v4188
      %v4221 = vadd.f32 %v4120, %v4189
      %v4222 = vadd.f32 %v4121, %v4190
      %v4223 = vadd.f32 %v4122, %v4191
      %v4224 = vadd.f32 %v4123, %v4192
      %v4225 = vadd.f32 %v4124, %v4193
      %v4226 = vadd.f32 %v4125, %v4194
      %v4227 = vadd.f32 %v4126, %v4195
      %v4228 = vadd.f32 %v4127, %v4196
      %v4229 = vadd.f32 %v4128, %v4197
      %v4230 = vadd.f32 %v4129, %v4198
      %v4231 = vadd.f32 %v4130, %v4199
      %v4232 = vld [vmem:[%s4029 + $0x9] sm:$0xff]
      %v4233 = vld [vmem:[%s4029 + $0x11] sm:$0xff]
      %v4234 = vld [vmem:[%s4029 + $0x29] sm:$0xff]
      %v4235 = vld [vmem:[%s4029 + $0x31] sm:$0xff]
      %v4236 = vld [vmem:[%s4029 + $0x49] sm:$0xff]
      %v4237 = vld [vmem:[%s4029 + $0x51] sm:$0xff]
      %v4238 = vld [vmem:[%s4029 + $0x69] sm:$0xff]
      %v4239 = vld [vmem:[%s4029 + $0x71] sm:$0xff]
      %v4240 = vld [vmem:[%s4029 + $0x89] sm:$0xff]
      %v4241 = vld [vmem:[%s4029 + $0x91] sm:$0xff]
      %v4242 = vld [vmem:[%s4029 + $0xa9] sm:$0xff]
      %v4243 = vld [vmem:[%s4029 + $0xb1] sm:$0xff]
      %v4244 = vld [vmem:[%s4029 + $0xc9] sm:$0xff]
      %v4245 = vld [vmem:[%s4029 + $0xd1] sm:$0xff]
      %v4246 = vld [vmem:[%s4029 + $0xe9] sm:$0xff]
      %v4247 = vld [vmem:[%s4029 + $0xf1] sm:$0xff]
      %v4248 = vld [vmem:[%s4029 + $0x109] sm:$0xff]
      %v4249 = vld [vmem:[%s4029 + $0x111] sm:$0xff]
      %v4250 = vld [vmem:[%s4029 + $0x129] sm:$0xff]
      %v4251 = vld [vmem:[%s4029 + $0x131] sm:$0xff]
      %v4252 = vld [vmem:[%s4029 + $0x149] sm:$0xff]
      %v4253 = vld [vmem:[%s4029 + $0x151] sm:$0xff]
      %v4254 = vld [vmem:[%s4029 + $0x169] sm:$0xff]
      %v4255 = vld [vmem:[%s4029 + $0x171] sm:$0xff]
      %v4256 = vld [vmem:[%s4029 + $0x189] sm:$0xff]
      %v4257 = vld [vmem:[%s4029 + $0x191] sm:$0xff]
      %v4258 = vld [vmem:[%s4029 + $0x1a9] sm:$0xff]
      %v4259 = vld [vmem:[%s4029 + $0x1b1] sm:$0xff]
      %v4260 = vld [vmem:[%s4029 + $0x1c9] sm:$0xff]
      %v4261 = vld [vmem:[%s4029 + $0x1d1] sm:$0xff]
      %v4262 = vld [vmem:[%s4029 + $0x1e9] sm:$0xff]
      %v4263 = vld [vmem:[%s4029 + $0x1f1] sm:$0xff]
      %v4264 = vld [vmem:[%s9 + $0x8] sm:$0x1]
      %v4265 = vlaneseq
      %v4266 = vshrl.u32 %v4265, 7
      %v4267 = vsub.s32 0, %v4266
      %v4268 = vrot.slane %v4264, %v4267
      %v4269 = vmul.f32 %v4232, %v4268
      %v4270 = vmul.f32 %v4233, %v4268
      %v4271 = vmul.f32 %v4234, %v4268
      %v4272 = vmul.f32 %v4235, %v4268
      %v4273 = vmul.f32 %v4236, %v4268
      %v4274 = vmul.f32 %v4237, %v4268
      %v4275 = vmul.f32 %v4238, %v4268
      %v4276 = vmul.f32 %v4239, %v4268
      %v4277 = vmul.f32 %v4240, %v4268
      %v4278 = vmul.f32 %v4241, %v4268
      %v4279 = vmul.f32 %v4242, %v4268
      %v4280 = vmul.f32 %v4243, %v4268
      %v4281 = vmul.f32 %v4244, %v4268
      %v4282 = vmul.f32 %v4245, %v4268
      %v4283 = vmul.f32 %v4246, %v4268
      %v4284 = vmul.f32 %v4247, %v4268
      %v4285 = vmul.f32 %v4248, %v4268
      %v4286 = vmul.f32 %v4249, %v4268
      %v4287 = vmul.f32 %v4250, %v4268
      %v4288 = vmul.f32 %v4251, %v4268
      %v4289 = vmul.f32 %v4252, %v4268
      %v4290 = vmul.f32 %v4253, %v4268
      %v4291 = vmul.f32 %v4254, %v4268
      %v4292 = vmul.f32 %v4255, %v4268
      %v4293 = vmul.f32 %v4256, %v4268
      %v4294 = vmul.f32 %v4257, %v4268
      %v4295 = vmul.f32 %v4258, %v4268
      %v4296 = vmul.f32 %v4259, %v4268
      %v4297 = vmul.f32 %v4260, %v4268
      %v4298 = vmul.f32 %v4261, %v4268
      %v4299 = vmul.f32 %v4262, %v4268
      %v4300 = vmul.f32 %v4263, %v4268
      %v4301 = vadd.f32 %v4200, %v4269
      %v4302 = vadd.f32 %v4201, %v4270
      %v4303 = vadd.f32 %v4202, %v4271
      %v4304 = vadd.f32 %v4203, %v4272
      %v4305 = vadd.f32 %v4204, %v4273
      %v4306 = vadd.f32 %v4205, %v4274
      %v4307 = vadd.f32 %v4206, %v4275
      %v4308 = vadd.f32 %v4207, %v4276
      %v4309 = vadd.f32 %v4208, %v4277
      %v4310 = vadd.f32 %v4209, %v4278
      %v4311 = vadd.f32 %v4210, %v4279
      %v4312 = vadd.f32 %v4211, %v4280
      %v4313 = vadd.f32 %v4212, %v4281
      %v4314 = vadd.f32 %v4213, %v4282
      %v4315 = vadd.f32 %v4214, %v4283
      %v4316 = vadd.f32 %v4215, %v4284
      %v4317 = vadd.f32 %v4216, %v4285
      %v4318 = vadd.f32 %v4217, %v4286
      %v4319 = vadd.f32 %v4218, %v4287
      %v4320 = vadd.f32 %v4219, %v4288
      %v4321 = vadd.f32 %v4220, %v4289
      %v4322 = vadd.f32 %v4221, %v4290
      %v4323 = vadd.f32 %v4222, %v4291
      %v4324 = vadd.f32 %v4223, %v4292
      %v4325 = vadd.f32 %v4224, %v4293
      %v4326 = vadd.f32 %v4225, %v4294
      %v4327 = vadd.f32 %v4226, %v4295
      %v4328 = vadd.f32 %v4227, %v4296
      %v4329 = vadd.f32 %v4228, %v4297
      %v4330 = vadd.f32 %v4229, %v4298
      %v4331 = vadd.f32 %v4230, %v4299
      %v4332 = vadd.f32 %v4231, %v4300
      %v4333 = vld [vmem:[%s10] sm:$0x1]
      %v4334 = vlaneseq
      %v4335 = vshrl.u32 %v4334, 7
      %v4336 = vsub.s32 0, %v4335
      %v4337 = vrot.slane %v4333, %v4336
      %v4338 = vmul.f32 %v4301, %v4337
      %v4339 = vmul.f32 %v4302, %v4337
      %v4340 = vmul.f32 %v4303, %v4337
      %v4341 = vmul.f32 %v4304, %v4337
      %v4342 = vmul.f32 %v4305, %v4337
      %v4343 = vmul.f32 %v4306, %v4337
      %v4344 = vmul.f32 %v4307, %v4337
      %v4345 = vmul.f32 %v4308, %v4337
      %v4346 = vmul.f32 %v4309, %v4337
      %v4347 = vmul.f32 %v4310, %v4337
      %v4348 = vmul.f32 %v4311, %v4337
      %v4349 = vmul.f32 %v4312, %v4337
      %v4350 = vmul.f32 %v4313, %v4337
      %v4351 = vmul.f32 %v4314, %v4337
      %v4352 = vmul.f32 %v4315, %v4337
      %v4353 = vmul.f32 %v4316, %v4337
      %v4354 = vmul.f32 %v4317, %v4337
      %v4355 = vmul.f32 %v4318, %v4337
      %v4356 = vmul.f32 %v4319, %v4337
      %v4357 = vmul.f32 %v4320, %v4337
      %v4358 = vmul.f32 %v4321, %v4337
      %v4359 = vmul.f32 %v4322, %v4337
      %v4360 = vmul.f32 %v4323, %v4337
      %v4361 = vmul.f32 %v4324, %v4337
      %v4362 = vmul.f32 %v4325, %v4337
      %v4363 = vmul.f32 %v4326, %v4337
      %v4364 = vmul.f32 %v4327, %v4337
      %v4365 = vmul.f32 %v4328, %v4337
      %v4366 = vmul.f32 %v4329, %v4337
      %v4367 = vmul.f32 %v4330, %v4337
      %v4368 = vmul.f32 %v4331, %v4337
      %v4369 = vmul.f32 %v4332, %v4337
      %v4370 = vld [vmem:[%s10 + $0x1] sm:$0x1]
      %v4371 = vlaneseq
      %v4372 = vshrl.u32 %v4371, 7
      %v4373 = vsub.s32 0, %v4372
      %v4374 = vrot.slane %v4370, %v4373
      %v4375 = vadd.f32 %v4338, %v4374
      %v4376 = vadd.f32 %v4339, %v4374
      %v4377 = vadd.f32 %v4340, %v4374
      %v4378 = vadd.f32 %v4341, %v4374
      %v4379 = vadd.f32 %v4342, %v4374
      %v4380 = vadd.f32 %v4343, %v4374
      %v4381 = vadd.f32 %v4344, %v4374
      %v4382 = vadd.f32 %v4345, %v4374
      %v4383 = vadd.f32 %v4346, %v4374
      %v4384 = vadd.f32 %v4347, %v4374
      %v4385 = vadd.f32 %v4348, %v4374
      %v4386 = vadd.f32 %v4349, %v4374
      %v4387 = vadd.f32 %v4350, %v4374
      %v4388 = vadd.f32 %v4351, %v4374
      %v4389 = vadd.f32 %v4352, %v4374
      %v4390 = vadd.f32 %v4353, %v4374
      %v4391 = vadd.f32 %v4354, %v4374
      %v4392 = vadd.f32 %v4355, %v4374
      %v4393 = vadd.f32 %v4356, %v4374
      %v4394 = vadd.f32 %v4357, %v4374
      %v4395 = vadd.f32 %v4358, %v4374
      %v4396 = vadd.f32 %v4359, %v4374
      %v4397 = vadd.f32 %v4360, %v4374
      %v4398 = vadd.f32 %v4361, %v4374
      %v4399 = vadd.f32 %v4362, %v4374
      %v4400 = vadd.f32 %v4363, %v4374
      %v4401 = vadd.f32 %v4364, %v4374
      %v4402 = vadd.f32 %v4365, %v4374
      %v4403 = vadd.f32 %v4366, %v4374
      %v4404 = vadd.f32 %v4367, %v4374
      %v4405 = vadd.f32 %v4368, %v4374
      %v4406 = vadd.f32 %v4369, %v4374
      %v4407 = vpack.c.bf16 %v4376, %v4375
      %v4408 = vpack.c.bf16 %v4378, %v4377
      %v4409 = vpack.c.bf16 %v4380, %v4379
      %v4410 = vpack.c.bf16 %v4382, %v4381
      %v4411 = vpack.c.bf16 %v4384, %v4383
      %v4412 = vpack.c.bf16 %v4386, %v4385
      %v4413 = vpack.c.bf16 %v4388, %v4387
      %v4414 = vpack.c.bf16 %v4390, %v4389
      %v4415 = vpack.c.bf16 %v4392, %v4391
      %v4416 = vpack.c.bf16 %v4394, %v4393
      %v4417 = vpack.c.bf16 %v4396, %v4395
      %v4418 = vpack.c.bf16 %v4398, %v4397
      %v4419 = vpack.c.bf16 %v4400, %v4399
      %v4420 = vpack.c.bf16 %v4402, %v4401
      %v4421 = vpack.c.bf16 %v4404, %v4403
      %v4422 = vpack.c.bf16 %v4406, %v4405
      %v4423 = vld [vmem:[%s11] sm:$0x3]
      %v4425 = vsel %vm1955, %v4407, 0
      %v4428 = vsel %vm1955, %v4408, 0
      %v4431 = vsel %vm1955, %v4409, 0
      %v4434 = vsel %vm1955, %v4410, 0
      %v4437 = vsel %vm1955, %v4411, 0
      %v4440 = vsel %vm1955, %v4412, 0
      %v4443 = vsel %vm1955, %v4413, 0
      %v4446 = vsel %vm1955, %v4414, 0
      %v4449 = vsel %vm1955, %v4415, 0
      %v4452 = vsel %vm1955, %v4416, 0
      %v4455 = vsel %vm1955, %v4417, 0
      %v4458 = vsel %vm1955, %v4418, 0
      %v4461 = vsel %vm1955, %v4419, 0
      %v4464 = vsel %vm1955, %v4420, 0
      %v4467 = vsel %vm1955, %v4421, 0
      %v4470 = vsel %vm1955, %v4422, 0
      %v4473 = vsel %vm3079, %v4423, 0
      %4475 = vmatprep.subr.bf16.mxu0 0
      %4476 = vmatpush1.bf16.msra.mxu0 %v4473
      %4477 = vmatprep.subr.bf16.mxu0 0
      %4478 = vmatpush1.bf16.msra.mxu0 0
      %4479 = vmatprep.subr.bf16.mxu0 0
      %4480 = vmatpush1.bf16.msra.mxu0 0
      %4481 = vmatprep.subr.bf16.mxu0 0
      %4482 = vmatpush1.bf16.msra.mxu0 0
      %4483 = vmatprep.subr.bf16.mxu0 0
      %4484 = vmatpush1.bf16.msra.mxu0 0
      %4485 = vmatprep.subr.bf16.mxu0 0
      %4486 = vmatpush1.bf16.msra.mxu0 0
      %4487 = vmatprep.subr.bf16.mxu0 0
      %4488 = vmatpush1.bf16.msra.mxu0 0
      %4489 = vmatprep.subr.bf16.mxu0 0
      %4490 = vmatpush1.bf16.msra.mxu0 0
      %4491 = vmatprep.subr.bf16.mxu0 0
      %4492 = vmatpush1.bf16.msra.mxu0 0
      %4493 = vmatprep.subr.bf16.mxu0 0
      %4494 = vmatpush1.bf16.msra.mxu0 0
      %4495 = vmatprep.subr.bf16.mxu0 0
      %4496 = vmatpush1.bf16.msra.mxu0 0
      %4497 = vmatprep.subr.bf16.mxu0 0
      %4498 = vmatpush1.bf16.msra.mxu0 0
      %4499 = vmatprep.subr.bf16.mxu0 0
      %4500 = vmatpush1.bf16.msra.mxu0 0
      %4501 = vmatprep.subr.bf16.mxu0 0
      %4502 = vmatpush1.bf16.msra.mxu0 0
      %4503 = vmatprep.subr.bf16.mxu0 0
      %4504 = vmatpush1.bf16.msra.mxu0 0
      %4505 = vmatprep.subr.bf16.mxu0 0
      %4506 = vmatpush1.bf16.msra.mxu0 0
      %4507 = vmatprep.mubr.bf16.mxu0 0
      %4508 = vmatmul.mubr.bf16.gmra.mrb[0].mxu0 %v4425
      %v4509 = vpop.f32.mrb[0].mxu0
      %v4510 = vadd.f32 0.0, %v4509
      %v4511 = vpop.f32.mrb[0].mxu0
      %v4512 = vpop.f32.mrb[0].mxu0
      %v4513 = vadd.f32 0.0, %v4512
      %v4514 = vpop.f32.mrb[0].mxu0
      %4515 = vmatprep.mubr.bf16.mxu0 0
      %4516 = vmatmul.mubr.bf16.gmra.mrb[0].mxu0 %v4428
      %v4517 = vpop.f32.mrb[0].mxu0
      %v4518 = vadd.f32 0.0, %v4517
      %v4519 = vpop.f32.mrb[0].mxu0
      %v4520 = vpop.f32.mrb[0].mxu0
      %v4521 = vadd.f32 0.0, %v4520
      %v4522 = vpop.f32.mrb[0].mxu0
      %4523 = vmatprep.mubr.bf16.mxu0 0
      %4524 = vmatmul.mubr.bf16.gmra.mrb[0].mxu0 %v4431
      %v4525 = vpop.f32.mrb[0].mxu0
      %v4526 = vadd.f32 0.0, %v4525
      %v4527 = vpop.f32.mrb[0].mxu0
      %v4528 = vpop.f32.mrb[0].mxu0
      %v4529 = vadd.f32 0.0, %v4528
      %v4530 = vpop.f32.mrb[0].mxu0
      %4531 = vmatprep.mubr.bf16.mxu0 0
      %4532 = vmatmul.mubr.bf16.gmra.mrb[0].mxu0 %v4434
      %v4533 = vpop.f32.mrb[0].mxu0
      %v4534 = vadd.f32 0.0, %v4533
      %v4535 = vpop.f32.mrb[0].mxu0
      %v4536 = vpop.f32.mrb[0].mxu0
      %v4537 = vadd.f32 0.0, %v4536
      %v4538 = vpop.f32.mrb[0].mxu0
      %4539 = vmatprep.mubr.bf16.mxu0 0
      %4540 = vmatmul.mubr.bf16.gmra.mrb[0].mxu0 %v4437
      %v4541 = vpop.f32.mrb[0].mxu0
      %v4542 = vadd.f32 0.0, %v4541
      %v4543 = vpop.f32.mrb[0].mxu0
      %v4544 = vpop.f32.mrb[0].mxu0
      %v4545 = vadd.f32 0.0, %v4544
      %v4546 = vpop.f32.mrb[0].mxu0
      %4547 = vmatprep.mubr.bf16.mxu0 0
      %4548 = vmatmul.mubr.bf16.gmra.mrb[0].mxu0 %v4440
      %v4549 = vpop.f32.mrb[0].mxu0
      %v4550 = vadd.f32 0.0, %v4549
      %v4551 = vpop.f32.mrb[0].mxu0
      %v4552 = vpop.f32.mrb[0].mxu0
      %v4553 = vadd.f32 0.0, %v4552
      %v4554 = vpop.f32.mrb[0].mxu0
      %4555 = vmatprep.mubr.bf16.mxu0 0
      %4556 = vmatmul.mubr.bf16.gmra.mrb[0].mxu0 %v4443
      %v4557 = vpop.f32.mrb[0].mxu0
      %v4558 = vadd.f32 0.0, %v4557
      %v4559 = vpop.f32.mrb[0].mxu0
      %v4560 = vpop.f32.mrb[0].mxu0
      %v4561 = vadd.f32 0.0, %v4560
      %v4562 = vpop.f32.mrb[0].mxu0
      %4563 = vmatprep.mubr.bf16.mxu0 0
      %4564 = vmatmul.mubr.bf16.gmra.mrb[0].mxu0 %v4446
      %v4565 = vpop.f32.mrb[0].mxu0
      %v4566 = vadd.f32 0.0, %v4565
      %v4567 = vpop.f32.mrb[0].mxu0
      %v4568 = vpop.f32.mrb[0].mxu0
      %v4569 = vadd.f32 0.0, %v4568
      %v4570 = vpop.f32.mrb[0].mxu0
      %4571 = vmatprep.mubr.bf16.mxu0 0
      %4572 = vmatmul.mubr.bf16.gmra.mrb[0].mxu0 %v4449
      %v4573 = vpop.f32.mrb[0].mxu0
      %v4574 = vadd.f32 0.0, %v4573
      %v4575 = vpop.f32.mrb[0].mxu0
      %v4576 = vpop.f32.mrb[0].mxu0
      %v4577 = vadd.f32 0.0, %v4576
      %v4578 = vpop.f32.mrb[0].mxu0
      %4579 = vmatprep.mubr.bf16.mxu0 0
      %4580 = vmatmul.mubr.bf16.gmra.mrb[0].mxu0 %v4452
      %v4581 = vpop.f32.mrb[0].mxu0
      %v4582 = vadd.f32 0.0, %v4581
      %v4583 = vpop.f32.mrb[0].mxu0
      %v4584 = vpop.f32.mrb[0].mxu0
      %v4585 = vadd.f32 0.0, %v4584
      %v4586 = vpop.f32.mrb[0].mxu0
      %4587 = vmatprep.mubr.bf16.mxu0 0
      %4588 = vmatmul.mubr.bf16.gmra.mrb[0].mxu0 %v4455
      %v4589 = vpop.f32.mrb[0].mxu0
      %v4590 = vadd.f32 0.0, %v4589
      %v4591 = vpop.f32.mrb[0].mxu0
      %v4592 = vpop.f32.mrb[0].mxu0
      %v4593 = vadd.f32 0.0, %v4592
      %v4594 = vpop.f32.mrb[0].mxu0
      %4595 = vmatprep.mubr.bf16.mxu0 0
      %4596 = vmatmul.mubr.bf16.gmra.mrb[0].mxu0 %v4458
      %v4597 = vpop.f32.mrb[0].mxu0
      %v4598 = vadd.f32 0.0, %v4597
      %v4599 = vpop.f32.mrb[0].mxu0
      %v4600 = vpop.f32.mrb[0].mxu0
      %v4601 = vadd.f32 0.0, %v4600
      %v4602 = vpop.f32.mrb[0].mxu0
      %4603 = vmatprep.mubr.bf16.mxu0 0
      %4604 = vmatmul.mubr.bf16.gmra.mrb[0].mxu0 %v4461
      %v4605 = vpop.f32.mrb[0].mxu0
      %v4606 = vadd.f32 0.0, %v4605
      %v4607 = vpop.f32.mrb[0].mxu0
      %v4608 = vpop.f32.mrb[0].mxu0
      %v4609 = vadd.f32 0.0, %v4608
      %v4610 = vpop.f32.mrb[0].mxu0
      %4611 = vmatprep.mubr.bf16.mxu0 0
      %4612 = vmatmul.mubr.bf16.gmra.mrb[0].mxu0 %v4464
      %v4613 = vpop.f32.mrb[0].mxu0
      %v4614 = vadd.f32 0.0, %v4613
      %v4615 = vpop.f32.mrb[0].mxu0
      %v4616 = vpop.f32.mrb[0].mxu0
      %v4617 = vadd.f32 0.0, %v4616
      %v4618 = vpop.f32.mrb[0].mxu0
      %4619 = vmatprep.mubr.bf16.mxu0 0
      %4620 = vmatmul.mubr.bf16.gmra.mrb[0].mxu0 %v4467
      %v4621 = vpop.f32.mrb[0].mxu0
      %v4622 = vadd.f32 0.0, %v4621
      %v4623 = vpop.f32.mrb[0].mxu0
      %v4624 = vpop.f32.mrb[0].mxu0
      %v4625 = vadd.f32 0.0, %v4624
      %v4626 = vpop.f32.mrb[0].mxu0
      %4627 = vmatprep.mubr.bf16.mxu0 0
      %4628 = vmatmul.mubr.bf16.gmra.mrb[0].mxu0 %v4470
      %v4629 = vpop.f32.mrb[0].mxu0
      %v4630 = vadd.f32 0.0, %v4629
      %v4631 = vpop.f32.mrb[0].mxu0
      %v4632 = vpop.f32.mrb[0].mxu0
      %v4633 = vadd.f32 0.0, %v4632
      %v4634 = vpop.f32.mrb[0].mxu0
      %4635 = vdwg.mxu0
      %v4636 = vld [vmem:[%s12] sm:$0x1]
      %v4637 = vlaneseq
      %v4638 = vshrl.u32 %v4637, 7
      %v4639 = vsub.s32 0, %v4638
      %v4640 = vrot.slane %v4636, %v4639
      %v4641 = vmul.f32 %v4510, %v4640
      %v4642 = vmul.f32 %v4513, %v4640
      %v4643 = vmul.f32 %v4518, %v4640
      %v4644 = vmul.f32 %v4521, %v4640
      %v4645 = vmul.f32 %v4526, %v4640
      %v4646 = vmul.f32 %v4529, %v4640
      %v4647 = vmul.f32 %v4534, %v4640
      %v4648 = vmul.f32 %v4537, %v4640
      %v4649 = vmul.f32 %v4542, %v4640
      %v4650 = vmul.f32 %v4545, %v4640
      %v4651 = vmul.f32 %v4550, %v4640
      %v4652 = vmul.f32 %v4553, %v4640
      %v4653 = vmul.f32 %v4558, %v4640
      %v4654 = vmul.f32 %v4561, %v4640
      %v4655 = vmul.f32 %v4566, %v4640
      %v4656 = vmul.f32 %v4569, %v4640
      %v4657 = vmul.f32 %v4574, %v4640
      %v4658 = vmul.f32 %v4577, %v4640
      %v4659 = vmul.f32 %v4582, %v4640
      %v4660 = vmul.f32 %v4585, %v4640
      %v4661 = vmul.f32 %v4590, %v4640
      %v4662 = vmul.f32 %v4593, %v4640
      %v4663 = vmul.f32 %v4598, %v4640
      %v4664 = vmul.f32 %v4601, %v4640
      %v4665 = vmul.f32 %v4606, %v4640
      %v4666 = vmul.f32 %v4609, %v4640
      %v4667 = vmul.f32 %v4614, %v4640
      %v4668 = vmul.f32 %v4617, %v4640
      %v4669 = vmul.f32 %v4622, %v4640
      %v4670 = vmul.f32 %v4625, %v4640
      %v4671 = vmul.f32 %v4630, %v4640
      %v4672 = vmul.f32 %v4633, %v4640
      %v4673 = vld [vmem:[%s12 + $0x1] sm:$0x1]
      %v4674 = vlaneseq
      %v4675 = vshrl.u32 %v4674, 7
      %v4676 = vsub.s32 0, %v4675
      %v4677 = vrot.slane %v4673, %v4676
      %v4678 = vadd.f32 %v4641, %v4677
      %v4679 = vadd.f32 %v4642, %v4677
      %v4680 = vadd.f32 %v4643, %v4677
      %v4681 = vadd.f32 %v4644, %v4677
      %v4682 = vadd.f32 %v4645, %v4677
      %v4683 = vadd.f32 %v4646, %v4677
      %v4684 = vadd.f32 %v4647, %v4677
      %v4685 = vadd.f32 %v4648, %v4677
      %v4686 = vadd.f32 %v4649, %v4677
      %v4687 = vadd.f32 %v4650, %v4677
      %v4688 = vadd.f32 %v4651, %v4677
      %v4689 = vadd.f32 %v4652, %v4677
      %v4690 = vadd.f32 %v4653, %v4677
      %v4691 = vadd.f32 %v4654, %v4677
      %v4692 = vadd.f32 %v4655, %v4677
      %v4693 = vadd.f32 %v4656, %v4677
      %v4694 = vadd.f32 %v4657, %v4677
      %v4695 = vadd.f32 %v4658, %v4677
      %v4696 = vadd.f32 %v4659, %v4677
      %v4697 = vadd.f32 %v4660, %v4677
      %v4698 = vadd.f32 %v4661, %v4677
      %v4699 = vadd.f32 %v4662, %v4677
      %v4700 = vadd.f32 %v4663, %v4677
      %v4701 = vadd.f32 %v4664, %v4677
      %v4702 = vadd.f32 %v4665, %v4677
      %v4703 = vadd.f32 %v4666, %v4677
      %v4704 = vadd.f32 %v4667, %v4677
      %v4705 = vadd.f32 %v4668, %v4677
      %v4706 = vadd.f32 %v4669, %v4677
      %v4707 = vadd.f32 %v4670, %v4677
      %v4708 = vadd.f32 %v4671, %v4677
      %v4709 = vadd.f32 %v4672, %v4677
      %v4710 = vpack.c.bf16 %v497, %v496
      %v4711 = vpack.c.bf16 %v499, %v498
      %v4712 = vpack.c.bf16 %v501, %v500
      %v4713 = vpack.c.bf16 %v503, %v502
      %v4714 = vpack.c.bf16 %v505, %v504
      %v4715 = vpack.c.bf16 %v507, %v506
      %v4716 = vpack.c.bf16 %v509, %v508
      %v4717 = vpack.c.bf16 %v511, %v510
      %v4718 = vpack.c.bf16 %v513, %v512
      %v4719 = vpack.c.bf16 %v515, %v514
      %v4720 = vpack.c.bf16 %v517, %v516
      %v4721 = vpack.c.bf16 %v519, %v518
      %v4722 = vpack.c.bf16 %v521, %v520
      %v4723 = vpack.c.bf16 %v523, %v522
      %v4724 = vpack.c.bf16 %v525, %v524
      %v4725 = vpack.c.bf16 %v527, %v526
      %v4726 = vld [vmem:[%s13] sm:$0xf]
      %v4728 = vsel %vm528, %v4710, 0
      %v4731 = vsel %vm528, %v4711, 0
      %v4734 = vsel %vm528, %v4712, 0
      %v4737 = vsel %vm528, %v4713, 0
      %v4740 = vsel %vm528, %v4714, 0
      %v4743 = vsel %vm528, %v4715, 0
      %v4746 = vsel %vm528, %v4716, 0
      %v4749 = vsel %vm528, %v4717, 0
      %v4752 = vsel %vm528, %v4718, 0
      %v4755 = vsel %vm528, %v4719, 0
      %v4758 = vsel %vm528, %v4720, 0
      %v4761 = vsel %vm528, %v4721, 0
      %v4764 = vsel %vm528, %v4722, 0
      %v4767 = vsel %vm528, %v4723, 0
      %v4770 = vsel %vm528, %v4724, 0
      %v4773 = vsel %vm528, %v4725, 0
      %v4776 = vsel %vm1684, %v4726, 0
      %4778 = vmatprep.subr.bf16.mxu0 0
      %4779 = vmatpush1.bf16.msra.mxu0 %v4776
      %4780 = vmatprep.subr.bf16.mxu0 0
      %4781 = vmatpush1.bf16.msra.mxu0 0
      %4782 = vmatprep.subr.bf16.mxu0 0
      %4783 = vmatpush1.bf16.msra.mxu0 0
      %4784 = vmatprep.subr.bf16.mxu0 0
      %4785 = vmatpush1.bf16.msra.mxu0 0
      %4786 = vmatprep.subr.bf16.mxu0 0
      %4787 = vmatpush1.bf16.msra.mxu0 0
      %4788 = vmatprep.subr.bf16.mxu0 0
      %4789 = vmatpush1.bf16.msra.mxu0 0
      %4790 = vmatprep.subr.bf16.mxu0 0
      %4791 = vmatpush1.bf16.msra.mxu0 0
      %4792 = vmatprep.subr.bf16.mxu0 0
      %4793 = vmatpush1.bf16.msra.mxu0 0
      %4794 = vmatprep.subr.bf16.mxu0 0
      %4795 = vmatpush1.bf16.msra.mxu0 0
      %4796 = vmatprep.subr.bf16.mxu0 0
      %4797 = vmatpush1.bf16.msra.mxu0 0
      %4798 = vmatprep.subr.bf16.mxu0 0
      %4799 = vmatpush1.bf16.msra.mxu0 0
      %4800 = vmatprep.subr.bf16.mxu0 0
      %4801 = vmatpush1.bf16.msra.mxu0 0
      %4802 = vmatprep.subr.bf16.mxu0 0
      %4803 = vmatpush1.bf16.msra.mxu0 0
      %4804 = vmatprep.subr.bf16.mxu0 0
      %4805 = vmatpush1.bf16.msra.mxu0 0
      %4806 = vmatprep.subr.bf16.mxu0 0
      %4807 = vmatpush1.bf16.msra.mxu0 0
      %4808 = vmatprep.subr.bf16.mxu0 0
      %4809 = vmatpush1.bf16.msra.mxu0 0
      %4810 = vmatprep.mubr.bf16.mxu0 0
      %4811 = vmatmul.mubr.bf16.gmra.mrb[0].mxu0 %v4728
      %v4812 = vpop.f32.mrb[0].mxu0
      %v4813 = vadd.f32 0.0, %v4812
      %v4814 = vpop.f32.mrb[0].mxu0
      %v4815 = vpop.f32.mrb[0].mxu0
      %v4816 = vadd.f32 0.0, %v4815
      %v4817 = vpop.f32.mrb[0].mxu0
      %4818 = vmatprep.mubr.bf16.mxu0 0
      %4819 = vmatmul.mubr.bf16.gmra.mrb[0].mxu0 %v4731
      %v4820 = vpop.f32.mrb[0].mxu0
      %v4821 = vadd.f32 0.0, %v4820
      %v4822 = vpop.f32.mrb[0].mxu0
      %v4823 = vpop.f32.mrb[0].mxu0
      %v4824 = vadd.f32 0.0, %v4823
      %v4825 = vpop.f32.mrb[0].mxu0
      %4826 = vmatprep.mubr.bf16.mxu0 0
      %4827 = vmatmul.mubr.bf16.gmra.mrb[0].mxu0 %v4734
      %v4828 = vpop.f32.mrb[0].mxu0
      %v4829 = vadd.f32 0.0, %v4828
      %v4830 = vpop.f32.mrb[0].mxu0
      %v4831 = vpop.f32.mrb[0].mxu0
      %v4832 = vadd.f32 0.0, %v4831
      %v4833 = vpop.f32.mrb[0].mxu0
      %4834 = vmatprep.mubr.bf16.mxu0 0
      %4835 = vmatmul.mubr.bf16.gmra.mrb[0].mxu0 %v4737
      %v4836 = vpop.f32.mrb[0].mxu0
      %v4837 = vadd.f32 0.0, %v4836
      %v4838 = vpop.f32.mrb[0].mxu0
      %v4839 = vpop.f32.mrb[0].mxu0
      %v4840 = vadd.f32 0.0, %v4839
      %v4841 = vpop.f32.mrb[0].mxu0
      %4842 = vmatprep.mubr.bf16.mxu0 0
      %4843 = vmatmul.mubr.bf16.gmra.mrb[0].mxu0 %v4740
      %v4844 = vpop.f32.mrb[0].mxu0
      %v4845 = vadd.f32 0.0, %v4844
      %v4846 = vpop.f32.mrb[0].mxu0
      %v4847 = vpop.f32.mrb[0].mxu0
      %v4848 = vadd.f32 0.0, %v4847
      %v4849 = vpop.f32.mrb[0].mxu0
      %4850 = vmatprep.mubr.bf16.mxu0 0
      %4851 = vmatmul.mubr.bf16.gmra.mrb[0].mxu0 %v4743
      %v4852 = vpop.f32.mrb[0].mxu0
      %v4853 = vadd.f32 0.0, %v4852
      %v4854 = vpop.f32.mrb[0].mxu0
      %v4855 = vpop.f32.mrb[0].mxu0
      %v4856 = vadd.f32 0.0, %v4855
      %v4857 = vpop.f32.mrb[0].mxu0
      %4858 = vmatprep.mubr.bf16.mxu0 0
      %4859 = vmatmul.mubr.bf16.gmra.mrb[0].mxu0 %v4746
      %v4860 = vpop.f32.mrb[0].mxu0
      %v4861 = vadd.f32 0.0, %v4860
      %v4862 = vpop.f32.mrb[0].mxu0
      %v4863 = vpop.f32.mrb[0].mxu0
      %v4864 = vadd.f32 0.0, %v4863
      %v4865 = vpop.f32.mrb[0].mxu0
      %4866 = vmatprep.mubr.bf16.mxu0 0
      %4867 = vmatmul.mubr.bf16.gmra.mrb[0].mxu0 %v4749
      %v4868 = vpop.f32.mrb[0].mxu0
      %v4869 = vadd.f32 0.0, %v4868
      %v4870 = vpop.f32.mrb[0].mxu0
      %v4871 = vpop.f32.mrb[0].mxu0
      %v4872 = vadd.f32 0.0, %v4871
      %v4873 = vpop.f32.mrb[0].mxu0
      %4874 = vmatprep.mubr.bf16.mxu0 0
      %4875 = vmatmul.mubr.bf16.gmra.mrb[0].mxu0 %v4752
      %v4876 = vpop.f32.mrb[0].mxu0
      %v4877 = vadd.f32 0.0, %v4876
      %v4878 = vpop.f32.mrb[0].mxu0
      %v4879 = vpop.f32.mrb[0].mxu0
      %v4880 = vadd.f32 0.0, %v4879
      %v4881 = vpop.f32.mrb[0].mxu0
      %4882 = vmatprep.mubr.bf16.mxu0 0
      %4883 = vmatmul.mubr.bf16.gmra.mrb[0].mxu0 %v4755
      %v4884 = vpop.f32.mrb[0].mxu0
      %v4885 = vadd.f32 0.0, %v4884
      %v4886 = vpop.f32.mrb[0].mxu0
      %v4887 = vpop.f32.mrb[0].mxu0
      %v4888 = vadd.f32 0.0, %v4887
      %v4889 = vpop.f32.mrb[0].mxu0
      %4890 = vmatprep.mubr.bf16.mxu0 0
      %4891 = vmatmul.mubr.bf16.gmra.mrb[0].mxu0 %v4758
      %v4892 = vpop.f32.mrb[0].mxu0
      %v4893 = vadd.f32 0.0, %v4892
      %v4894 = vpop.f32.mrb[0].mxu0
      %v4895 = vpop.f32.mrb[0].mxu0
      %v4896 = vadd.f32 0.0, %v4895
      %v4897 = vpop.f32.mrb[0].mxu0
      %4898 = vmatprep.mubr.bf16.mxu0 0
      %4899 = vmatmul.mubr.bf16.gmra.mrb[0].mxu0 %v4761
      %v4900 = vpop.f32.mrb[0].mxu0
      %v4901 = vadd.f32 0.0, %v4900
      %v4902 = vpop.f32.mrb[0].mxu0
      %v4903 = vpop.f32.mrb[0].mxu0
      %v4904 = vadd.f32 0.0, %v4903
      %v4905 = vpop.f32.mrb[0].mxu0
      %4906 = vmatprep.mubr.bf16.mxu0 0
      %4907 = vmatmul.mubr.bf16.gmra.mrb[0].mxu0 %v4764
      %v4908 = vpop.f32.mrb[0].mxu0
      %v4909 = vadd.f32 0.0, %v4908
      %v4910 = vpop.f32.mrb[0].mxu0
      %v4911 = vpop.f32.mrb[0].mxu0
      %v4912 = vadd.f32 0.0, %v4911
      %v4913 = vpop.f32.mrb[0].mxu0
      %4914 = vmatprep.mubr.bf16.mxu0 0
      %4915 = vmatmul.mubr.bf16.gmra.mrb[0].mxu0 %v4767
      %v4916 = vpop.f32.mrb[0].mxu0
      %v4917 = vadd.f32 0.0, %v4916
      %v4918 = vpop.f32.mrb[0].mxu0
      %v4919 = vpop.f32.mrb[0].mxu0
      %v4920 = vadd.f32 0.0, %v4919
      %v4921 = vpop.f32.mrb[0].mxu0
      %4922 = vmatprep.mubr.bf16.mxu0 0
      %4923 = vmatmul.mubr.bf16.gmra.mrb[0].mxu0 %v4770
      %v4924 = vpop.f32.mrb[0].mxu0
      %v4925 = vadd.f32 0.0, %v4924
      %v4926 = vpop.f32.mrb[0].mxu0
      %v4927 = vpop.f32.mrb[0].mxu0
      %v4928 = vadd.f32 0.0, %v4927
      %v4929 = vpop.f32.mrb[0].mxu0
      %4930 = vmatprep.mubr.bf16.mxu0 0
      %4931 = vmatmul.mubr.bf16.gmra.mrb[0].mxu0 %v4773
      %v4932 = vpop.f32.mrb[0].mxu0
      %v4933 = vadd.f32 0.0, %v4932
      %v4934 = vpop.f32.mrb[0].mxu0
      %v4935 = vpop.f32.mrb[0].mxu0
      %v4936 = vadd.f32 0.0, %v4935
      %v4937 = vpop.f32.mrb[0].mxu0
      %4938 = vdwg.mxu0
      %v4939 = vld [vmem:[%s14] sm:$0x1]
      %v4940 = vlaneseq
      %v4941 = vshrl.u32 %v4940, 7
      %v4942 = vsub.s32 0, %v4941
      %v4943 = vrot.slane %v4939, %v4942
      %v4944 = vmul.f32 %v4813, %v4943
      %v4945 = vmul.f32 %v4816, %v4943
      %v4946 = vmul.f32 %v4821, %v4943
      %v4947 = vmul.f32 %v4824, %v4943
      %v4948 = vmul.f32 %v4829, %v4943
      %v4949 = vmul.f32 %v4832, %v4943
      %v4950 = vmul.f32 %v4837, %v4943
      %v4951 = vmul.f32 %v4840, %v4943
      %v4952 = vmul.f32 %v4845, %v4943
      %v4953 = vmul.f32 %v4848, %v4943
      %v4954 = vmul.f32 %v4853, %v4943
      %v4955 = vmul.f32 %v4856, %v4943
      %v4956 = vmul.f32 %v4861, %v4943
      %v4957 = vmul.f32 %v4864, %v4943
      %v4958 = vmul.f32 %v4869, %v4943
      %v4959 = vmul.f32 %v4872, %v4943
      %v4960 = vmul.f32 %v4877, %v4943
      %v4961 = vmul.f32 %v4880, %v4943
      %v4962 = vmul.f32 %v4885, %v4943
      %v4963 = vmul.f32 %v4888, %v4943
      %v4964 = vmul.f32 %v4893, %v4943
      %v4965 = vmul.f32 %v4896, %v4943
      %v4966 = vmul.f32 %v4901, %v4943
      %v4967 = vmul.f32 %v4904, %v4943
      %v4968 = vmul.f32 %v4909, %v4943
      %v4969 = vmul.f32 %v4912, %v4943
      %v4970 = vmul.f32 %v4917, %v4943
      %v4971 = vmul.f32 %v4920, %v4943
      %v4972 = vmul.f32 %v4925, %v4943
      %v4973 = vmul.f32 %v4928, %v4943
      %v4974 = vmul.f32 %v4933, %v4943
      %v4975 = vmul.f32 %v4936, %v4943
      %v4976 = vld [vmem:[%s14 + $0x1] sm:$0x1]
      %v4977 = vlaneseq
      %v4978 = vshrl.u32 %v4977, 7
      %v4979 = vsub.s32 0, %v4978
      %v4980 = vrot.slane %v4976, %v4979
      %v4981 = vadd.f32 %v4944, %v4980
      %v4982 = vadd.f32 %v4945, %v4980
      %v4983 = vadd.f32 %v4946, %v4980
      %v4984 = vadd.f32 %v4947, %v4980
      %v4985 = vadd.f32 %v4948, %v4980
      %v4986 = vadd.f32 %v4949, %v4980
      %v4987 = vadd.f32 %v4950, %v4980
      %v4988 = vadd.f32 %v4951, %v4980
      %v4989 = vadd.f32 %v4952, %v4980
      %v4990 = vadd.f32 %v4953, %v4980
      %v4991 = vadd.f32 %v4954, %v4980
      %v4992 = vadd.f32 %v4955, %v4980
      %v4993 = vadd.f32 %v4956, %v4980
      %v4994 = vadd.f32 %v4957, %v4980
      %v4995 = vadd.f32 %v4958, %v4980
      %v4996 = vadd.f32 %v4959, %v4980
      %v4997 = vadd.f32 %v4960, %v4980
      %v4998 = vadd.f32 %v4961, %v4980
      %v4999 = vadd.f32 %v4962, %v4980
      %v5000 = vadd.f32 %v4963, %v4980
      %v5001 = vadd.f32 %v4964, %v4980
      %v5002 = vadd.f32 %v4965, %v4980
      %v5003 = vadd.f32 %v4966, %v4980
      %v5004 = vadd.f32 %v4967, %v4980
      %v5005 = vadd.f32 %v4968, %v4980
      %v5006 = vadd.f32 %v4969, %v4980
      %v5007 = vadd.f32 %v4970, %v4980
      %v5008 = vadd.f32 %v4971, %v4980
      %v5009 = vadd.f32 %v4972, %v4980
      %v5010 = vadd.f32 %v4973, %v4980
      %v5011 = vadd.f32 %v4974, %v4980
      %v5012 = vadd.f32 %v4975, %v4980
      %v5013 = vadd.f32 %v4678, %v4981
      %v5014 = vadd.f32 %v4679, %v4982
      %v5015 = vadd.f32 %v4680, %v4983
      %v5016 = vadd.f32 %v4681, %v4984
      %v5017 = vadd.f32 %v4682, %v4985
      %v5018 = vadd.f32 %v4683, %v4986
      %v5019 = vadd.f32 %v4684, %v4987
      %v5020 = vadd.f32 %v4685, %v4988
      %v5021 = vadd.f32 %v4686, %v4989
      %v5022 = vadd.f32 %v4687, %v4990
      %v5023 = vadd.f32 %v4688, %v4991
      %v5024 = vadd.f32 %v4689, %v4992
      %v5025 = vadd.f32 %v4690, %v4993
      %v5026 = vadd.f32 %v4691, %v4994
      %v5027 = vadd.f32 %v4692, %v4995
      %v5028 = vadd.f32 %v4693, %v4996
      %v5029 = vadd.f32 %v4694, %v4997
      %v5030 = vadd.f32 %v4695, %v4998
      %v5031 = vadd.f32 %v4696, %v4999
      %v5032 = vadd.f32 %v4697, %v5000
      %v5033 = vadd.f32 %v4698, %v5001
      %v5034 = vadd.f32 %v4699, %v5002
      %v5035 = vadd.f32 %v4700, %v5003
      %v5036 = vadd.f32 %v4701, %v5004
      %v5037 = vadd.f32 %v4702, %v5005
      %v5038 = vadd.f32 %v4703, %v5006
      %v5039 = vadd.f32 %v4704, %v5007
      %v5040 = vadd.f32 %v4705, %v5008
      %v5041 = vadd.f32 %v4706, %v5009
      %v5042 = vadd.f32 %v4707, %v5010
      %v5043 = vadd.f32 %v4708, %v5011
      %v5044 = vadd.f32 %v4709, %v5012
      %5045 = vst [vmem:[%s494] sm:$0xff] %v5013
      %5046 = vst [vmem:[%s494 + $0x8] sm:$0xff] %v5014
      %5047 = vst [vmem:[%s494 + $0x10] sm:$0xff] %v5015
      %5048 = vst [vmem:[%s494 + $0x18] sm:$0xff] %v5016
      %5049 = vst [vmem:[%s494 + $0x20] sm:$0xff] %v5017
      %5050 = vst [vmem:[%s494 + $0x28] sm:$0xff] %v5018
      %5051 = vst [vmem:[%s494 + $0x30] sm:$0xff] %v5019
      %5052 = vst [vmem:[%s494 + $0x38] sm:$0xff] %v5020
      %5053 = vst [vmem:[%s494 + $0x40] sm:$0xff] %v5021
      %5054 = vst [vmem:[%s494 + $0x48] sm:$0xff] %v5022
      %5055 = vst [vmem:[%s494 + $0x50] sm:$0xff] %v5023
      %5056 = vst [vmem:[%s494 + $0x58] sm:$0xff] %v5024
      %5057 = vst [vmem:[%s494 + $0x60] sm:$0xff] %v5025
      %5058 = vst [vmem:[%s494 + $0x68] sm:$0xff] %v5026
      %5059 = vst [vmem:[%s494 + $0x70] sm:$0xff] %v5027
      %5060 = vst [vmem:[%s494 + $0x78] sm:$0xff] %v5028
      %5061 = vst [vmem:[%s494 + $0x80] sm:$0xff] %v5029
      %5062 = vst [vmem:[%s494 + $0x88] sm:$0xff] %v5030
      %5063 = vst [vmem:[%s494 + $0x90] sm:$0xff] %v5031
      %5064 = vst [vmem:[%s494 + $0x98] sm:$0xff] %v5032
      %5065 = vst [vmem:[%s494 + $0xa0] sm:$0xff] %v5033
      %5066 = vst [vmem:[%s494 + $0xa8] sm:$0xff] %v5034
      %5067 = vst [vmem:[%s494 + $0xb0] sm:$0xff] %v5035
      %5068 = vst [vmem:[%s494 + $0xb8] sm:$0xff] %v5036
      %5069 = vst [vmem:[%s494 + $0xc0] sm:$0xff] %v5037
      %5070 = vst [vmem:[%s494 + $0xc8] sm:$0xff] %v5038
      %5071 = vst [vmem:[%s494 + $0xd0] sm:$0xff] %v5039
      %5072 = vst [vmem:[%s494 + $0xd8] sm:$0xff] %v5040
      %5073 = vst [vmem:[%s494 + $0xe0] sm:$0xff] %v5041
      %5074 = vst [vmem:[%s494 + $0xe8] sm:$0xff] %v5042
      %5075 = vst [vmem:[%s494 + $0xf0] sm:$0xff] %v5043
      %5076 = vst [vmem:[%s494 + $0xf8] sm:$0xff] %v5044
      %p5077 = scmp.lt.s32.totalorder %s26, 1
      %s5078 = scalar_select %p5077, %s26, 1
      %s5079 = smul.addr %s5078, 32
      %s5080 = smul.addr %s5079, 8
      %s5081 = scalar_lea.vmem %s15, %s5080
      // Predicated region
      $region81: #{block_forward.1} parent=79 // pred_check
        %p5082 = pneg %p364
      $region82: #{block_forward.1} parent=79 // pred_check_branch
        %5084 = sbr.rel (%p5082) target = $region84
      $region83: #{block_forward.1} parent=79 // pred_region
        _
      $region84: #{block_forward.1} parent=79 // pred_fallthru
        _
    $region80: #{block_forward.1} parent=5 // pred_fallthru
      _
    %p5085 = scmp.le.s32.totalorder 2, %s21
    // Predicated region
    $region85: #{block_forward.1} parent=5 // pred_check
      %p5086 = pneg %p5085
    $region86: #{block_forward.1} parent=5 // pred_check_branch
      %5088 = sbr.rel (%p5086) target = $region88
    $region87: #{block_forward.1} parent=5 // pred_region
      %s5089 = ssub.s32 %s21, 2
      // Predicated region
      $region89: #{block_forward.1} parent=87 // pred_check
        %p5090 = pneg %p370
      $region90: #{block_forward.1} parent=87 // pred_check_branch
        %5092 = sbr.rel (%p5090) target = $region92
      $region91: #{block_forward.1} parent=87 // pred_region
        %p5093 = scmp.lt.s32.totalorder %s27, 1
        %s5094 = scalar_select %p5093, %s27, 1
        %s5095 = smul.addr %s5094, 32
        %s5096 = smul.addr %s5095, 8
        %s5097 = scalar_lea.vmem %s15, %s5096
      $region92: #{block_forward.1} parent=87 // pred_fallthru
        _
    $region88: #{block_forward.1} parent=5 // pred_fallthru
      _
  $region6: #{block_forward.1} parent=0 // loop_footer
    %s25 = sadd.s32 1, %s21
  $region7: #{block_forward.1} parent=0 // loop_footer_branch
    %20 = sbr.rel target = $region3
  $region8: #{block_forward.1} parent=0 // loop_exit
    _

</llo_original>
